<compile_context>
chip_gen: v5e
topology: v5e:2x2
jax: 0.10.0
libtpu: 0.0.40
codegen_flags: <defaults>
</compile_context>

<pallas_src>
import jax
import jax.numpy as jnp
from jax import lax
from jax.experimental import pallas as pl
from jax.experimental.pallas import tpu as pltpu

EPS = 1e-5
MXU_DTYPE = jnp.bfloat16               # matmul-input / activation-storage dtype
VMEM_LIMIT_BYTES = 48 * 1024 * 1024    # v7x-safe (64 MiB/TC); v5e/v6e have 128 MiB
CENTER_TILE_BYTES = 512 * 1024         # target bytes per center block (im2col slab ~9x this)


# ----------------------------- conv kernels --------------------------------

def _make_conv_stats_kernel(tile_rows, W, cin, cout, apply_input_affine):
    """3x3 conv as a single big-K im2col MXU matmul + packed per-tile BN partial stats.

    Optionally applies a per-channel affine + ReLU (the previous BatchNorm) to the *input*
    tile before the conv (used to fuse BN1+ReLU into conv2's input path).
    """
    ext_len = tile_rows + 2 * W + 2   # [guard | top halo (W) | center | bottom halo (W) | guard]

    def kernel(*refs):
        if apply_input_affine:
            (center_ref, halo_ref, w_ref, sc_ref, sh_ref,
             y_ref, stats_ref, ext_ref) = refs
        else:
            (center_ref, halo_ref, w_ref,
             y_ref, stats_ref, ext_ref) = refs

        cdt = ext_ref.dtype

        if apply_input_affine:
            # Fused BN1-apply + ReLU on the conv2 input.  Halo rows that fall outside the
            # image must stay zero *post*-activation, hence the boundary mask.
            h = pl.program_id(1)
            last_h = pl.num_programs(1) - 1

            def act(v):
                v = v.astype(jnp.float32) * sc_ref[...] + sh_ref[...]
                return jnp.maximum(v, 0.0)

            center = act(center_ref[...])
            top = jnp.where(h > 0, act(halo_ref[0:W, :]), 0.0)
            bot = jnp.where(h < last_h, act(halo_ref[W:2 * W, :]), 0.0)
        else:
            center = center_ref[...]
            top = halo_ref[0:W, :]
            bot = halo_ref[W:2 * W, :]

        # Assemble the halo-extended tile in VMEM (guard rows only feed masked-out columns).
        ext_ref[0:1, :] = jnp.zeros((1, cin), cdt)
        ext_ref[1:W + 1, :] = top.astype(cdt)
        ext_ref[W + 1:W + 1 + tile_rows, :] = center.astype(cdt)
        ext_ref[W + 1 + tile_rows:W + 1 + tile_rows + W, :] = bot.astype(cdt)
        ext_ref[ext_len - 1:ext_len, :] = jnp.zeros((1, cin), cdt)

        # In-VMEM im2col: K ordered (dx, dy, cin) so each dx-group is one contiguous column
        # chunk and the left/right zero padding is a single mask per group.
        col = lax.broadcasted_iota(jnp.int32, (tile_rows, 1), 0) % W
        not_first = col != 0            # w == 0     -> no dx=0 contribution
        not_last = col != (W - 1)       # w == W - 1 -> no dx=2 contribution

        def dx_group(dx):
            return jnp.concatenate(
                [ext_ref[dy * W + dx:dy * W + dx + tile_rows, :] for dy in range(3)],
                axis=1)                                            # (tile_rows, 3*cin)

        left = jnp.where(not_first, dx_group(0), jnp.zeros((), cdt))
        mid = dx_group(1)
        right = jnp.where(not_last, dx_group(2), jnp.zeros((), cdt))
        slab = jnp.concatenate([left, mid, right], axis=1)         # (tile_rows, 9*cin)

        acc = jnp.dot(slab, w_ref[...], preferred_element_type=jnp.float32)

        y = acc.astype(y_ref.dtype)
        y_ref[...] = y
        # BN partials are computed from the *stored* (rounded) values so the later
        # normalization is self-consistent with the data it is applied to.
        yf = y.astype(jnp.float32)
        stats_ref[...] = jnp.concatenate(
            [jnp.sum(yf, axis=0, keepdims=True),
             jnp.sum(yf * yf, axis=0, keepdims=True)], axis=0)     # (2, cout)

    return kernel


# --------------------------- pallas_call wrappers ---------------------------

def _conv3x3_bn_stats(center, halo, w_mat, scale_shift, *, n_images, hb,
                      tile_rows, W, cin, cout, out_dtype):
    grid = (n_images, hb)
    apply_affine = scale_shift is not None
    kernel = _make_conv_stats_kernel(tile_rows, W, cin, cout, apply_affine)

    idx_tile = lambda n, h: (n * hb + h, 0, 0)
    idx_full = lambda n, h: (0, 0)

    in_specs = [
        pl.BlockSpec((None, tile_rows, cin), idx_tile),    # center rows of the tile
        pl.BlockSpec((None, 2 * W, cin), idx_tile),        # top/bottom halo rows
        pl.BlockSpec((9 * cin, cout), idx_full),           # im2col weights (grid-invariant)
    ]
    inputs = [center, halo, w_mat]
    if apply_affine:
        sc, sh = scale_shift
        in_specs += [pl.BlockSpec((1, cin), idx_full),
                     pl.BlockSpec((1, cin), idx_full)]
        inputs += [sc, sh]

    n_tiles = n_images * hb
    out_specs = [
        pl.BlockSpec((None, tile_rows, cout), idx_tile),   # conv output tile
        pl.BlockSpec((None, 2, cout), idx_tile),           # packed (sum, sum_sq) partials
    ]
    out_shape = [
        jax.ShapeDtypeStruct((n_tiles, tile_rows, cout), out_dtype),
        jax.ShapeDtypeStruct((n_tiles, 2, cout), jnp.float32),
    ]

    m_total = n_tiles * tile_rows
    in_isz = jnp.dtype(MXU_DTYPE).itemsize
    cost = pl.CostEstimate(
        flops=2 * m_total * 9 * cin * cout,
        transcendentals=0,
        bytes_accessed=(m_total * cin * in_isz
                        + n_tiles * 2 * W * cin * in_isz
                        + 9 * cin * cout * in_isz
                        + m_total * cout * jnp.dtype(out_dtype).itemsize
                        + 2 * n_tiles * cout * 4),
    )

    y, stats = pl.pallas_call(
        kernel,
        grid=grid,
        in_specs=in_specs,
        out_specs=out_specs,
        out_shape=out_shape,
        scratch_shapes=[pltpu.VMEM((tile_rows + 2 * W + 2, cin), MXU_DTYPE)],
        compiler_params=pltpu.CompilerParams(
            dimension_semantics=("parallel", "parallel"),
            vmem_limit_bytes=VMEM_LIMIT_BYTES),
        cost_estimate=cost,
    )(*inputs)
    return y, stats


def _bn_add_relu(y2, identity, sc, sh, *, rows, width, row_block):
    """Lane-dense BN2-apply + residual add + ReLU over (rows, width=W*C) slabs."""

    def kernel(y_ref, id_ref, sc_ref, sh_ref, o_ref):
        o_ref[...] = jnp.maximum(
            y_ref[...].astype(jnp.float32) * sc_ref[...] + sh_ref[...]
            + id_ref[...].astype(jnp.float32), 0.0)

    idx = lambda i: (i, 0)
    idx_c = lambda i: (0, 0)
    cost = pl.CostEstimate(
        flops=4 * rows * width, transcendentals=0,
        bytes_accessed=rows * width * (2 + 2 + 4))

    return pl.pallas_call(
        kernel,
        grid=(rows // row_block,),
        in_specs=[pl.BlockSpec((row_block, width), idx),
                  pl.BlockSpec((row_block, width), idx),
                  pl.BlockSpec((1, width), idx_c),
                  pl.BlockSpec((1, width), idx_c)],
        out_specs=pl.BlockSpec((row_block, width), idx),
        out_shape=jax.ShapeDtypeStruct((rows, width), jnp.float32),
        compiler_params=pltpu.CompilerParams(
            dimension_semantics=("parallel",),
            vmem_limit_bytes=VMEM_LIMIT_BYTES),
        cost_estimate=cost,
    )(y2, identity, sc, sh)


# ------------------------------- glue (JAX) --------------------------------

def _halo_rows(x_img, tile_h):
    """Rows (tile_start-1) and (tile_start+tile_h) for every H-tile of every image,
    zero where they fall outside the image.  Returns (N*HB, 2*W, C)."""
    N, H, W, C = x_img.shape
    hb = H // tile_h
    zrow = jnp.zeros((N, 1, W, C), x_img.dtype)
    tops = jnp.concatenate([zrow, x_img[:, tile_h - 1:H - 1:tile_h]], axis=1)
    bots = jnp.concatenate([x_img[:, tile_h:H:tile_h], zrow], axis=1)
    halo = jnp.concatenate([tops, bots], axis=2)           # (N, HB, 2W, C)
    return halo.reshape(N * hb, 2 * W, C)


def _w_to_mat(w_oihw, dtype):
    """PyTorch conv weight (Cout, Cin, 3, 3) -> (9*Cin, Cout), K ordered (dx, dy, cin)."""
    cout, cin, kh, kw = w_oihw.shape
    return jnp.transpose(w_oihw, (3, 2, 1, 0)).reshape(kh * kw * cin, cout).astype(dtype)


def _bn_scale_shift(stats, gamma, beta, count):
    """Finalize train-mode BatchNorm batch statistics (biased variance) from the packed
    per-tile f32 partials and fold them into a per-channel scale/shift."""
    total = jnp.sum(stats[:, 0, :], axis=0)
    total2 = jnp.sum(stats[:, 1, :], axis=0)
    mean = total / count
    var = jnp.maximum(total2 / count - mean * mean, 0.0)
    inv = lax.rsqrt(var + EPS)
    scale = gamma.astype(jnp.float32) * inv
    shift = beta.astype(jnp.float32) - mean * scale
    return scale.reshape(1, -1), shift.reshape(1, -1)


def _pick_tile_h(H, W, cin, target_bytes=CENTER_TILE_BYTES):
    """Byte-targeted H-tile: center block ~target_bytes (the in-VMEM im2col slab is ~9x)."""
    itemsize = jnp.dtype(MXU_DTYPE).itemsize
    rows_target = max(W, target_bytes // max(1, cin * itemsize))
    th = max(1, min(H, rows_target // max(W, 1)))
    while H % th:
        th -= 1
    return th


def _pick_row_block(rows, width, itemsize=4, target_bytes=2 * 1024 * 1024):
    """Row block for the elementwise tail: divides `rows`, multiple of 8 (or full)."""
    cap = max(1, target_bytes // max(1, width * itemsize))
    if rows <= cap:
        return rows
    best = rows
    for rb in range(8, cap + 1, 8):
        if rows % rb == 0:
            best = rb
    return best


def block_forward(x_nchw, params, tile_h=None):
    """Forward of `Block` with Downsample_option=None (identity shortcut)."""
    w1, g1, b1, w2, g2, b2 = params
    N, Cin, H, W = x_nchw.shape
    Cout = w1.shape[0]
    assert Cin == Cout, "Downsample_option=None requires inputs == outputs"

    th = _pick_tile_h(H, W, Cin) if tile_h is None else tile_h
    assert H % th == 0, "tile_h must divide H"
    hb = H // th
    tile_rows = th * W
    M = N * H * W

    # TODO(synk): if the surrounding model used NHWC, these two transposes (full HBM passes)
    # could be dropped; the module contract is NCHW so they are kept.
    x_nhwc = jnp.transpose(x_nchw, (0, 2, 3, 1))                    # (N, H, W, C)
    x_lp = x_nhwc.astype(MXU_DTYPE)

    # --- conv1 + packed partial BN1 statistics --------------------------------
    center1 = x_lp.reshape(N * hb, tile_rows, Cin)
    halo1 = _halo_rows(x_lp, th)
    w1m = _w_to_mat(w1, MXU_DTYPE)
    y1, st1 = _conv3x3_bn_stats(
        center1, halo1, w1m, None, n_images=N, hb=hb, tile_rows=tile_rows,
        W=W, cin=Cin, cout=Cout, out_dtype=MXU_DTYPE)
    sc1, sh1 = _bn_scale_shift(st1, g1, b1, float(M))

    # --- BN1-apply + ReLU fused into conv2 (+ packed partial BN2 statistics) ---
    halo2 = _halo_rows(y1.reshape(N, H, W, Cout), th)
    w2m = _w_to_mat(w2, MXU_DTYPE)
    y2, st2 = _conv3x3_bn_stats(
        y1, halo2, w2m, (sc1, sh1), n_images=N, hb=hb, tile_rows=tile_rows,
        W=W, cin=Cout, cout=Cout, out_dtype=MXU_DTYPE)
    sc2, sh2 = _bn_scale_shift(st2, g2, b2, float(M))

    # --- BN2-apply + residual add + ReLU (lane-dense (rows, W*C) layout) -------
    rows, width = N * H, W * Cout
    rb = _pick_row_block(rows, width)
    y2_flat = y2.reshape(rows, width)                               # bf16
    id_flat = x_lp.reshape(rows, width)                             # bf16 residual
    sc2w = jnp.tile(sc2, (1, W))                                    # (1, W*C)
    sh2w = jnp.tile(sh2, (1, W))
    out = _bn_add_relu(y2_flat, id_flat, sc2w, sh2w,
                       rows=rows, width=width, row_block=rb)

    return jnp.transpose(out.reshape(N, H, W, Cout), (0, 3, 1, 2))  # back to NCHW


# --------------------------- pure-JAX reference ----------------------------

def _ref_forward(x_nchw, params):
    w1, g1, b1, w2, g2, b2 = params

    def conv(x, w):
        return lax.conv_general_dilated(
            x, w, window_strides=(1, 1), padding=((1, 1), (1, 1)),
            dimension_numbers=("NCHW", "OIHW", "NCHW"))

    def bn(x, g, b):
        mean = jnp.mean(x, axis=(0, 2, 3), keepdims=True)
        var = jnp.mean((x - mean) ** 2, axis=(0, 2, 3), keepdims=True)
        return (x - mean) * lax.rsqrt(var + EPS) * g.reshape(1, -1, 1, 1) \
               + b.reshape(1, -1, 1, 1)

    h = jax.nn.relu(bn(conv(x_nchw, w1), g1, b1))
    h = bn(conv(h, w2), g2, b2)
    return jax.nn.relu(h + x_nchw)


# --------------------------------- main -------------------------------------

if __name__ == "__main__":
    key = jax.random.PRNGKey(0)
    N, C, H, W = 2, 4, 16, 16
    ks = jax.random.split(key, 6)

    x = jax.random.normal(ks[0], (N, C, H, W), jnp.float32)
    w1 = 0.1 * jax.random.normal(ks[1], (C, C, 3, 3), jnp.float32)
    w2 = 0.1 * jax.random.normal(ks[2], (C, C, 3, 3), jnp.float32)
    g1 = 1.0 + 0.1 * jax.random.normal(ks[3], (C,), jnp.float32)
    b1 = 0.1 * jax.random.normal(ks[4], (C,), jnp.float32)
    g2 = 1.0 + 0.1 * jax.random.normal(ks[5], (C,), jnp.float32)
    b2 = jnp.zeros((C,), jnp.float32)
    params = (w1, g1, b1, w2, g2, b2)

    fwd = jax.jit(block_forward)            # byte-targeted tiling picks tile_h automatically
    out = fwd(x, params)
    jax.block_until_ready(out)

    ref = _ref_forward(x, params)
    # Tolerance covers bf16 storage of x / h1 / h2 activations (f32 accumulation throughout).
    err = float(jnp.max(jnp.abs(out - ref) / (1.0 + jnp.abs(ref))))
    assert err < 5e-2, f"mismatch vs reference: scaled max err {err}"

    print("KERNEL_OK")
</pallas_src>

<mosaic_0001>
module attributes {stable_mosaic.version = 11 : i64} {
  func.func @kernel(%arg0: i32, %arg1: i32, %arg2: memref<1x256x4xbf16, #tpu.memory_space<vmem>>, %arg3: memref<1x32x4xbf16, #tpu.memory_space<vmem>>, %arg4: memref<36x4xbf16, #tpu.memory_space<vmem>>, %arg5: memref<1x256x4xbf16, #tpu.memory_space<vmem>>, %arg6: memref<1x2x4xf32, #tpu.memory_space<vmem>>, %arg7: memref<290x4xbf16, #tpu.memory_space<vmem>>) attributes {dimension_semantics = [#tpu.dimension_semantics<parallel>, #tpu.dimension_semantics<parallel>], iteration_bounds = array<i64: 2, 1>, scalar_prefetch = 0 : i64, scratch_operands = 1 : i64, tpu.core_type = #tpu.core_type<tc>, window_params = [{transform_indices = @transform_0, window_bounds = array<i64: 1, 256, 4>}, {transform_indices = @transform_1, window_bounds = array<i64: 1, 32, 4>}, {pipeline_mode = #tpu.pipeline_mode<synchronous>, transform_indices = @transform_2, window_bounds = array<i64: 36, 4>}, {transform_indices = @transform_3, window_bounds = array<i64: 1, 256, 4>}, {transform_indices = @transform_4, window_bounds = array<i64: 1, 2, 4>}]} {
    %c0 = arith.constant 0 : index
    %c0_0 = arith.constant 0 : index
    %c0_1 = arith.constant 0 : index
    %0 = vector.load %arg2[%c0, %c0_0, %c0_1] : memref<1x256x4xbf16, #tpu.memory_space<vmem>>, vector<1x256x4xbf16>
    %1 = vector.shape_cast %0 : vector<1x256x4xbf16> to vector<256x4xbf16>
    %c0_2 = arith.constant 0 : index
    %c0_3 = arith.constant 0 : index
    %c0_4 = arith.constant 0 : index
    %2 = vector.load %arg3[%c0_2, %c0_3, %c0_4] : memref<1x32x4xbf16, #tpu.memory_space<vmem>>, vector<1x16x4xbf16>
    %3 = vector.shape_cast %2 : vector<1x16x4xbf16> to vector<16x4xbf16>
    %c0_5 = arith.constant 0 : index
    %c16 = arith.constant 16 : index
    %c0_6 = arith.constant 0 : index
    %4 = vector.load %arg3[%c0_5, %c16, %c0_6] : memref<1x32x4xbf16, #tpu.memory_space<vmem>>, vector<1x16x4xbf16>
    %5 = vector.shape_cast %4 : vector<1x16x4xbf16> to vector<16x4xbf16>
    %cst = arith.constant 0.000000e+00 : bf16
    %6 = vector.broadcast %cst : bf16 to vector<1x4xbf16>
    %c0_7 = arith.constant 0 : index
    %c0_8 = arith.constant 0 : index
    %7 = vector.load %arg7[%c0_7, %c0_8] : memref<290x4xbf16, #tpu.memory_space<vmem>>, vector<1x4xbf16>
    tpu.vector_store %arg7[%c0_7, %c0_8], %6 {strides = array<i32>} : memref<290x4xbf16, #tpu.memory_space<vmem>>, vector<1x4xbf16>,
    %c1 = arith.constant 1 : index
    %c0_9 = arith.constant 0 : index
    %8 = vector.load %arg7[%c1, %c0_9] : memref<290x4xbf16, #tpu.memory_space<vmem>>, vector<16x4xbf16>
    tpu.vector_store %arg7[%c1, %c0_9], %3 {strides = array<i32>} : memref<290x4xbf16, #tpu.memory_space<vmem>>, vector<16x4xbf16>,
    %c17 = arith.constant 17 : index
    %c0_10 = arith.constant 0 : index
    %9 = vector.load %arg7[%c17, %c0_10] : memref<290x4xbf16, #tpu.memory_space<vmem>>, vector<256x4xbf16>
    tpu.vector_store %arg7[%c17, %c0_10], %1 {strides = array<i32>} : memref<290x4xbf16, #tpu.memory_space<vmem>>, vector<256x4xbf16>,
    %c273 = arith.constant 273 : index
    %c0_11 = arith.constant 0 : index
    %10 = vector.load %arg7[%c273, %c0_11] : memref<290x4xbf16, #tpu.memory_space<vmem>>, vector<16x4xbf16>
    tpu.vector_store %arg7[%c273, %c0_11], %5 {strides = array<i32>} : memref<290x4xbf16, #tpu.memory_space<vmem>>, vector<16x4xbf16>,
    %cst_12 = arith.constant 0.000000e+00 : bf16
    %11 = vector.broadcast %cst_12 : bf16 to vector<1x4xbf16>
    %c289 = arith.constant 289 : index
    %c0_13 = arith.constant 0 : index
    %12 = vector.load %arg7[%c289, %c0_13] : memref<290x4xbf16, #tpu.memory_space<vmem>>, vector<1x4xbf16>
    tpu.vector_store %arg7[%c289, %c0_13], %11 {strides = array<i32>} : memref<290x4xbf16, #tpu.memory_space<vmem>>, vector<1x4xbf16>,
    %13 = tpu.iota {dimensions = array<i32: 0>} : vector<256x1xi32>
    %c16_i32 = arith.constant 16 : i32
    %c0_i32 = arith.constant 0 : i32
    %14 = arith.cmpi eq, %c16_i32, %c0_i32 : i32
    %c1_i32 = arith.constant 1 : i32
    %15 = arith.select %14, %c1_i32, %c16_i32 : i32
    %16 = vector.broadcast %15 : i32 to vector<256x1xi32>
    %17 = arith.remsi %13, %16 : vector<256x1xi32>
    %c0_i32_14 = arith.constant 0 : i32
    %18 = vector.broadcast %c0_i32_14 : i32 to vector<256x1xi32>
    %19 = arith.cmpi ne, %17, %18 : vector<256x1xi32>
    %c0_i32_15 = arith.constant 0 : i32
    %20 = vector.broadcast %c0_i32_15 : i32 to vector<256x1xi32>
    %21 = arith.cmpi slt, %17, %20 : vector<256x1xi32>
    %c0_i32_16 = arith.constant 0 : i32
    %22 = arith.cmpi slt, %15, %c0_i32_16 : i32
    %23 = vector.broadcast %22 : i1 to vector<256x1xi1>
    %24 = vector.broadcast %23 : vector<256x1xi1> to vector<256x1xi1>
    %25 = arith.xori %21, %24 : vector<256x1xi1>
    %26 = arith.andi %25, %19 : vector<256x1xi1>
    %27 = vector.broadcast %15 : i32 to vector<256x1xi32>
    %28 = arith.addi %17, %27 : vector<256x1xi32>
    %29 = arith.select %26, %28, %17 : vector<256x1xi1>, vector<256x1xi32>
    %c0_i32_17 = arith.constant 0 : i32
    %30 = vector.broadcast %c0_i32_17 : i32 to vector<256x1xi32>
    %31 = arith.cmpi ne, %29, %30 : vector<256x1xi32>
    %c15_i32 = arith.constant 15 : i32
    %32 = vector.broadcast %c15_i32 : i32 to vector<256x1xi32>
    %33 = arith.cmpi ne, %29, %32 : vector<256x1xi32>
    %c0_18 = arith.constant 0 : index
    %c0_19 = arith.constant 0 : index
    %34 = vector.load %arg7[%c0_18, %c0_19] : memref<290x4xbf16, #tpu.memory_space<vmem>>, vector<256x4xbf16>
    %c16_20 = arith.constant 16 : index
    %c0_21 = arith.constant 0 : index
    %35 = vector.load %arg7[%c16_20, %c0_21] : memref<290x4xbf16, #tpu.memory_space<vmem>>, vector<256x4xbf16>
    %c32 = arith.constant 32 : index
    %c0_22 = arith.constant 0 : index
    %36 = vector.load %arg7[%c32, %c0_22] : memref<290x4xbf16, #tpu.memory_space<vmem>>, vector<256x4xbf16>
    %37 = tpu.concatenate %34, %35, %36 in 1 : vector<256x4xbf16>, vector<256x4xbf16>, vector<256x4xbf16> -> vector<256x12xbf16>
    %cst_23 = arith.constant 0.000000e+00 : bf16
    %38 = vector.shape_cast %31 : vector<256x1xi1> to vector<256x1xi1>
    %39 = vector.broadcast %38 : vector<256x1xi1> to vector<256x12xi1>
    %40 = vector.broadcast %cst_23 : bf16 to vector<256x12xbf16>
    %41 = arith.select %39, %37, %40 : vector<256x12xi1>, vector<256x12xbf16>
    %c1_24 = arith.constant 1 : index
    %c0_25 = arith.constant 0 : index
    %42 = vector.load %arg7[%c1_24, %c0_25] : memref<290x4xbf16, #tpu.memory_space<vmem>>, vector<256x4xbf16>
    %c17_26 = arith.constant 17 : index
    %c0_27 = arith.constant 0 : index
    %43 = vector.load %arg7[%c17_26, %c0_27] : memref<290x4xbf16, #tpu.memory_space<vmem>>, vector<256x4xbf16>
    %c33 = arith.constant 33 : index
    %c0_28 = arith.constant 0 : index
    %44 = vector.load %arg7[%c33, %c0_28] : memref<290x4xbf16, #tpu.memory_space<vmem>>, vector<256x4xbf16>
    %45 = tpu.concatenate %42, %43, %44 in 1 : vector<256x4xbf16>, vector<256x4xbf16>, vector<256x4xbf16> -> vector<256x12xbf16>
    %c2 = arith.constant 2 : index
    %c0_29 = arith.constant 0 : index
    %46 = vector.load %arg7[%c2, %c0_29] : memref<290x4xbf16, #tpu.memory_space<vmem>>, vector<256x4xbf16>
    %c18 = arith.constant 18 : index
    %c0_30 = arith.constant 0 : index
    %47 = vector.load %arg7[%c18, %c0_30] : memref<290x4xbf16, #tpu.memory_space<vmem>>, vector<256x4xbf16>
    %c34 = arith.constant 34 : index
    %c0_31 = arith.constant 0 : index
    %48 = vector.load %arg7[%c34, %c0_31] : memref<290x4xbf16, #tpu.memory_space<vmem>>, vector<256x4xbf16>
    %49 = tpu.concatenate %46, %47, %48 in 1 : vector<256x4xbf16>, vector<256x4xbf16>, vector<256x4xbf16> -> vector<256x12xbf16>
    %cst_32 = arith.constant 0.000000e+00 : bf16
    %50 = vector.shape_cast %33 : vector<256x1xi1> to vector<256x1xi1>
    %51 = vector.broadcast %50 : vector<256x1xi1> to vector<256x12xi1>
    %52 = vector.broadcast %cst_32 : bf16 to vector<256x12xbf16>
    %53 = arith.select %51, %49, %52 : vector<256x12xi1>, vector<256x12xbf16>
    %54 = tpu.concatenate %41, %45, %53 in 1 : vector<256x12xbf16>, vector<256x12xbf16>, vector<256x12xbf16> -> vector<256x36xbf16>
    %c0_33 = arith.constant 0 : index
    %c0_34 = arith.constant 0 : index
    %55 = vector.load %arg4[%c0_33, %c0_34] : memref<36x4xbf16, #tpu.memory_space<vmem>>, vector<36x4xbf16>
    %cst_35 = arith.constant dense<0.000000e+00> : vector<256x4xf32>
    %56 = tpu.matmul %54, %55, %cst_35 {dimension_numbers = #tpu.dot_dimension_numbers<[1], [0], [0], [1], [0, 0, 1, 1], [], []>} : vector<256x36xbf16>, vector<36x4xbf16>, vector<256x4xf32> -> vector<256x4xf32>
    %57 = arith.truncf %56 : vector<256x4xf32> to vector<256x4xbf16>
    %c0_36 = arith.constant 0 : index
    %c0_37 = arith.constant 0 : index
    %c0_38 = arith.constant 0 : index
    %58 = vector.load %arg5[%c0_36, %c0_37, %c0_38] : memref<1x256x4xbf16, #tpu.memory_space<vmem>>, vector<1x256x4xbf16>
    %59 = vector.shape_cast %58 : vector<1x256x4xbf16> to vector<256x4xbf16>
    %60 = vector.shape_cast %57 : vector<256x4xbf16> to vector<1x256x4xbf16>
    tpu.vector_store %arg5[%c0_36, %c0_37, %c0_38], %60 {strides = array<i32>} : memref<1x256x4xbf16, #tpu.memory_space<vmem>>, vector<1x256x4xbf16>,
    %61 = arith.extf %57 : vector<256x4xbf16> to vector<256x4xf32>
    %cst_39 = arith.constant dense<0.000000e+00> : vector<4xf32>
    %62 = vector.multi_reduction <add>, %61, %cst_39 [0] : vector<256x4xf32> to vector<4xf32>
    %63 = vector.shape_cast %62 : vector<4xf32> to vector<1x4xf32>
    %64 = arith.mulf %61, %61 : vector<256x4xf32>
    %cst_40 = arith.constant dense<0.000000e+00> : vector<4xf32>
    %65 = vector.multi_reduction <add>, %64, %cst_40 [0] : vector<256x4xf32> to vector<4xf32>
    %66 = vector.shape_cast %65 : vector<4xf32> to vector<1x4xf32>
    %67 = tpu.concatenate %63, %66 in 0 : vector<1x4xf32>, vector<1x4xf32> -> vector<2x4xf32>
    %c0_41 = arith.constant 0 : index
    %c0_42 = arith.constant 0 : index
    %c0_43 = arith.constant 0 : index
    %68 = vector.load %arg6[%c0_41, %c0_42, %c0_43] : memref<1x2x4xf32, #tpu.memory_space<vmem>>, vector<1x2x4xf32>
    %69 = vector.shape_cast %68 : vector<1x2x4xf32> to vector<2x4xf32>
    %70 = vector.shape_cast %67 : vector<2x4xf32> to vector<1x2x4xf32>
    tpu.vector_store %arg6[%c0_41, %c0_42, %c0_43], %70 {strides = array<i32>} : memref<1x2x4xf32, #tpu.memory_space<vmem>>, vector<1x2x4xf32>,
    return
  }
  func.func @transform_0(%arg0: i32, %arg1: i32) -> (i32, i32, i32) {
    %c1_i32 = arith.constant 1 : i32
    %0 = arith.muli %arg0, %c1_i32 : i32
    %1 = arith.addi %0, %arg1 : i32
    %c0_i32 = arith.constant 0 : i32
    %c0_i32_0 = arith.constant 0 : i32
    %c0_i32_1 = arith.constant 0 : i32
    return %1, %c0_i32, %c0_i32_0 : i32, i32, i32
  }
  func.func @transform_1(%arg0: i32, %arg1: i32) -> (i32, i32, i32) {
    %c1_i32 = arith.constant 1 : i32
    %0 = arith.muli %arg0, %c1_i32 : i32
    %1 = arith.addi %0, %arg1 : i32
    %c0_i32 = arith.constant 0 : i32
    %c0_i32_0 = arith.constant 0 : i32
    %c0_i32_1 = arith.constant 0 : i32
    return %1, %c0_i32, %c0_i32_0 : i32, i32, i32
  }
  func.func @transform_2(%arg0: i32, %arg1: i32) -> (i32, i32) {
    %c0_i32 = arith.constant 0 : i32
    %c0_i32_0 = arith.constant 0 : i32
    %c0_i32_1 = arith.constant 0 : i32
    return %c0_i32, %c0_i32_0 : i32, i32
  }
  func.func @transform_3(%arg0: i32, %arg1: i32) -> (i32, i32, i32) {
    %c1_i32 = arith.constant 1 : i32
    %0 = arith.muli %arg0, %c1_i32 : i32
    %1 = arith.addi %0, %arg1 : i32
    %c0_i32 = arith.constant 0 : i32
    %c0_i32_0 = arith.constant 0 : i32
    %c0_i32_1 = arith.constant 0 : i32
    return %1, %c0_i32, %c0_i32_0 : i32, i32, i32
  }
  func.func @transform_4(%arg0: i32, %arg1: i32) -> (i32, i32, i32) {
    %c1_i32 = arith.constant 1 : i32
    %0 = arith.muli %arg0, %c1_i32 : i32
    %1 = arith.addi %0, %arg1 : i32
    %c0_i32 = arith.constant 0 : i32
    %c0_i32_0 = arith.constant 0 : i32
    %c0_i32_1 = arith.constant 0 : i32
    return %1, %c0_i32, %c0_i32_0 : i32, i32, i32
  }
}

module attributes {stable_mosaic.version = 11 : i64} {
  func.func @kernel(%arg0: i32, %arg1: i32, %arg2: memref<1x256x4xbf16, #tpu.memory_space<vmem>>, %arg3: memref<1x32x4xbf16, #tpu.memory_space<vmem>>, %arg4: memref<36x4xbf16, #tpu.memory_space<vmem>>, %arg5: memref<1x4xf32, #tpu.memory_space<vmem>>, %arg6: memref<1x4xf32, #tpu.memory_space<vmem>>, %arg7: memref<1x256x4xbf16, #tpu.memory_space<vmem>>, %arg8: memref<1x2x4xf32, #tpu.memory_space<vmem>>, %arg9: memref<290x4xbf16, #tpu.memory_space<vmem>>) attributes {dimension_semantics = [#tpu.dimension_semantics<parallel>, #tpu.dimension_semantics<parallel>], iteration_bounds = array<i64: 2, 1>, scalar_prefetch = 0 : i64, scratch_operands = 1 : i64, tpu.core_type = #tpu.core_type<tc>, window_params = [{transform_indices = @transform_0, window_bounds = array<i64: 1, 256, 4>}, {transform_indices = @transform_1, window_bounds = array<i64: 1, 32, 4>}, {pipeline_mode = #tpu.pipeline_mode<synchronous>, transform_indices = @transform_2, window_bounds = array<i64: 36, 4>}, {pipeline_mode = #tpu.pipeline_mode<synchronous>, transform_indices = @transform_3, window_bounds = array<i64: 1, 4>}, {pipeline_mode = #tpu.pipeline_mode<synchronous>, transform_indices = @transform_4, window_bounds = array<i64: 1, 4>}, {transform_indices = @transform_5, window_bounds = array<i64: 1, 256, 4>}, {transform_indices = @transform_6, window_bounds = array<i64: 1, 2, 4>}]} {
    %c0 = arith.constant 0 : index
    %c0_0 = arith.constant 0 : index
    %c0_1 = arith.constant 0 : index
    %0 = vector.load %arg2[%c0, %c0_0, %c0_1] : memref<1x256x4xbf16, #tpu.memory_space<vmem>>, vector<1x256x4xbf16>
    %1 = vector.shape_cast %0 : vector<1x256x4xbf16> to vector<256x4xbf16>
    %2 = arith.extf %1 : vector<256x4xbf16> to vector<256x4xf32>
    %c0_2 = arith.constant 0 : index
    %c0_3 = arith.constant 0 : index
    %3 = vector.load %arg5[%c0_2, %c0_3] : memref<1x4xf32, #tpu.memory_space<vmem>>, vector<1x4xf32>
    %4 = vector.broadcast %3 : vector<1x4xf32> to vector<256x4xf32>
    %5 = arith.mulf %2, %4 : vector<256x4xf32>
    %c0_4 = arith.constant 0 : index
    %c0_5 = arith.constant 0 : index
    %6 = vector.load %arg6[%c0_4, %c0_5] : memref<1x4xf32, #tpu.memory_space<vmem>>, vector<1x4xf32>
    %7 = vector.broadcast %6 : vector<1x4xf32> to vector<256x4xf32>
    %8 = arith.addf %5, %7 : vector<256x4xf32>
    %cst = arith.constant 0.000000e+00 : f32
    %9 = vector.broadcast %cst : f32 to vector<256x4xf32>
    %10 = arith.maximumf %8, %9 : vector<256x4xf32>
    %c0_i32 = arith.constant 0 : i32
    %11 = arith.cmpi sgt, %arg1, %c0_i32 : i32
    %c0_6 = arith.constant 0 : index
    %c0_7 = arith.constant 0 : index
    %c0_8 = arith.constant 0 : index
    %12 = vector.load %arg3[%c0_6, %c0_7, %c0_8] : memref<1x32x4xbf16, #tpu.memory_space<vmem>>, vector<1x16x4xbf16>
    %13 = vector.shape_cast %12 : vector<1x16x4xbf16> to vector<16x4xbf16>
    %14 = arith.extf %13 : vector<16x4xbf16> to vector<16x4xf32>
    %c0_9 = arith.constant 0 : index
    %c0_10 = arith.constant 0 : index
    %15 = vector.load %arg5[%c0_9, %c0_10] : memref<1x4xf32, #tpu.memory_space<vmem>>, vector<1x4xf32>
    %16 = vector.broadcast %15 : vector<1x4xf32> to vector<16x4xf32>
    %17 = arith.mulf %14, %16 : vector<16x4xf32>
    %c0_11 = arith.constant 0 : index
    %c0_12 = arith.constant 0 : index
    %18 = vector.load %arg6[%c0_11, %c0_12] : memref<1x4xf32, #tpu.memory_space<vmem>>, vector<1x4xf32>
    %19 = vector.broadcast %18 : vector<1x4xf32> to vector<16x4xf32>
    %20 = arith.addf %17, %19 : vector<16x4xf32>
    %cst_13 = arith.constant 0.000000e+00 : f32
    %21 = vector.broadcast %cst_13 : f32 to vector<16x4xf32>
    %22 = arith.maximumf %20, %21 : vector<16x4xf32>
    %cst_14 = arith.constant 0.000000e+00 : f32
    %23 = vector.broadcast %cst_14 : f32 to vector<16x4xf32>
    %24 = arith.select %11, %22, %23 : vector<16x4xf32>
    %c0_i32_15 = arith.constant 0 : i32
    %25 = arith.cmpi slt, %arg1, %c0_i32_15 : i32
    %c0_16 = arith.constant 0 : index
    %c16 = arith.constant 16 : index
    %c0_17 = arith.constant 0 : index
    %26 = vector.load %arg3[%c0_16, %c16, %c0_17] : memref<1x32x4xbf16, #tpu.memory_space<vmem>>, vector<1x16x4xbf16>
    %27 = vector.shape_cast %26 : vector<1x16x4xbf16> to vector<16x4xbf16>
    %28 = arith.extf %27 : vector<16x4xbf16> to vector<16x4xf32>
    %c0_18 = arith.constant 0 : index
    %c0_19 = arith.constant 0 : index
    %29 = vector.load %arg5[%c0_18, %c0_19] : memref<1x4xf32, #tpu.memory_space<vmem>>, vector<1x4xf32>
    %30 = vector.broadcast %29 : vector<1x4xf32> to vector<16x4xf32>
    %31 = arith.mulf %28, %30 : vector<16x4xf32>
    %c0_20 = arith.constant 0 : index
    %c0_21 = arith.constant 0 : index
    %32 = vector.load %arg6[%c0_20, %c0_21] : memref<1x4xf32, #tpu.memory_space<vmem>>, vector<1x4xf32>
    %33 = vector.broadcast %32 : vector<1x4xf32> to vector<16x4xf32>
    %34 = arith.addf %31, %33 : vector<16x4xf32>
    %cst_22 = arith.constant 0.000000e+00 : f32
    %35 = vector.broadcast %cst_22 : f32 to vector<16x4xf32>
    %36 = arith.maximumf %34, %35 : vector<16x4xf32>
    %cst_23 = arith.constant 0.000000e+00 : f32
    %37 = vector.broadcast %cst_23 : f32 to vector<16x4xf32>
    %38 = arith.select %25, %36, %37 : vector<16x4xf32>
    %cst_24 = arith.constant 0.000000e+00 : bf16
    %39 = vector.broadcast %cst_24 : bf16 to vector<1x4xbf16>
    %c0_25 = arith.constant 0 : index
    %c0_26 = arith.constant 0 : index
    %40 = vector.load %arg9[%c0_25, %c0_26] : memref<290x4xbf16, #tpu.memory_space<vmem>>, vector<1x4xbf16>
    tpu.vector_store %arg9[%c0_25, %c0_26], %39 {strides = array<i32>} : memref<290x4xbf16, #tpu.memory_space<vmem>>, vector<1x4xbf16>,
    %41 = arith.truncf %24 : vector<16x4xf32> to vector<16x4xbf16>
    %c1 = arith.constant 1 : index
    %c0_27 = arith.constant 0 : index
    %42 = vector.load %arg9[%c1, %c0_27] : memref<290x4xbf16, #tpu.memory_space<vmem>>, vector<16x4xbf16>
    tpu.vector_store %arg9[%c1, %c0_27], %41 {strides = array<i32>} : memref<290x4xbf16, #tpu.memory_space<vmem>>, vector<16x4xbf16>,
    %43 = arith.truncf %10 : vector<256x4xf32> to vector<256x4xbf16>
    %c17 = arith.constant 17 : index
    %c0_28 = arith.constant 0 : index
    %44 = vector.load %arg9[%c17, %c0_28] : memref<290x4xbf16, #tpu.memory_space<vmem>>, vector<256x4xbf16>
    tpu.vector_store %arg9[%c17, %c0_28], %43 {strides = array<i32>} : memref<290x4xbf16, #tpu.memory_space<vmem>>, vector<256x4xbf16>,
    %45 = arith.truncf %38 : vector<16x4xf32> to vector<16x4xbf16>
    %c273 = arith.constant 273 : index
    %c0_29 = arith.constant 0 : index
    %46 = vector.load %arg9[%c273, %c0_29] : memref<290x4xbf16, #tpu.memory_space<vmem>>, vector<16x4xbf16>
    tpu.vector_store %arg9[%c273, %c0_29], %45 {strides = array<i32>} : memref<290x4xbf16, #tpu.memory_space<vmem>>, vector<16x4xbf16>,
    %cst_30 = arith.constant 0.000000e+00 : bf16
    %47 = vector.broadcast %cst_30 : bf16 to vector<1x4xbf16>
    %c289 = arith.constant 289 : index
    %c0_31 = arith.constant 0 : index
    %48 = vector.load %arg9[%c289, %c0_31] : memref<290x4xbf16, #tpu.memory_space<vmem>>, vector<1x4xbf16>
    tpu.vector_store %arg9[%c289, %c0_31], %47 {strides = array<i32>} : memref<290x4xbf16, #tpu.memory_space<vmem>>, vector<1x4xbf16>,
    %49 = tpu.iota {dimensions = array<i32: 0>} : vector<256x1xi32>
    %c16_i32 = arith.constant 16 : i32
    %c0_i32_32 = arith.constant 0 : i32
    %50 = arith.cmpi eq, %c16_i32, %c0_i32_32 : i32
    %c1_i32 = arith.constant 1 : i32
    %51 = arith.select %50, %c1_i32, %c16_i32 : i32
    %52 = vector.broadcast %51 : i32 to vector<256x1xi32>
    %53 = arith.remsi %49, %52 : vector<256x1xi32>
    %c0_i32_33 = arith.constant 0 : i32
    %54 = vector.broadcast %c0_i32_33 : i32 to vector<256x1xi32>
    %55 = arith.cmpi ne, %53, %54 : vector<256x1xi32>
    %c0_i32_34 = arith.constant 0 : i32
    %56 = vector.broadcast %c0_i32_34 : i32 to vector<256x1xi32>
    %57 = arith.cmpi slt, %53, %56 : vector<256x1xi32>
    %c0_i32_35 = arith.constant 0 : i32
    %58 = arith.cmpi slt, %51, %c0_i32_35 : i32
    %59 = vector.broadcast %58 : i1 to vector<256x1xi1>
    %60 = vector.broadcast %59 : vector<256x1xi1> to vector<256x1xi1>
    %61 = arith.xori %57, %60 : vector<256x1xi1>
    %62 = arith.andi %61, %55 : vector<256x1xi1>
    %63 = vector.broadcast %51 : i32 to vector<256x1xi32>
    %64 = arith.addi %53, %63 : vector<256x1xi32>
    %65 = arith.select %62, %64, %53 : vector<256x1xi1>, vector<256x1xi32>
    %c0_i32_36 = arith.constant 0 : i32
    %66 = vector.broadcast %c0_i32_36 : i32 to vector<256x1xi32>
    %67 = arith.cmpi ne, %65, %66 : vector<256x1xi32>
    %c15_i32 = arith.constant 15 : i32
    %68 = vector.broadcast %c15_i32 : i32 to vector<256x1xi32>
    %69 = arith.cmpi ne, %65, %68 : vector<256x1xi32>
    %c0_37 = arith.constant 0 : index
    %c0_38 = arith.constant 0 : index
    %70 = vector.load %arg9[%c0_37, %c0_38] : memref<290x4xbf16, #tpu.memory_space<vmem>>, vector<256x4xbf16>
    %c16_39 = arith.constant 16 : index
    %c0_40 = arith.constant 0 : index
    %71 = vector.load %arg9[%c16_39, %c0_40] : memref<290x4xbf16, #tpu.memory_space<vmem>>, vector<256x4xbf16>
    %c32 = arith.constant 32 : index
    %c0_41 = arith.constant 0 : index
    %72 = vector.load %arg9[%c32, %c0_41] : memref<290x4xbf16, #tpu.memory_space<vmem>>, vector<256x4xbf16>
    %73 = tpu.concatenate %70, %71, %72 in 1 : vector<256x4xbf16>, vector<256x4xbf16>, vector<256x4xbf16> -> vector<256x12xbf16>
    %cst_42 = arith.constant 0.000000e+00 : bf16
    %74 = vector.shape_cast %67 : vector<256x1xi1> to vector<256x1xi1>
    %75 = vector.broadcast %74 : vector<256x1xi1> to vector<256x12xi1>
    %76 = vector.broadcast %cst_42 : bf16 to vector<256x12xbf16>
    %77 = arith.select %75, %73, %76 : vector<256x12xi1>, vector<256x12xbf16>
    %c1_43 = arith.constant 1 : index
    %c0_44 = arith.constant 0 : index
    %78 = vector.load %arg9[%c1_43, %c0_44] : memref<290x4xbf16, #tpu.memory_space<vmem>>, vector<256x4xbf16>
    %c17_45 = arith.constant 17 : index
    %c0_46 = arith.constant 0 : index
    %79 = vector.load %arg9[%c17_45, %c0_46] : memref<290x4xbf16, #tpu.memory_space<vmem>>, vector<256x4xbf16>
    %c33 = arith.constant 33 : index
    %c0_47 = arith.constant 0 : index
    %80 = vector.load %arg9[%c33, %c0_47] : memref<290x4xbf16, #tpu.memory_space<vmem>>, vector<256x4xbf16>
    %81 = tpu.concatenate %78, %79, %80 in 1 : vector<256x4xbf16>, vector<256x4xbf16>, vector<256x4xbf16> -> vector<256x12xbf16>
    %c2 = arith.constant 2 : index
    %c0_48 = arith.constant 0 : index
    %82 = vector.load %arg9[%c2, %c0_48] : memref<290x4xbf16, #tpu.memory_space<vmem>>, vector<256x4xbf16>
    %c18 = arith.constant 18 : index
    %c0_49 = arith.constant 0 : index
    %83 = vector.load %arg9[%c18, %c0_49] : memref<290x4xbf16, #tpu.memory_space<vmem>>, vector<256x4xbf16>
    %c34 = arith.constant 34 : index
    %c0_50 = arith.constant 0 : index
    %84 = vector.load %arg9[%c34, %c0_50] : memref<290x4xbf16, #tpu.memory_space<vmem>>, vector<256x4xbf16>
    %85 = tpu.concatenate %82, %83, %84 in 1 : vector<256x4xbf16>, vector<256x4xbf16>, vector<256x4xbf16> -> vector<256x12xbf16>
    %cst_51 = arith.constant 0.000000e+00 : bf16
    %86 = vector.shape_cast %69 : vector<256x1xi1> to vector<256x1xi1>
    %87 = vector.broadcast %86 : vector<256x1xi1> to vector<256x12xi1>
    %88 = vector.broadcast %cst_51 : bf16 to vector<256x12xbf16>
    %89 = arith.select %87, %85, %88 : vector<256x12xi1>, vector<256x12xbf16>
    %90 = tpu.concatenate %77, %81, %89 in 1 : vector<256x12xbf16>, vector<256x12xbf16>, vector<256x12xbf16> -> vector<256x36xbf16>
    %c0_52 = arith.constant 0 : index
    %c0_53 = arith.constant 0 : index
    %91 = vector.load %arg4[%c0_52, %c0_53] : memref<36x4xbf16, #tpu.memory_space<vmem>>, vector<36x4xbf16>
    %cst_54 = arith.constant dense<0.000000e+00> : vector<256x4xf32>
    %92 = tpu.matmul %90, %91, %cst_54 {dimension_numbers = #tpu.dot_dimension_numbers<[1], [0], [0], [1], [0, 0, 1, 1], [], []>} : vector<256x36xbf16>, vector<36x4xbf16>, vector<256x4xf32> -> vector<256x4xf32>
    %93 = arith.truncf %92 : vector<256x4xf32> to vector<256x4xbf16>
    %c0_55 = arith.constant 0 : index
    %c0_56 = arith.constant 0 : index
    %c0_57 = arith.constant 0 : index
    %94 = vector.load %arg7[%c0_55, %c0_56, %c0_57] : memref<1x256x4xbf16, #tpu.memory_space<vmem>>, vector<1x256x4xbf16>
    %95 = vector.shape_cast %94 : vector<1x256x4xbf16> to vector<256x4xbf16>
    %96 = vector.shape_cast %93 : vector<256x4xbf16> to vector<1x256x4xbf16>
    tpu.vector_store %arg7[%c0_55, %c0_56, %c0_57], %96 {strides = array<i32>} : memref<1x256x4xbf16, #tpu.memory_space<vmem>>, vector<1x256x4xbf16>,
    %97 = arith.extf %93 : vector<256x4xbf16> to vector<256x4xf32>
    %cst_58 = arith.constant dense<0.000000e+00> : vector<4xf32>
    %98 = vector.multi_reduction <add>, %97, %cst_58 [0] : vector<256x4xf32> to vector<4xf32>
    %99 = vector.shape_cast %98 : vector<4xf32> to vector<1x4xf32>
    %100 = arith.mulf %97, %97 : vector<256x4xf32>
    %cst_59 = arith.constant dense<0.000000e+00> : vector<4xf32>
    %101 = vector.multi_reduction <add>, %100, %cst_59 [0] : vector<256x4xf32> to vector<4xf32>
    %102 = vector.shape_cast %101 : vector<4xf32> to vector<1x4xf32>
    %103 = tpu.concatenate %99, %102 in 0 : vector<1x4xf32>, vector<1x4xf32> -> vector<2x4xf32>
    %c0_60 = arith.constant 0 : index
    %c0_61 = arith.constant 0 : index
    %c0_62 = arith.constant 0 : index
    %104 = vector.load %arg8[%c0_60, %c0_61, %c0_62] : memref<1x2x4xf32, #tpu.memory_space<vmem>>, vector<1x2x4xf32>
    %105 = vector.shape_cast %104 : vector<1x2x4xf32> to vector<2x4xf32>
    %106 = vector.shape_cast %103 : vector<2x4xf32> to vector<1x2x4xf32>
    tpu.vector_store %arg8[%c0_60, %c0_61, %c0_62], %106 {strides = array<i32>} : memref<1x2x4xf32, #tpu.memory_space<vmem>>, vector<1x2x4xf32>,
    return
  }
  func.func @transform_0(%arg0: i32, %arg1: i32) -> (i32, i32, i32) {
    %c1_i32 = arith.constant 1 : i32
    %0 = arith.muli %arg0, %c1_i32 : i32
    %1 = arith.addi %0, %arg1 : i32
    %c0_i32 = arith.constant 0 : i32
    %c0_i32_0 = arith.constant 0 : i32
    %c0_i32_1 = arith.constant 0 : i32
    return %1, %c0_i32, %c0_i32_0 : i32, i32, i32
  }
  func.func @transform_1(%arg0: i32, %arg1: i32) -> (i32, i32, i32) {
    %c1_i32 = arith.constant 1 : i32
    %0 = arith.muli %arg0, %c1_i32 : i32
    %1 = arith.addi %0, %arg1 : i32
    %c0_i32 = arith.constant 0 : i32
    %c0_i32_0 = arith.constant 0 : i32
    %c0_i32_1 = arith.constant 0 : i32
    return %1, %c0_i32, %c0_i32_0 : i32, i32, i32
  }
  func.func @transform_2(%arg0: i32, %arg1: i32) -> (i32, i32) {
    %c0_i32 = arith.constant 0 : i32
    %c0_i32_0 = arith.constant 0 : i32
    %c0_i32_1 = arith.constant 0 : i32
    return %c0_i32, %c0_i32_0 : i32, i32
  }
  func.func @transform_3(%arg0: i32, %arg1: i32) -> (i32, i32) {
    %c0_i32 = arith.constant 0 : i32
    %c0_i32_0 = arith.constant 0 : i32
    %c0_i32_1 = arith.constant 0 : i32
    return %c0_i32, %c0_i32_0 : i32, i32
  }
  func.func @transform_4(%arg0: i32, %arg1: i32) -> (i32, i32) {
    %c0_i32 = arith.constant 0 : i32
    %c0_i32_0 = arith.constant 0 : i32
    %c0_i32_1 = arith.constant 0 : i32
    return %c0_i32, %c0_i32_0 : i32, i32
  }
  func.func @transform_5(%arg0: i32, %arg1: i32) -> (i32, i32, i32) {
    %c1_i32 = arith.constant 1 : i32
    %0 = arith.muli %arg0, %c1_i32 : i32
    %1 = arith.addi %0, %arg1 : i32
    %c0_i32 = arith.constant 0 : i32
    %c0_i32_0 = arith.constant 0 : i32
    %c0_i32_1 = arith.constant 0 : i32
    return %1, %c0_i32, %c0_i32_0 : i32, i32, i32
  }
  func.func @transform_6(%arg0: i32, %arg1: i32) -> (i32, i32, i32) {
    %c1_i32 = arith.constant 1 : i32
    %0 = arith.muli %arg0, %c1_i32 : i32
    %1 = arith.addi %0, %arg1 : i32
    %c0_i32 = arith.constant 0 : i32
    %c0_i32_0 = arith.constant 0 : i32
    %c0_i32_1 = arith.constant 0 : i32
    return %1, %c0_i32, %c0_i32_0 : i32, i32, i32
  }
}

module attributes {stable_mosaic.version = 11 : i64} {
  func.func @kernel(%arg0: i32, %arg1: memref<32x64xbf16, #tpu.memory_space<vmem>>, %arg2: memref<32x64xbf16, #tpu.memory_space<vmem>>, %arg3: memref<1x64xf32, #tpu.memory_space<vmem>>, %arg4: memref<1x64xf32, #tpu.memory_space<vmem>>, %arg5: memref<32x64xf32, #tpu.memory_space<vmem>>) attributes {dimension_semantics = [#tpu.dimension_semantics<parallel>], iteration_bounds = array<i64: 1>, scalar_prefetch = 0 : i64, scratch_operands = 0 : i64, tpu.core_type = #tpu.core_type<tc>, window_params = [{transform_indices = @transform_0, window_bounds = array<i64: 32, 64>}, {transform_indices = @transform_1, window_bounds = array<i64: 32, 64>}, {pipeline_mode = #tpu.pipeline_mode<synchronous>, transform_indices = @transform_2, window_bounds = array<i64: 1, 64>}, {pipeline_mode = #tpu.pipeline_mode<synchronous>, transform_indices = @transform_3, window_bounds = array<i64: 1, 64>}, {transform_indices = @transform_4, window_bounds = array<i64: 32, 64>}]} {
    %c0 = arith.constant 0 : index
    %c0_0 = arith.constant 0 : index
    %0 = vector.load %arg1[%c0, %c0_0] : memref<32x64xbf16, #tpu.memory_space<vmem>>, vector<32x64xbf16>
    %1 = arith.extf %0 : vector<32x64xbf16> to vector<32x64xf32>
    %c0_1 = arith.constant 0 : index
    %c0_2 = arith.constant 0 : index
    %2 = vector.load %arg3[%c0_1, %c0_2] : memref<1x64xf32, #tpu.memory_space<vmem>>, vector<1x64xf32>
    %3 = vector.broadcast %2 : vector<1x64xf32> to vector<32x64xf32>
    %4 = arith.mulf %1, %3 : vector<32x64xf32>
    %c0_3 = arith.constant 0 : index
    %c0_4 = arith.constant 0 : index
    %5 = vector.load %arg4[%c0_3, %c0_4] : memref<1x64xf32, #tpu.memory_space<vmem>>, vector<1x64xf32>
    %6 = vector.broadcast %5 : vector<1x64xf32> to vector<32x64xf32>
    %7 = arith.addf %4, %6 : vector<32x64xf32>
    %c0_5 = arith.constant 0 : index
    %c0_6 = arith.constant 0 : index
    %8 = vector.load %arg2[%c0_5, %c0_6] : memref<32x64xbf16, #tpu.memory_space<vmem>>, vector<32x64xbf16>
    %9 = arith.extf %8 : vector<32x64xbf16> to vector<32x64xf32>
    %10 = arith.addf %7, %9 : vector<32x64xf32>
    %cst = arith.constant 0.000000e+00 : f32
    %11 = vector.broadcast %cst : f32 to vector<32x64xf32>
    %12 = arith.maximumf %10, %11 : vector<32x64xf32>
    %c0_7 = arith.constant 0 : index
    %c0_8 = arith.constant 0 : index
    %13 = vector.load %arg5[%c0_7, %c0_8] : memref<32x64xf32, #tpu.memory_space<vmem>>, vector<32x64xf32>
    tpu.vector_store %arg5[%c0_7, %c0_8], %12 {strides = array<i32>} : memref<32x64xf32, #tpu.memory_space<vmem>>, vector<32x64xf32>,
    return
  }
  func.func @transform_0(%arg0: i32) -> (i32, i32) {
    %c0_i32 = arith.constant 0 : i32
    %c0_i32_0 = arith.constant 0 : i32
    return %arg0, %c0_i32 : i32, i32
  }
  func.func @transform_1(%arg0: i32) -> (i32, i32) {
    %c0_i32 = arith.constant 0 : i32
    %c0_i32_0 = arith.constant 0 : i32
    return %arg0, %c0_i32 : i32, i32
  }
  func.func @transform_2(%arg0: i32) -> (i32, i32) {
    %c0_i32 = arith.constant 0 : i32
    %c0_i32_0 = arith.constant 0 : i32
    %c0_i32_1 = arith.constant 0 : i32
    return %c0_i32, %c0_i32_0 : i32, i32
  }
  func.func @transform_3(%arg0: i32) -> (i32, i32) {
    %c0_i32 = arith.constant 0 : i32
    %c0_i32_0 = arith.constant 0 : i32
    %c0_i32_1 = arith.constant 0 : i32
    return %c0_i32, %c0_i32_0 : i32, i32
  }
  func.func @transform_4(%arg0: i32) -> (i32, i32) {
    %c0_i32 = arith.constant 0 : i32
    %c0_i32_0 = arith.constant 0 : i32
    return %arg0, %c0_i32 : i32, i32
  }
}

</mosaic_0001>

<llo_original>
// kernel: block_forward.5
$region0: #{block_forward.5}
  #allocation0 [shape = 'u32[]', space=smem, size = 0x4, offset = 0x4, fixed_abs, tag = 'smem constant byte address 0x4 - core index']
  #allocation1 [shape = 'u32[72,128]{1,0:T(1,128)}', space=vmem, size = 0x9000, scoped, tag = 'internal scratch']
  %s0 = inlined_call_operand.vmem [shape: bf16[32,64], index: 0, kind: input, shape index: {}]
  %s1 = inlined_call_operand.vmem [shape: bf16[32,64], index: 1, kind: input, shape index: {}]
  %s2 = inlined_call_operand.vmem [shape: f32[1,64], index: 2, kind: input, shape index: {}]
  %s3 = inlined_call_operand.vmem [shape: f32[1,64], index: 3, kind: input, shape index: {}]
  %s4 = inlined_call_operand.vmem [shape: f32[32,64], index: 4, kind: output, shape index: {}]
  %s5 = sld [smem:[#allocation0]]
  $region26: #{block_forward.5} parent=0
    _
  %s7 = ssub.s32 1, %s5
  %s8 = scalar_select 0, %s7, %s5
  // Predicated region
  $region2: #{block_forward.5} parent=0 // pred_check
    _
  $region3: #{block_forward.5} parent=0 // pred_check_branch
    %10 = sbr.rel (0) target = $region5
  $region4: #{block_forward.5} parent=0 // pred_region
    _
  $region5: #{block_forward.5} parent=0 // pred_fallthru
    _
  // Predicated region
  $region6: #{block_forward.5} parent=0 // pred_check
    _
  $region7: #{block_forward.5} parent=0 // pred_check_branch
    %12 = sbr.rel (0) target = $region9
  $region8: #{block_forward.5} parent=0 // pred_region
    _
  $region9: #{block_forward.5} parent=0 // pred_fallthru
    _
  // Predicated region
  $region10: #{block_forward.5} parent=0 // pred_check
    _
  $region11: #{block_forward.5} parent=0 // pred_check_branch
    %14 = sbr.rel (0) target = $region13
  $region12: #{block_forward.5} parent=0 // pred_region
    _
  $region13: #{block_forward.5} parent=0 // pred_fallthru
    _
  // Predicated region
  $region14: #{block_forward.5} parent=0 // pred_check
    _
  $region15: #{block_forward.5} parent=0 // pred_check_branch
    %16 = sbr.rel (0) target = $region17
  $region16: #{block_forward.5} parent=0 // pred_region
    _
  $region17: #{block_forward.5} parent=0 // pred_fallthru
    _
  %v17 = vld [vmem:[%s0] sm:$0xf]
  %v18 = vld [vmem:[%s0 + $0x4] sm:$0xf]
  %v19 = vld [vmem:[%s0 + $0x8] sm:$0xf]
  %v20 = vld [vmem:[%s0 + $0xc] sm:$0xf]
  %v21 = vunpack.c.l.bf16 %v17
  %v22 = vunpack.c.l.bf16 %v18
  %v23 = vunpack.c.l.bf16 %v19
  %v24 = vunpack.c.l.bf16 %v20
  %v25 = vld [vmem:[%s2] sm:$0x1]
  %v27 = vperm.slane %v25, 0
  %v29 = vmul.f32 %v21, %v27
  %v30 = vmul.f32 %v22, %v27
  %v31 = vmul.f32 %v23, %v27
  %v32 = vmul.f32 %v24, %v27
  %v33 = vld [vmem:[%s3] sm:$0x1]
  %v35 = vperm.slane %v33, 0
  %v37 = vadd.f32 %v29, %v35
  %v38 = vadd.f32 %v30, %v35
  %v39 = vadd.f32 %v31, %v35
  %v40 = vadd.f32 %v32, %v35
  %v41 = vld [vmem:[%s1] sm:$0xf]
  %v42 = vld [vmem:[%s1 + $0x4] sm:$0xf]
  %v43 = vld [vmem:[%s1 + $0x8] sm:$0xf]
  %v44 = vld [vmem:[%s1 + $0xc] sm:$0xf]
  %v45 = vunpack.c.l.bf16 %v41
  %v46 = vunpack.c.l.bf16 %v42
  %v47 = vunpack.c.l.bf16 %v43
  %v48 = vunpack.c.l.bf16 %v44
  %v49 = vadd.f32 %v37, %v45
  %v50 = vadd.f32 %v38, %v46
  %v51 = vadd.f32 %v39, %v47
  %v52 = vadd.f32 %v40, %v48
  %v53 = vmax.f32 %v49, 0.0
  %v54 = vmax.f32 %v50, 0.0
  %v55 = vmax.f32 %v51, 0.0
  %v56 = vmax.f32 %v52, 0.0
  %vm57 = vcmask 523264
  %58 = vst.msk [vmem:[%s4] sm:$0xff] %vm57, %v53
  %59 = vst.msk [vmem:[%s4 + $0x8] sm:$0xff] %vm57, %v54
  %60 = vst.msk [vmem:[%s4 + $0x10] sm:$0xff] %vm57, %v55
  %61 = vst.msk [vmem:[%s4 + $0x18] sm:$0xff] %vm57, %v56
  // Predicated region
  $region18: #{block_forward.5} parent=0 // pred_check
    _
  $region19: #{block_forward.5} parent=0 // pred_check_branch
    %63 = sbr.rel (0) target = $region21
  $region20: #{block_forward.5} parent=0 // pred_region
    _
  $region21: #{block_forward.5} parent=0 // pred_fallthru
    _
  // Predicated region
  $region22: #{block_forward.5} parent=0 // pred_check
    _
  $region23: #{block_forward.5} parent=0 // pred_check_branch
    %65 = sbr.rel (0) target = $region25
  $region24: #{block_forward.5} parent=0 // pred_region
    _
  $region25: #{block_forward.5} parent=0 // pred_fallthru
    _

// kernel: block_forward.3
$region0: #{block_forward.3}
  #allocation0 [shape = 'u32[]', space=smem, size = 0x4, offset = 0x4, fixed_abs, tag = 'smem constant byte address 0x4 - core index']
  #allocation1 [shape = 'u32[72,128]{1,0:T(1,128)}', space=vmem, size = 0x9000, scoped, tag = 'internal scratch']
  #allocation2 [shape = 'bf16[290,4]{1,0:T(8,128)(2,1)}', space=vmem, size = 0x12800, scoped, tag = 'scratch operand']
  %s0 = inlined_call_operand.vmem [shape: bf16[2,256,4], index: 0, kind: input, shape index: {}]
  %s1 = inlined_call_operand.vmem [shape: bf16[2,32,4], index: 1, kind: input, shape index: {}]
  %s2 = inlined_call_operand.vmem [shape: bf16[36,4], index: 2, kind: input, shape index: {}]
  %s3 = inlined_call_operand.vmem [shape: bf16[2,256,4], index: 3, kind: output, shape index: {0}]
  %s4 = inlined_call_operand.vmem [shape: f32[2,2,4], index: 4, kind: output, shape index: {1}]
  %5 = xla_tuple %s3, %s4
  %s6 = sld [smem:[#allocation0]]
  $region53: #{block_forward.3} parent=0
    _
  %s8 = ssub.s32 1, %s6
  %s9 = scalar_select 0, %s8, %s6
  loop: start=0, step=1, limit=4
  $region2: #{block_forward.3} parent=0 // loop_pre_header
    _
  $region3: #{block_forward.3} parent=0 // loop_header
    %s11 = sphi 0, %s15
    %p12 = scmp.ge.s32.totalorder %s11, 4
    %s18 = sphi 0, %s30
    %s19 = sphi 0, %s26
    %s20 = sphi 0, %s18
    %s21 = sphi 0, %s19
    %s22 = sphi 0, %s20
    %s23 = sphi 0, %s21
    %s35 = sphi 0, %s37
    %s38 = sphi 0, %s35
    %s39 = sphi 0, %s38
    %s55 = sphi 0, %s39
    %s63 = sphi 0, %s65
    %s66 = sphi 0, %s63
    %s67 = sphi 0, %s66
    %s83 = sphi 0, %s67
    %s87 = sphi 0, %s87
    %s89 = sphi 0, %s87
    %s90 = sphi 0, %s89
    %s104 = sphi 0, %s90
    %s112 = sphi 0, %s114
    %s115 = sphi 0, %s112
    %s116 = sphi 0, %s115
    %s132 = sphi 0, %s116
    %s140 = sphi 0, %s142
    %s143 = sphi 0, %s140
    %s144 = sphi 0, %s143
    %s160 = sphi 0, %s144
  $region4: #{block_forward.3} parent=0 // loop_header_branch
    %14 = sbr.rel (%p12) target = $region8
  $region5: #{block_forward.3} parent=0 // loop_body
    %s16 = ssub.s32 %s11, 1
    %s17 = ssub.s32 %s11, 2
    %s24 = sadd.s32 1, %s19
    %p25 = scmp.ge.s32.totalorder %s24, 1
    %s26 = scalar_select %p25, 0, %s24
    %s27 = sadd.s32 1, %s18
    %s28 = scalar_select %p25, %s27, %s18
    %p29 = scmp.ge.s32.totalorder %s28, 2
    %s30 = scalar_select %p29, 0, %s28
    %s31 = sadd.s32 %s18, %s19
    %s32 = sadd.s32 %s30, %s26
    %s33 = ssub.s32 %s31, %s32
    %p34 = scmp.eq.s32.totalorder %s33, 0
    %s36 = sadd.s32 %s35, 1
    %s37 = scalar_select %p34, %s35, %s36
    %p40 = pneg %p34
    %p41 = scmp.eq.s32.totalorder %s11, 1
    %p42 = por %p40, %p41
    %p43 = scmp.ne.s32.totalorder %s35, %s38
    %p44 = scmp.eq.s32.totalorder %s11, 0
    %p45 = por %p43, %p44
    %p46 = scmp.ne.s32.totalorder %s35, %s38
    %p47 = scmp.eq.s32.totalorder %s16, 1
    %p48 = por %p46, %p47
    %p49 = scmp.ne.s32.totalorder %s38, %s39
    %p50 = scmp.eq.s32.totalorder %s16, 0
    %p51 = por %p49, %p50
    %p52 = scmp.ne.s32.totalorder %s38, %s39
    %p53 = scmp.eq.s32.totalorder %s17, 1
    %p54 = por %p52, %p53
    %p56 = scmp.ne.s32.totalorder %s39, %s55
    %p57 = scmp.eq.s32.totalorder %s17, 0
    %p58 = por %p56, %p57
    %s59 = sadd.s32 %s18, %s19
    %s60 = sadd.s32 %s30, %s26
    %s61 = ssub.s32 %s59, %s60
    %p62 = scmp.eq.s32.totalorder %s61, 0
    %s64 = sadd.s32 %s63, 1
    %s65 = scalar_select %p62, %s63, %s64
    %p68 = pneg %p62
    %p69 = scmp.eq.s32.totalorder %s11, 1
    %p70 = por %p68, %p69
    %p71 = scmp.ne.s32.totalorder %s63, %s66
    %p72 = scmp.eq.s32.totalorder %s11, 0
    %p73 = por %p71, %p72
    %p74 = scmp.ne.s32.totalorder %s63, %s66
    %p75 = scmp.eq.s32.totalorder %s16, 1
    %p76 = por %p74, %p75
    %p77 = scmp.ne.s32.totalorder %s66, %s67
    %p78 = scmp.eq.s32.totalorder %s16, 0
    %p79 = por %p77, %p78
    %p80 = scmp.ne.s32.totalorder %s66, %s67
    %p81 = scmp.eq.s32.totalorder %s17, 1
    %p82 = por %p80, %p81
    %p84 = scmp.ne.s32.totalorder %s67, %s83
    %p85 = scmp.eq.s32.totalorder %s17, 0
    %p86 = por %p84, %p85
    %s88 = sadd.s32 %s87, 1
    %p91 = scmp.eq.s32.totalorder %s11, 1
    %p92 = scmp.ne.s32.totalorder %s87, %s89
    %p93 = scmp.eq.s32.totalorder %s11, 0
    %p94 = por %p92, %p93
    %p95 = scmp.ne.s32.totalorder %s87, %s89
    %p96 = scmp.eq.s32.totalorder %s16, 1
    %p97 = por %p95, %p96
    %p98 = scmp.ne.s32.totalorder %s89, %s90
    %p99 = scmp.eq.s32.totalorder %s16, 0
    %p100 = por %p98, %p99
    %p101 = scmp.ne.s32.totalorder %s89, %s90
    %p102 = scmp.eq.s32.totalorder %s17, 1
    %p103 = por %p101, %p102
    %p105 = scmp.ne.s32.totalorder %s90, %s104
    %p106 = scmp.eq.s32.totalorder %s17, 0
    %p107 = por %p105, %p106
    %s108 = sadd.s32 %s18, %s19
    %s109 = sadd.s32 %s30, %s26
    %s110 = ssub.s32 %s108, %s109
    %p111 = scmp.eq.s32.totalorder %s110, 0
    %s113 = sadd.s32 %s112, 1
    %s114 = scalar_select %p111, %s112, %s113
    %p117 = pneg %p111
    %p118 = scmp.eq.s32.totalorder %s11, 1
    %p119 = por %p117, %p118
    %p120 = scmp.ne.s32.totalorder %s112, %s115
    %p121 = scmp.eq.s32.totalorder %s11, 0
    %p122 = por %p120, %p121
    %p123 = scmp.ne.s32.totalorder %s112, %s115
    %p124 = scmp.eq.s32.totalorder %s16, 1
    %p125 = por %p123, %p124
    %p126 = scmp.ne.s32.totalorder %s115, %s116
    %p127 = scmp.eq.s32.totalorder %s16, 0
    %p128 = por %p126, %p127
    %p129 = scmp.ne.s32.totalorder %s115, %s116
    %p130 = scmp.eq.s32.totalorder %s17, 1
    %p131 = por %p129, %p130
    %p133 = scmp.ne.s32.totalorder %s116, %s132
    %p134 = scmp.eq.s32.totalorder %s17, 0
    %p135 = por %p133, %p134
    %s136 = sadd.s32 %s18, %s19
    %s137 = sadd.s32 %s30, %s26
    %s138 = ssub.s32 %s136, %s137
    %p139 = scmp.eq.s32.totalorder %s138, 0
    %s141 = sadd.s32 %s140, 1
    %s142 = scalar_select %p139, %s140, %s141
    %p145 = pneg %p139
    %p146 = scmp.eq.s32.totalorder %s11, 1
    %p147 = por %p145, %p146
    %p148 = scmp.ne.s32.totalorder %s140, %s143
    %p149 = scmp.eq.s32.totalorder %s11, 0
    %p150 = por %p148, %p149
    %p151 = scmp.ne.s32.totalorder %s140, %s143
    %p152 = scmp.eq.s32.totalorder %s16, 1
    %p153 = por %p151, %p152
    %p154 = scmp.ne.s32.totalorder %s143, %s144
    %p155 = scmp.eq.s32.totalorder %s16, 0
    %p156 = por %p154, %p155
    %p157 = scmp.ne.s32.totalorder %s143, %s144
    %p158 = scmp.eq.s32.totalorder %s17, 1
    %p159 = por %p157, %p158
    %p161 = scmp.ne.s32.totalorder %s144, %s160
    %p162 = scmp.eq.s32.totalorder %s17, 0
    %p163 = por %p161, %p162
    %p164 = scmp.le.s32.totalorder 1, %s11
    %p165 = scmp.lt.s32.totalorder %s11, 3
    %p166 = pnand %p164, %p165
    %p167 = pneg %p166
    // Predicated region
    $region9: #{block_forward.3} parent=5 // pred_check
      _
    $region10: #{block_forward.3} parent=5 // pred_check_branch
      %169 = sbr.rel (%p166) target = $region12
    $region11: #{block_forward.3} parent=5 // pred_region
      %s170 = ssub.s32 %s11, 1
      // Predicated region
      $region13: #{block_forward.3} parent=11 // pred_check
        %p171 = pneg %p100
      $region14: #{block_forward.3} parent=11 // pred_check_branch
        %173 = sbr.rel (%p171) target = $region16
      $region15: #{block_forward.3} parent=11 // pred_region
        _
      $region16: #{block_forward.3} parent=11 // pred_fallthru
        _
    $region12: #{block_forward.3} parent=5 // pred_fallthru
      _
    %p174 = scmp.lt.s32.totalorder %s11, 2
    // Predicated region
    $region17: #{block_forward.3} parent=5 // pred_check
      %p175 = pneg %p174
    $region18: #{block_forward.3} parent=5 // pred_check_branch
      %177 = sbr.rel (%p175) target = $region20
    $region19: #{block_forward.3} parent=5 // pred_region
      // Predicated region
      $region21: #{block_forward.3} parent=19 // pred_check
        %p178 = pneg %p45
      $region22: #{block_forward.3} parent=19 // pred_check_branch
        %180 = sbr.rel (%p178) target = $region24
      $region23: #{block_forward.3} parent=19 // pred_region
        %s181 = sadd.s32 %s18, %s19
        %p182 = scmp.lt.s32.totalorder %s181, 1
        %s183 = scalar_select %p182, %s181, 1
        %s184 = smul.addr %s183, 32
        %s185 = smul.addr %s184, 4
        %s186 = scalar_lea.vmem %s0, %s185
        %s187 = sadd.s32 %s18, %s19
      $region24: #{block_forward.3} parent=19 // pred_fallthru
        _
      // Predicated region
      $region25: #{block_forward.3} parent=19 // pred_check
        %p188 = pneg %p73
      $region26: #{block_forward.3} parent=19 // pred_check_branch
        %190 = sbr.rel (%p188) target = $region28
      $region27: #{block_forward.3} parent=19 // pred_region
        %s191 = sadd.s32 %s18, %s19
        %p192 = scmp.lt.s32.totalorder %s191, 1
        %s193 = scalar_select %p192, %s191, 1
        %s194 = smul.addr %s193, 4
        %s195 = smul.addr %s194, 4
        %s196 = scalar_lea.vmem %s1, %s195
        %s197 = sadd.s32 %s18, %s19
      $region28: #{block_forward.3} parent=19 // pred_fallthru
        _
    $region20: #{block_forward.3} parent=5 // pred_fallthru
      _
    %p198 = scmp.le.s32.totalorder 1, %s11
    %p199 = scmp.lt.s32.totalorder %s11, 3
    %p200 = pnand %p198, %p199
    %p201 = pneg %p200
    // Predicated region
    $region29: #{block_forward.3} parent=5 // pred_check
      _
    $region30: #{block_forward.3} parent=5 // pred_check_branch
      %203 = sbr.rel (%p200) target = $region32
    $region31: #{block_forward.3} parent=5 // pred_region
      %s204 = ssub.s32 %s11, 1
      %s205 = sadd.s32 %s20, %s21
      %p206 = scmp.lt.s32.totalorder %s205, 1
      %s207 = scalar_select %p206, %s205, 1
      %s208 = smul.addr %s207, 32
      %s209 = smul.addr %s208, 4
      %s210 = scalar_lea.vmem %s0, %s209
      %p211 = pneg %p51
      %p212 = pneg %p48
      %s213 = sadd.s32 %s20, %s21
      %p214 = scmp.lt.s32.totalorder %s213, 1
      %s215 = scalar_select %p214, %s213, 1
      %s216 = smul.addr %s215, 4
      %s217 = smul.addr %s216, 4
      %s218 = scalar_lea.vmem %s1, %s217
      %p219 = pneg %p79
      %p220 = pneg %p76
      %p221 = pneg %p100
      %p222 = pneg %p97
      %p223 = pneg %p128
      %p224 = pneg %p125
      %s225 = sadd.s32 %s20, %s21
      %p226 = scmp.lt.s32.totalorder %s225, 1
      %s227 = scalar_select %p226, %s225, 1
      %s228 = smul.addr %s227, 32
      %s229 = smul.addr %s228, 4
      %s230 = scalar_lea.vmem %s3, %s229
      %p231 = pneg %p156
      %p232 = pneg %p153
      %s233 = sadd.s32 %s20, %s21
      %p234 = scmp.lt.s32.totalorder %s233, 1
      %s235 = scalar_select %p234, %s233, 1
      %s236 = smul.addr %s235, 2
      %s237 = scalar_lea.vmem %s4, %s236
      %s238 = sadd.s32 %s20, %s21
      %p239 = scmp.lt.s32.totalorder %s238, 1
      %s240 = scalar_select %p239, %s238, 1
      %s241 = smul.addr %s240, 32
      %s242 = smul.addr %s241, 4
      %s243 = scalar_lea.vmem %s0, %s242
      %s244 = sadd.s32 %s20, %s21
      %s245 = sadd.s32 %s20, %s21
      %p246 = scmp.lt.s32.totalorder %s245, 1
      %s247 = scalar_select %p246, %s245, 1
      %s248 = smul.addr %s247, 4
      %s249 = smul.addr %s248, 4
      %s250 = scalar_lea.vmem %s1, %s249
      %s251 = sadd.s32 %s20, %s21
      %s252 = sadd.s32 %s20, %s21
      %p253 = scmp.lt.s32.totalorder %s252, 1
      %s254 = scalar_select %p253, %s252, 1
      %s255 = smul.addr %s254, 32
      %s256 = smul.addr %s255, 4
      %s257 = scalar_lea.vmem %s3, %s256
      %s258 = sadd.s32 %s20, %s21
      %s259 = sadd.s32 %s20, %s21
      %p260 = scmp.lt.s32.totalorder %s259, 1
      %s261 = scalar_select %p260, %s259, 1
      %s262 = smul.addr %s261, 2
      %s263 = scalar_lea.vmem %s4, %s262
      %s264 = sadd.s32 %s20, %s21
      %v268 = vld [vmem:[%s243] sm:$0xf]
      %v269 = vld [vmem:[%s243 + $0x4] sm:$0xf]
      %v270 = vld [vmem:[%s243 + $0x8] sm:$0xf]
      %v271 = vld [vmem:[%s243 + $0xc] sm:$0xf]
      %v272 = vld [vmem:[%s243 + $0x10] sm:$0xf]
      %v273 = vld [vmem:[%s243 + $0x14] sm:$0xf]
      %v274 = vld [vmem:[%s243 + $0x18] sm:$0xf]
      %v275 = vld [vmem:[%s243 + $0x1c] sm:$0xf]
      %v276 = vld [vmem:[%s243 + $0x20] sm:$0xf]
      %v277 = vld [vmem:[%s243 + $0x24] sm:$0xf]
      %v278 = vld [vmem:[%s243 + $0x28] sm:$0xf]
      %v279 = vld [vmem:[%s243 + $0x2c] sm:$0xf]
      %v280 = vld [vmem:[%s243 + $0x30] sm:$0xf]
      %v281 = vld [vmem:[%s243 + $0x34] sm:$0xf]
      %v282 = vld [vmem:[%s243 + $0x38] sm:$0xf]
      %v283 = vld [vmem:[%s243 + $0x3c] sm:$0xf]
      %v284 = vld [vmem:[%s243 + $0x40] sm:$0xf]
      %v285 = vld [vmem:[%s243 + $0x44] sm:$0xf]
      %v286 = vld [vmem:[%s243 + $0x48] sm:$0xf]
      %v287 = vld [vmem:[%s243 + $0x4c] sm:$0xf]
      %v288 = vld [vmem:[%s243 + $0x50] sm:$0xf]
      %v289 = vld [vmem:[%s243 + $0x54] sm:$0xf]
      %v290 = vld [vmem:[%s243 + $0x58] sm:$0xf]
      %v291 = vld [vmem:[%s243 + $0x5c] sm:$0xf]
      %v292 = vld [vmem:[%s243 + $0x60] sm:$0xf]
      %v293 = vld [vmem:[%s243 + $0x64] sm:$0xf]
      %v294 = vld [vmem:[%s243 + $0x68] sm:$0xf]
      %v295 = vld [vmem:[%s243 + $0x6c] sm:$0xf]
      %v296 = vld [vmem:[%s243 + $0x70] sm:$0xf]
      %v297 = vld [vmem:[%s243 + $0x74] sm:$0xf]
      %v298 = vld [vmem:[%s243 + $0x78] sm:$0xf]
      %v299 = vld [vmem:[%s243 + $0x7c] sm:$0xf]
      %v300 = vld [vmem:[%s250] sm:$0xf]
      %v301 = vld [vmem:[%s250 + $0x4] sm:$0xf]
      %v302 = vld [vmem:[%s250 + $0x8] sm:$0xf]
      %v303 = vld [vmem:[%s250 + $0xc] sm:$0xf]
      %vm304 = vcmask 24576
      %vm305 = vsmask.f32 256
      %vm306 = vmand %vm304, %vm305
      %v307 = vld [vmem:[#allocation2] sm:$0x1]
      %v308 = vsel %vm306, 0, %v307
      %309 = vst [vmem:[#allocation2] sm:$0x1] %v308
      %vm310 = vsmask.f32 4368
      %vm311 = vmor %vm305, %vm310
      %v313 = vshrl.u32 %v300, 16
      %v315 = vrot.slane %v313, 7
      %v316 = vshll.u32 %v300, 16
      %v318 = vor.u32 %v315, %v316
      %v319 = vrot.slane %v315, 4
      %v321 = vshrl.u32 %v301, 16
      %v323 = vrot.slane %v321, 7
      %v324 = vshll.u32 %v301, 16
      %v326 = vor.u32 %v323, %v324
      %v327 = vsel %vm311, %v319, %v326
      %v328 = vrot.slane %v323, 4
      %vm332 = vcmask 27648
      %vm333 = vsmask.f32 7938
      %vm334 = vmand %vm332, %vm333
      %v335 = vld [vmem:[#allocation2] sm:$0xf]
      %v336 = vsel %vm334, %v318, %v335
      %337 = vst [vmem:[#allocation2] sm:$0xf] %v336
      %vm338 = vcmask 27648
      %339 = vst.msk [vmem:[#allocation2 + $0x4] sm:$0xf] %vm338, %v327
      %v340 = vld [vmem:[#allocation2 + $0x8] sm:$0x1]
      %v341 = vsel %vm306, %v328, %v340
      %342 = vst [vmem:[#allocation2 + $0x8] sm:$0x1] %v341
      %v344 = vshrl.u32 %v268, 16
      %v346 = vrot.slane %v344, 7
      %v347 = vshll.u32 %v268, 16
      %v349 = vor.u32 %v346, %v347
      %v350 = vrot.slane %v346, 4
      %v352 = vshrl.u32 %v269, 16
      %v354 = vrot.slane %v352, 7
      %v355 = vshll.u32 %v269, 16
      %v357 = vor.u32 %v354, %v355
      %v358 = vsel %vm311, %v350, %v357
      %v359 = vrot.slane %v354, 4
      %v361 = vshrl.u32 %v270, 16
      %v363 = vrot.slane %v361, 7
      %v364 = vshll.u32 %v270, 16
      %v366 = vor.u32 %v363, %v364
      %v367 = vsel %vm311, %v359, %v366
      %v368 = vrot.slane %v363, 4
      %v370 = vshrl.u32 %v271, 16
      %v372 = vrot.slane %v370, 7
      %v373 = vshll.u32 %v271, 16
      %v375 = vor.u32 %v372, %v373
      %v376 = vsel %vm311, %v368, %v375
      %v377 = vrot.slane %v372, 4
      %v379 = vshrl.u32 %v272, 16
      %v381 = vrot.slane %v379, 7
      %v382 = vshll.u32 %v272, 16
      %v384 = vor.u32 %v381, %v382
      %v385 = vsel %vm311, %v377, %v384
      %v386 = vrot.slane %v381, 4
      %v388 = vshrl.u32 %v273, 16
      %v390 = vrot.slane %v388, 7
      %v391 = vshll.u32 %v273, 16
      %v393 = vor.u32 %v390, %v391
      %v394 = vsel %vm311, %v386, %v393
      %v395 = vrot.slane %v390, 4
      %v397 = vshrl.u32 %v274, 16
      %v399 = vrot.slane %v397, 7
      %v400 = vshll.u32 %v274, 16
      %v402 = vor.u32 %v399, %v400
      %v403 = vsel %vm311, %v395, %v402
      %v404 = vrot.slane %v399, 4
      %v406 = vshrl.u32 %v275, 16
      %v408 = vrot.slane %v406, 7
      %v409 = vshll.u32 %v275, 16
      %v411 = vor.u32 %v408, %v409
      %v412 = vsel %vm311, %v404, %v411
      %v413 = vrot.slane %v408, 4
      %v415 = vshrl.u32 %v276, 16
      %v417 = vrot.slane %v415, 7
      %v418 = vshll.u32 %v276, 16
      %v420 = vor.u32 %v417, %v418
      %v421 = vsel %vm311, %v413, %v420
      %v422 = vrot.slane %v417, 4
      %v424 = vshrl.u32 %v277, 16
      %v426 = vrot.slane %v424, 7
      %v427 = vshll.u32 %v277, 16
      %v429 = vor.u32 %v426, %v427
      %v430 = vsel %vm311, %v422, %v429
      %v431 = vrot.slane %v426, 4
      %v433 = vshrl.u32 %v278, 16
      %v435 = vrot.slane %v433, 7
      %v436 = vshll.u32 %v278, 16
      %v438 = vor.u32 %v435, %v436
      %v439 = vsel %vm311, %v431, %v438
      %v440 = vrot.slane %v435, 4
      %v442 = vshrl.u32 %v279, 16
      %v444 = vrot.slane %v442, 7
      %v445 = vshll.u32 %v279, 16
      %v447 = vor.u32 %v444, %v445
      %v448 = vsel %vm311, %v440, %v447
      %v449 = vrot.slane %v444, 4
      %v451 = vshrl.u32 %v280, 16
      %v453 = vrot.slane %v451, 7
      %v454 = vshll.u32 %v280, 16
      %v456 = vor.u32 %v453, %v454
      %v457 = vsel %vm311, %v449, %v456
      %v458 = vrot.slane %v453, 4
      %v460 = vshrl.u32 %v281, 16
      %v462 = vrot.slane %v460, 7
      %v463 = vshll.u32 %v281, 16
      %v465 = vor.u32 %v462, %v463
      %v466 = vsel %vm311, %v458, %v465
      %v467 = vrot.slane %v462, 4
      %v469 = vshrl.u32 %v282, 16
      %v471 = vrot.slane %v469, 7
      %v472 = vshll.u32 %v282, 16
      %v474 = vor.u32 %v471, %v472
      %v475 = vsel %vm311, %v467, %v474
      %v476 = vrot.slane %v471, 4
      %v478 = vshrl.u32 %v283, 16
      %v480 = vrot.slane %v478, 7
      %v481 = vshll.u32 %v283, 16
      %v483 = vor.u32 %v480, %v481
      %v484 = vsel %vm311, %v476, %v483
      %v485 = vrot.slane %v480, 4
      %v487 = vshrl.u32 %v284, 16
      %v489 = vrot.slane %v487, 7
      %v490 = vshll.u32 %v284, 16
      %v492 = vor.u32 %v489, %v490
      %v493 = vsel %vm311, %v485, %v492
      %v494 = vrot.slane %v489, 4
      %v496 = vshrl.u32 %v285, 16
      %v498 = vrot.slane %v496, 7
      %v499 = vshll.u32 %v285, 16
      %v501 = vor.u32 %v498, %v499
      %v502 = vsel %vm311, %v494, %v501
      %v503 = vrot.slane %v498, 4
      %v505 = vshrl.u32 %v286, 16
      %v507 = vrot.slane %v505, 7
      %v508 = vshll.u32 %v286, 16
      %v510 = vor.u32 %v507, %v508
      %v511 = vsel %vm311, %v503, %v510
      %v512 = vrot.slane %v507, 4
      %v514 = vshrl.u32 %v287, 16
      %v516 = vrot.slane %v514, 7
      %v517 = vshll.u32 %v287, 16
      %v519 = vor.u32 %v516, %v517
      %v520 = vsel %vm311, %v512, %v519
      %v521 = vrot.slane %v516, 4
      %v523 = vshrl.u32 %v288, 16
      %v525 = vrot.slane %v523, 7
      %v526 = vshll.u32 %v288, 16
      %v528 = vor.u32 %v525, %v526
      %v529 = vsel %vm311, %v521, %v528
      %v530 = vrot.slane %v525, 4
      %v532 = vshrl.u32 %v289, 16
      %v534 = vrot.slane %v532, 7
      %v535 = vshll.u32 %v289, 16
      %v537 = vor.u32 %v534, %v535
      %v538 = vsel %vm311, %v530, %v537
      %v539 = vrot.slane %v534, 4
      %v541 = vshrl.u32 %v290, 16
      %v543 = vrot.slane %v541, 7
      %v544 = vshll.u32 %v290, 16
      %v546 = vor.u32 %v543, %v544
      %v547 = vsel %vm311, %v539, %v546
      %v548 = vrot.slane %v543, 4
      %v550 = vshrl.u32 %v291, 16
      %v552 = vrot.slane %v550, 7
      %v553 = vshll.u32 %v291, 16
      %v555 = vor.u32 %v552, %v553
      %v556 = vsel %vm311, %v548, %v555
      %v557 = vrot.slane %v552, 4
      %v559 = vshrl.u32 %v292, 16
      %v561 = vrot.slane %v559, 7
      %v562 = vshll.u32 %v292, 16
      %v564 = vor.u32 %v561, %v562
      %v565 = vsel %vm311, %v557, %v564
      %v566 = vrot.slane %v561, 4
      %v568 = vshrl.u32 %v293, 16
      %v570 = vrot.slane %v568, 7
      %v571 = vshll.u32 %v293, 16
      %v573 = vor.u32 %v570, %v571
      %v574 = vsel %vm311, %v566, %v573
      %v575 = vrot.slane %v570, 4
      %v577 = vshrl.u32 %v294, 16
      %v579 = vrot.slane %v577, 7
      %v580 = vshll.u32 %v294, 16
      %v582 = vor.u32 %v579, %v580
      %v583 = vsel %vm311, %v575, %v582
      %v584 = vrot.slane %v579, 4
      %v586 = vshrl.u32 %v295, 16
      %v588 = vrot.slane %v586, 7
      %v589 = vshll.u32 %v295, 16
      %v591 = vor.u32 %v588, %v589
      %v592 = vsel %vm311, %v584, %v591
      %v593 = vrot.slane %v588, 4
      %v595 = vshrl.u32 %v296, 16
      %v597 = vrot.slane %v595, 7
      %v598 = vshll.u32 %v296, 16
      %v600 = vor.u32 %v597, %v598
      %v601 = vsel %vm311, %v593, %v600
      %v602 = vrot.slane %v597, 4
      %v604 = vshrl.u32 %v297, 16
      %v606 = vrot.slane %v604, 7
      %v607 = vshll.u32 %v297, 16
      %v609 = vor.u32 %v606, %v607
      %v610 = vsel %vm311, %v602, %v609
      %v611 = vrot.slane %v606, 4
      %v613 = vshrl.u32 %v298, 16
      %v615 = vrot.slane %v613, 7
      %v616 = vshll.u32 %v298, 16
      %v618 = vor.u32 %v615, %v616
      %v619 = vsel %vm311, %v611, %v618
      %v620 = vrot.slane %v615, 4
      %v622 = vshrl.u32 %v299, 16
      %v624 = vrot.slane %v622, 7
      %v625 = vshll.u32 %v299, 16
      %v627 = vor.u32 %v624, %v625
      %v628 = vsel %vm311, %v620, %v627
      %v629 = vrot.slane %v624, 4
      %v663 = vld [vmem:[#allocation2 + $0x8] sm:$0xf]
      %v664 = vsel %vm334, %v349, %v663
      %665 = vst [vmem:[#allocation2 + $0x8] sm:$0xf] %v664
      %666 = vst.msk [vmem:[#allocation2 + $0xc] sm:$0xf] %vm338, %v358
      %667 = vst.msk [vmem:[#allocation2 + $0x10] sm:$0xf] %vm338, %v367
      %668 = vst.msk [vmem:[#allocation2 + $0x14] sm:$0xf] %vm338, %v376
      %669 = vst.msk [vmem:[#allocation2 + $0x18] sm:$0xf] %vm338, %v385
      %670 = vst.msk [vmem:[#allocation2 + $0x1c] sm:$0xf] %vm338, %v394
      %671 = vst.msk [vmem:[#allocation2 + $0x20] sm:$0xf] %vm338, %v403
      %672 = vst.msk [vmem:[#allocation2 + $0x24] sm:$0xf] %vm338, %v412
      %673 = vst.msk [vmem:[#allocation2 + $0x28] sm:$0xf] %vm338, %v421
      %674 = vst.msk [vmem:[#allocation2 + $0x2c] sm:$0xf] %vm338, %v430
      %675 = vst.msk [vmem:[#allocation2 + $0x30] sm:$0xf] %vm338, %v439
      %676 = vst.msk [vmem:[#allocation2 + $0x34] sm:$0xf] %vm338, %v448
      %677 = vst.msk [vmem:[#allocation2 + $0x38] sm:$0xf] %vm338, %v457
      %678 = vst.msk [vmem:[#allocation2 + $0x3c] sm:$0xf] %vm338, %v466
      %679 = vst.msk [vmem:[#allocation2 + $0x40] sm:$0xf] %vm338, %v475
      %680 = vst.msk [vmem:[#allocation2 + $0x44] sm:$0xf] %vm338, %v484
      %681 = vst.msk [vmem:[#allocation2 + $0x48] sm:$0xf] %vm338, %v493
      %682 = vst.msk [vmem:[#allocation2 + $0x4c] sm:$0xf] %vm338, %v502
      %683 = vst.msk [vmem:[#allocation2 + $0x50] sm:$0xf] %vm338, %v511
      %684 = vst.msk [vmem:[#allocation2 + $0x54] sm:$0xf] %vm338, %v520
      %685 = vst.msk [vmem:[#allocation2 + $0x58] sm:$0xf] %vm338, %v529
      %686 = vst.msk [vmem:[#allocation2 + $0x5c] sm:$0xf] %vm338, %v538
      %687 = vst.msk [vmem:[#allocation2 + $0x60] sm:$0xf] %vm338, %v547
      %688 = vst.msk [vmem:[#allocation2 + $0x64] sm:$0xf] %vm338, %v556
      %689 = vst.msk [vmem:[#allocation2 + $0x68] sm:$0xf] %vm338, %v565
      %690 = vst.msk [vmem:[#allocation2 + $0x6c] sm:$0xf] %vm338, %v574
      %691 = vst.msk [vmem:[#allocation2 + $0x70] sm:$0xf] %vm338, %v583
      %692 = vst.msk [vmem:[#allocation2 + $0x74] sm:$0xf] %vm338, %v592
      %693 = vst.msk [vmem:[#allocation2 + $0x78] sm:$0xf] %vm338, %v601
      %694 = vst.msk [vmem:[#allocation2 + $0x7c] sm:$0xf] %vm338, %v610
      %695 = vst.msk [vmem:[#allocation2 + $0x80] sm:$0xf] %vm338, %v619
      %696 = vst.msk [vmem:[#allocation2 + $0x84] sm:$0xf] %vm338, %v628
      %v697 = vld [vmem:[#allocation2 + $0x88] sm:$0x1]
      %v698 = vsel %vm306, %v629, %v697
      %699 = vst [vmem:[#allocation2 + $0x88] sm:$0x1] %v698
      %v701 = vshrl.u32 %v302, 16
      %v703 = vrot.slane %v701, 7
      %v704 = vshll.u32 %v302, 16
      %v706 = vor.u32 %v703, %v704
      %v707 = vrot.slane %v703, 4
      %v709 = vshrl.u32 %v303, 16
      %v711 = vrot.slane %v709, 7
      %v712 = vshll.u32 %v303, 16
      %v714 = vor.u32 %v711, %v712
      %v715 = vsel %vm311, %v707, %v714
      %v716 = vrot.slane %v711, 4
      %v720 = vld [vmem:[#allocation2 + $0x88] sm:$0xf]
      %v721 = vsel %vm334, %v706, %v720
      %722 = vst [vmem:[#allocation2 + $0x88] sm:$0xf] %v721
      %723 = vst.msk [vmem:[#allocation2 + $0x8c] sm:$0xf] %vm338, %v715
      %v724 = vld [vmem:[#allocation2 + $0x90] sm:$0x1]
      %v725 = vsel %vm306, %v716, %v724
      %726 = vst [vmem:[#allocation2 + $0x90] sm:$0x1] %v725
      %vm727 = vmand %vm304, %vm333
      %v728 = vld [vmem:[#allocation2 + $0x90] sm:$0x1]
      %v729 = vsel %vm727, 0, %v728
      %730 = vst [vmem:[#allocation2 + $0x90] sm:$0x1] %v729
      %v731 = vlaneseq
      %v732 = vshrl.u32 %v731, 7
      %v733 = vadd.s32 %v732, 8
      %v734 = vadd.s32 %v732, 16
      %v735 = vadd.s32 %v732, 24
      %v736 = vadd.s32 %v732, 32
      %v737 = vadd.s32 %v732, 40
      %v738 = vadd.s32 %v732, 48
      %v739 = vadd.s32 %v732, 56
      %v740 = vadd.s32 %v732, 64
      %v741 = vadd.s32 %v732, 72
      %v742 = vadd.s32 %v732, 80
      %v743 = vadd.s32 %v732, 88
      %v744 = vadd.s32 %v732, 96
      %v745 = vadd.s32 %v732, 104
      %v746 = vadd.s32 %v732, 112
      %v747 = vadd.s32 %v732, 120
      %v748 = vadd.s32 %v732, 128
      %v749 = vadd.s32 %v732, 136
      %v750 = vadd.s32 %v732, 144
      %v751 = vadd.s32 %v732, 152
      %v752 = vadd.s32 %v732, 160
      %v753 = vadd.s32 %v732, 168
      %v754 = vadd.s32 %v732, 176
      %v755 = vadd.s32 %v732, 184
      %v756 = vadd.s32 %v732, 192
      %v757 = vadd.s32 %v732, 200
      %v758 = vadd.s32 %v732, 208
      %v759 = vadd.s32 %v732, 216
      %v760 = vadd.s32 %v732, 224
      %v761 = vadd.s32 %v732, 232
      %v762 = vadd.s32 %v732, 240
      %v763 = vadd.s32 %v732, 248
      %vm764 = vcmp.lt.s32.totalorder %v732, 0
      %v765 = vsub.s32 0, %v732
      %v766 = vsel %vm764, %v765, %v732
      %v767 = vshrl.u32 %v766, 4
      %v768 = vand.u32 %v766, 15
      %v769 = vsub.s32 0, %v768
      %v770 = vsel %vm764, %v769, %v768
      %vm771 = vcmp.lt.s32.totalorder %v733, 0
      %v772 = vsub.s32 0, %v733
      %v773 = vsel %vm771, %v772, %v733
      %v774 = vshrl.u32 %v773, 4
      %v775 = vand.u32 %v773, 15
      %v776 = vsub.s32 0, %v775
      %v777 = vsel %vm771, %v776, %v775
      %vm778 = vcmp.lt.s32.totalorder %v734, 0
      %v779 = vsub.s32 0, %v734
      %v780 = vsel %vm778, %v779, %v734
      %v781 = vshrl.u32 %v780, 4
      %v782 = vand.u32 %v780, 15
      %v783 = vsub.s32 0, %v782
      %v784 = vsel %vm778, %v783, %v782
      %vm785 = vcmp.lt.s32.totalorder %v735, 0
      %v786 = vsub.s32 0, %v735
      %v787 = vsel %vm785, %v786, %v735
      %v788 = vshrl.u32 %v787, 4
      %v789 = vand.u32 %v787, 15
      %v790 = vsub.s32 0, %v789
      %v791 = vsel %vm785, %v790, %v789
      %vm792 = vcmp.lt.s32.totalorder %v736, 0
      %v793 = vsub.s32 0, %v736
      %v794 = vsel %vm792, %v793, %v736
      %v795 = vshrl.u32 %v794, 4
      %v796 = vand.u32 %v794, 15
      %v797 = vsub.s32 0, %v796
      %v798 = vsel %vm792, %v797, %v796
      %vm799 = vcmp.lt.s32.totalorder %v737, 0
      %v800 = vsub.s32 0, %v737
      %v801 = vsel %vm799, %v800, %v737
      %v802 = vshrl.u32 %v801, 4
      %v803 = vand.u32 %v801, 15
      %v804 = vsub.s32 0, %v803
      %v805 = vsel %vm799, %v804, %v803
      %vm806 = vcmp.lt.s32.totalorder %v738, 0
      %v807 = vsub.s32 0, %v738
      %v808 = vsel %vm806, %v807, %v738
      %v809 = vshrl.u32 %v808, 4
      %v810 = vand.u32 %v808, 15
      %v811 = vsub.s32 0, %v810
      %v812 = vsel %vm806, %v811, %v810
      %vm813 = vcmp.lt.s32.totalorder %v739, 0
      %v814 = vsub.s32 0, %v739
      %v815 = vsel %vm813, %v814, %v739
      %v816 = vshrl.u32 %v815, 4
      %v817 = vand.u32 %v815, 15
      %v818 = vsub.s32 0, %v817
      %v819 = vsel %vm813, %v818, %v817
      %vm820 = vcmp.lt.s32.totalorder %v740, 0
      %v821 = vsub.s32 0, %v740
      %v822 = vsel %vm820, %v821, %v740
      %v823 = vshrl.u32 %v822, 4
      %v824 = vand.u32 %v822, 15
      %v825 = vsub.s32 0, %v824
      %v826 = vsel %vm820, %v825, %v824
      %vm827 = vcmp.lt.s32.totalorder %v741, 0
      %v828 = vsub.s32 0, %v741
      %v829 = vsel %vm827, %v828, %v741
      %v830 = vshrl.u32 %v829, 4
      %v831 = vand.u32 %v829, 15
      %v832 = vsub.s32 0, %v831
      %v833 = vsel %vm827, %v832, %v831
      %vm834 = vcmp.lt.s32.totalorder %v742, 0
      %v835 = vsub.s32 0, %v742
      %v836 = vsel %vm834, %v835, %v742
      %v837 = vshrl.u32 %v836, 4
      %v838 = vand.u32 %v836, 15
      %v839 = vsub.s32 0, %v838
      %v840 = vsel %vm834, %v839, %v838
      %vm841 = vcmp.lt.s32.totalorder %v743, 0
      %v842 = vsub.s32 0, %v743
      %v843 = vsel %vm841, %v842, %v743
      %v844 = vshrl.u32 %v843, 4
      %v845 = vand.u32 %v843, 15
      %v846 = vsub.s32 0, %v845
      %v847 = vsel %vm841, %v846, %v845
      %vm848 = vcmp.lt.s32.totalorder %v744, 0
      %v849 = vsub.s32 0, %v744
      %v850 = vsel %vm848, %v849, %v744
      %v851 = vshrl.u32 %v850, 4
      %v852 = vand.u32 %v850, 15
      %v853 = vsub.s32 0, %v852
      %v854 = vsel %vm848, %v853, %v852
      %vm855 = vcmp.lt.s32.totalorder %v745, 0
      %v856 = vsub.s32 0, %v745
      %v857 = vsel %vm855, %v856, %v745
      %v858 = vshrl.u32 %v857, 4
      %v859 = vand.u32 %v857, 15
      %v860 = vsub.s32 0, %v859
      %v861 = vsel %vm855, %v860, %v859
      %vm862 = vcmp.lt.s32.totalorder %v746, 0
      %v863 = vsub.s32 0, %v746
      %v864 = vsel %vm862, %v863, %v746
      %v865 = vshrl.u32 %v864, 4
      %v866 = vand.u32 %v864, 15
      %v867 = vsub.s32 0, %v866
      %v868 = vsel %vm862, %v867, %v866
      %vm869 = vcmp.lt.s32.totalorder %v747, 0
      %v870 = vsub.s32 0, %v747
      %v871 = vsel %vm869, %v870, %v747
      %v872 = vshrl.u32 %v871, 4
      %v873 = vand.u32 %v871, 15
      %v874 = vsub.s32 0, %v873
      %v875 = vsel %vm869, %v874, %v873
      %vm876 = vcmp.lt.s32.totalorder %v748, 0
      %v877 = vsub.s32 0, %v748
      %v878 = vsel %vm876, %v877, %v748
      %v879 = vshrl.u32 %v878, 4
      %v880 = vand.u32 %v878, 15
      %v881 = vsub.s32 0, %v880
      %v882 = vsel %vm876, %v881, %v880
      %vm883 = vcmp.lt.s32.totalorder %v749, 0
      %v884 = vsub.s32 0, %v749
      %v885 = vsel %vm883, %v884, %v749
      %v886 = vshrl.u32 %v885, 4
      %v887 = vand.u32 %v885, 15
      %v888 = vsub.s32 0, %v887
      %v889 = vsel %vm883, %v888, %v887
      %vm890 = vcmp.lt.s32.totalorder %v750, 0
      %v891 = vsub.s32 0, %v750
      %v892 = vsel %vm890, %v891, %v750
      %v893 = vshrl.u32 %v892, 4
      %v894 = vand.u32 %v892, 15
      %v895 = vsub.s32 0, %v894
      %v896 = vsel %vm890, %v895, %v894
      %vm897 = vcmp.lt.s32.totalorder %v751, 0
      %v898 = vsub.s32 0, %v751
      %v899 = vsel %vm897, %v898, %v751
      %v900 = vshrl.u32 %v899, 4
      %v901 = vand.u32 %v899, 15
      %v902 = vsub.s32 0, %v901
      %v903 = vsel %vm897, %v902, %v901
      %vm904 = vcmp.lt.s32.totalorder %v752, 0
      %v905 = vsub.s32 0, %v752
      %v906 = vsel %vm904, %v905, %v752
      %v907 = vshrl.u32 %v906, 4
      %v908 = vand.u32 %v906, 15
      %v909 = vsub.s32 0, %v908
      %v910 = vsel %vm904, %v909, %v908
      %vm911 = vcmp.lt.s32.totalorder %v753, 0
      %v912 = vsub.s32 0, %v753
      %v913 = vsel %vm911, %v912, %v753
      %v914 = vshrl.u32 %v913, 4
      %v915 = vand.u32 %v913, 15
      %v916 = vsub.s32 0, %v915
      %v917 = vsel %vm911, %v916, %v915
      %vm918 = vcmp.lt.s32.totalorder %v754, 0
      %v919 = vsub.s32 0, %v754
      %v920 = vsel %vm918, %v919, %v754
      %v921 = vshrl.u32 %v920, 4
      %v922 = vand.u32 %v920, 15
      %v923 = vsub.s32 0, %v922
      %v924 = vsel %vm918, %v923, %v922
      %vm925 = vcmp.lt.s32.totalorder %v755, 0
      %v926 = vsub.s32 0, %v755
      %v927 = vsel %vm925, %v926, %v755
      %v928 = vshrl.u32 %v927, 4
      %v929 = vand.u32 %v927, 15
      %v930 = vsub.s32 0, %v929
      %v931 = vsel %vm925, %v930, %v929
      %vm932 = vcmp.lt.s32.totalorder %v756, 0
      %v933 = vsub.s32 0, %v756
      %v934 = vsel %vm932, %v933, %v756
      %v935 = vshrl.u32 %v934, 4
      %v936 = vand.u32 %v934, 15
      %v937 = vsub.s32 0, %v936
      %v938 = vsel %vm932, %v937, %v936
      %vm939 = vcmp.lt.s32.totalorder %v757, 0
      %v940 = vsub.s32 0, %v757
      %v941 = vsel %vm939, %v940, %v757
      %v942 = vshrl.u32 %v941, 4
      %v943 = vand.u32 %v941, 15
      %v944 = vsub.s32 0, %v943
      %v945 = vsel %vm939, %v944, %v943
      %vm946 = vcmp.lt.s32.totalorder %v758, 0
      %v947 = vsub.s32 0, %v758
      %v948 = vsel %vm946, %v947, %v758
      %v949 = vshrl.u32 %v948, 4
      %v950 = vand.u32 %v948, 15
      %v951 = vsub.s32 0, %v950
      %v952 = vsel %vm946, %v951, %v950
      %vm953 = vcmp.lt.s32.totalorder %v759, 0
      %v954 = vsub.s32 0, %v759
      %v955 = vsel %vm953, %v954, %v759
      %v956 = vshrl.u32 %v955, 4
      %v957 = vand.u32 %v955, 15
      %v958 = vsub.s32 0, %v957
      %v959 = vsel %vm953, %v958, %v957
      %vm960 = vcmp.lt.s32.totalorder %v760, 0
      %v961 = vsub.s32 0, %v760
      %v962 = vsel %vm960, %v961, %v760
      %v963 = vshrl.u32 %v962, 4
      %v964 = vand.u32 %v962, 15
      %v965 = vsub.s32 0, %v964
      %v966 = vsel %vm960, %v965, %v964
      %vm967 = vcmp.lt.s32.totalorder %v761, 0
      %v968 = vsub.s32 0, %v761
      %v969 = vsel %vm967, %v968, %v761
      %v970 = vshrl.u32 %v969, 4
      %v971 = vand.u32 %v969, 15
      %v972 = vsub.s32 0, %v971
      %v973 = vsel %vm967, %v972, %v971
      %vm974 = vcmp.lt.s32.totalorder %v762, 0
      %v975 = vsub.s32 0, %v762
      %v976 = vsel %vm974, %v975, %v762
      %v977 = vshrl.u32 %v976, 4
      %v978 = vand.u32 %v976, 15
      %v979 = vsub.s32 0, %v978
      %v980 = vsel %vm974, %v979, %v978
      %vm981 = vcmp.lt.s32.totalorder %v763, 0
      %v982 = vsub.s32 0, %v763
      %v983 = vsel %vm981, %v982, %v763
      %v984 = vshrl.u32 %v983, 4
      %v985 = vand.u32 %v983, 15
      %v986 = vsub.s32 0, %v985
      %v987 = vsel %vm981, %v986, %v985
      %vm988 = vcmp.ne.s32.totalorder %v770, 0
      %vm989 = vcmp.ne.s32.totalorder %v777, 0
      %vm990 = vcmp.ne.s32.totalorder %v784, 0
      %vm991 = vcmp.ne.s32.totalorder %v791, 0
      %vm992 = vcmp.ne.s32.totalorder %v798, 0
      %vm993 = vcmp.ne.s32.totalorder %v805, 0
      %vm994 = vcmp.ne.s32.totalorder %v812, 0
      %vm995 = vcmp.ne.s32.totalorder %v819, 0
      %vm996 = vcmp.ne.s32.totalorder %v826, 0
      %vm997 = vcmp.ne.s32.totalorder %v833, 0
      %vm998 = vcmp.ne.s32.totalorder %v840, 0
      %vm999 = vcmp.ne.s32.totalorder %v847, 0
      %vm1000 = vcmp.ne.s32.totalorder %v854, 0
      %vm1001 = vcmp.ne.s32.totalorder %v861, 0
      %vm1002 = vcmp.ne.s32.totalorder %v868, 0
      %vm1003 = vcmp.ne.s32.totalorder %v875, 0
      %vm1004 = vcmp.ne.s32.totalorder %v882, 0
      %vm1005 = vcmp.ne.s32.totalorder %v889, 0
      %vm1006 = vcmp.ne.s32.totalorder %v896, 0
      %vm1007 = vcmp.ne.s32.totalorder %v903, 0
      %vm1008 = vcmp.ne.s32.totalorder %v910, 0
      %vm1009 = vcmp.ne.s32.totalorder %v917, 0
      %vm1010 = vcmp.ne.s32.totalorder %v924, 0
      %vm1011 = vcmp.ne.s32.totalorder %v931, 0
      %vm1012 = vcmp.ne.s32.totalorder %v938, 0
      %vm1013 = vcmp.ne.s32.totalorder %v945, 0
      %vm1014 = vcmp.ne.s32.totalorder %v952, 0
      %vm1015 = vcmp.ne.s32.totalorder %v959, 0
      %vm1016 = vcmp.ne.s32.totalorder %v966, 0
      %vm1017 = vcmp.ne.s32.totalorder %v973, 0
      %vm1018 = vcmp.ne.s32.totalorder %v980, 0
      %vm1019 = vcmp.ne.s32.totalorder %v987, 0
      %vm1020 = vcmp.lt.s32.totalorder %v770, 0
      %vm1021 = vcmp.lt.s32.totalorder %v777, 0
      %vm1022 = vcmp.lt.s32.totalorder %v784, 0
      %vm1023 = vcmp.lt.s32.totalorder %v791, 0
      %vm1024 = vcmp.lt.s32.totalorder %v798, 0
      %vm1025 = vcmp.lt.s32.totalorder %v805, 0
      %vm1026 = vcmp.lt.s32.totalorder %v812, 0
      %vm1027 = vcmp.lt.s32.totalorder %v819, 0
      %vm1028 = vcmp.lt.s32.totalorder %v826, 0
      %vm1029 = vcmp.lt.s32.totalorder %v833, 0
      %vm1030 = vcmp.lt.s32.totalorder %v840, 0
      %vm1031 = vcmp.lt.s32.totalorder %v847, 0
      %vm1032 = vcmp.lt.s32.totalorder %v854, 0
      %vm1033 = vcmp.lt.s32.totalorder %v861, 0
      %vm1034 = vcmp.lt.s32.totalorder %v868, 0
      %vm1035 = vcmp.lt.s32.totalorder %v875, 0
      %vm1036 = vcmp.lt.s32.totalorder %v882, 0
      %vm1037 = vcmp.lt.s32.totalorder %v889, 0
      %vm1038 = vcmp.lt.s32.totalorder %v896, 0
      %vm1039 = vcmp.lt.s32.totalorder %v903, 0
      %vm1040 = vcmp.lt.s32.totalorder %v910, 0
      %vm1041 = vcmp.lt.s32.totalorder %v917, 0
      %vm1042 = vcmp.lt.s32.totalorder %v924, 0
      %vm1043 = vcmp.lt.s32.totalorder %v931, 0
      %vm1044 = vcmp.lt.s32.totalorder %v938, 0
      %vm1045 = vcmp.lt.s32.totalorder %v945, 0
      %vm1046 = vcmp.lt.s32.totalorder %v952, 0
      %vm1047 = vcmp.lt.s32.totalorder %v959, 0
      %vm1048 = vcmp.lt.s32.totalorder %v966, 0
      %vm1049 = vcmp.lt.s32.totalorder %v973, 0
      %vm1050 = vcmp.lt.s32.totalorder %v980, 0
      %vm1051 = vcmp.lt.s32.totalorder %v987, 0
      %vm1052 = vmand %vm1020, %vm988
      %vm1053 = vmand %vm1021, %vm989
      %vm1054 = vmand %vm1022, %vm990
      %vm1055 = vmand %vm1023, %vm991
      %vm1056 = vmand %vm1024, %vm992
      %vm1057 = vmand %vm1025, %vm993
      %vm1058 = vmand %vm1026, %vm994
      %vm1059 = vmand %vm1027, %vm995
      %vm1060 = vmand %vm1028, %vm996
      %vm1061 = vmand %vm1029, %vm997
      %vm1062 = vmand %vm1030, %vm998
      %vm1063 = vmand %vm1031, %vm999
      %vm1064 = vmand %vm1032, %vm1000
      %vm1065 = vmand %vm1033, %vm1001
      %vm1066 = vmand %vm1034, %vm1002
      %vm1067 = vmand %vm1035, %vm1003
      %vm1068 = vmand %vm1036, %vm1004
      %vm1069 = vmand %vm1037, %vm1005
      %vm1070 = vmand %vm1038, %vm1006
      %vm1071 = vmand %vm1039, %vm1007
      %vm1072 = vmand %vm1040, %vm1008
      %vm1073 = vmand %vm1041, %vm1009
      %vm1074 = vmand %vm1042, %vm1010
      %vm1075 = vmand %vm1043, %vm1011
      %vm1076 = vmand %vm1044, %vm1012
      %vm1077 = vmand %vm1045, %vm1013
      %vm1078 = vmand %vm1046, %vm1014
      %vm1079 = vmand %vm1047, %vm1015
      %vm1080 = vmand %vm1048, %vm1016
      %vm1081 = vmand %vm1049, %vm1017
      %vm1082 = vmand %vm1050, %vm1018
      %vm1083 = vmand %vm1051, %vm1019
      %v1084 = vadd.s32 %v770, 16
      %v1085 = vadd.s32 %v777, 16
      %v1086 = vadd.s32 %v784, 16
      %v1087 = vadd.s32 %v791, 16
      %v1088 = vadd.s32 %v798, 16
      %v1089 = vadd.s32 %v805, 16
      %v1090 = vadd.s32 %v812, 16
      %v1091 = vadd.s32 %v819, 16
      %v1092 = vadd.s32 %v826, 16
      %v1093 = vadd.s32 %v833, 16
      %v1094 = vadd.s32 %v840, 16
      %v1095 = vadd.s32 %v847, 16
      %v1096 = vadd.s32 %v854, 16
      %v1097 = vadd.s32 %v861, 16
      %v1098 = vadd.s32 %v868, 16
      %v1099 = vadd.s32 %v875, 16
      %v1100 = vadd.s32 %v882, 16
      %v1101 = vadd.s32 %v889, 16
      %v1102 = vadd.s32 %v896, 16
      %v1103 = vadd.s32 %v903, 16
      %v1104 = vadd.s32 %v910, 16
      %v1105 = vadd.s32 %v917, 16
      %v1106 = vadd.s32 %v924, 16
      %v1107 = vadd.s32 %v931, 16
      %v1108 = vadd.s32 %v938, 16
      %v1109 = vadd.s32 %v945, 16
      %v1110 = vadd.s32 %v952, 16
      %v1111 = vadd.s32 %v959, 16
      %v1112 = vadd.s32 %v966, 16
      %v1113 = vadd.s32 %v973, 16
      %v1114 = vadd.s32 %v980, 16
      %v1115 = vadd.s32 %v987, 16
      %v1116 = vsel %vm1052, %v1084, %v770
      %v1117 = vsel %vm1053, %v1085, %v777
      %v1118 = vsel %vm1054, %v1086, %v784
      %v1119 = vsel %vm1055, %v1087, %v791
      %v1120 = vsel %vm1056, %v1088, %v798
      %v1121 = vsel %vm1057, %v1089, %v805
      %v1122 = vsel %vm1058, %v1090, %v812
      %v1123 = vsel %vm1059, %v1091, %v819
      %v1124 = vsel %vm1060, %v1092, %v826
      %v1125 = vsel %vm1061, %v1093, %v833
      %v1126 = vsel %vm1062, %v1094, %v840
      %v1127 = vsel %vm1063, %v1095, %v847
      %v1128 = vsel %vm1064, %v1096, %v854
      %v1129 = vsel %vm1065, %v1097, %v861
      %v1130 = vsel %vm1066, %v1098, %v868
      %v1131 = vsel %vm1067, %v1099, %v875
      %v1132 = vsel %vm1068, %v1100, %v882
      %v1133 = vsel %vm1069, %v1101, %v889
      %v1134 = vsel %vm1070, %v1102, %v896
      %v1135 = vsel %vm1071, %v1103, %v903
      %v1136 = vsel %vm1072, %v1104, %v910
      %v1137 = vsel %vm1073, %v1105, %v917
      %v1138 = vsel %vm1074, %v1106, %v924
      %v1139 = vsel %vm1075, %v1107, %v931
      %v1140 = vsel %vm1076, %v1108, %v938
      %v1141 = vsel %vm1077, %v1109, %v945
      %v1142 = vsel %vm1078, %v1110, %v952
      %v1143 = vsel %vm1079, %v1111, %v959
      %v1144 = vsel %vm1080, %v1112, %v966
      %v1145 = vsel %vm1081, %v1113, %v973
      %v1146 = vsel %vm1082, %v1114, %v980
      %v1147 = vsel %vm1083, %v1115, %v987
      %vm1148 = vcmp.ne.s32.totalorder %v1116, 0
      %vm1149 = vcmp.ne.s32.totalorder %v1117, 0
      %vm1150 = vcmp.ne.s32.totalorder %v1118, 0
      %vm1151 = vcmp.ne.s32.totalorder %v1119, 0
      %vm1152 = vcmp.ne.s32.totalorder %v1120, 0
      %vm1153 = vcmp.ne.s32.totalorder %v1121, 0
      %vm1154 = vcmp.ne.s32.totalorder %v1122, 0
      %vm1155 = vcmp.ne.s32.totalorder %v1123, 0
      %vm1156 = vcmp.ne.s32.totalorder %v1124, 0
      %vm1157 = vcmp.ne.s32.totalorder %v1125, 0
      %vm1158 = vcmp.ne.s32.totalorder %v1126, 0
      %vm1159 = vcmp.ne.s32.totalorder %v1127, 0
      %vm1160 = vcmp.ne.s32.totalorder %v1128, 0
      %vm1161 = vcmp.ne.s32.totalorder %v1129, 0
      %vm1162 = vcmp.ne.s32.totalorder %v1130, 0
      %vm1163 = vcmp.ne.s32.totalorder %v1131, 0
      %vm1164 = vcmp.ne.s32.totalorder %v1132, 0
      %vm1165 = vcmp.ne.s32.totalorder %v1133, 0
      %vm1166 = vcmp.ne.s32.totalorder %v1134, 0
      %vm1167 = vcmp.ne.s32.totalorder %v1135, 0
      %vm1168 = vcmp.ne.s32.totalorder %v1136, 0
      %vm1169 = vcmp.ne.s32.totalorder %v1137, 0
      %vm1170 = vcmp.ne.s32.totalorder %v1138, 0
      %vm1171 = vcmp.ne.s32.totalorder %v1139, 0
      %vm1172 = vcmp.ne.s32.totalorder %v1140, 0
      %vm1173 = vcmp.ne.s32.totalorder %v1141, 0
      %vm1174 = vcmp.ne.s32.totalorder %v1142, 0
      %vm1175 = vcmp.ne.s32.totalorder %v1143, 0
      %vm1176 = vcmp.ne.s32.totalorder %v1144, 0
      %vm1177 = vcmp.ne.s32.totalorder %v1145, 0
      %vm1178 = vcmp.ne.s32.totalorder %v1146, 0
      %vm1179 = vcmp.ne.s32.totalorder %v1147, 0
      %vm1180 = vcmp.ne.s32.totalorder %v1116, 15
      %vm1181 = vcmp.ne.s32.totalorder %v1117, 15
      %vm1182 = vcmp.ne.s32.totalorder %v1118, 15
      %vm1183 = vcmp.ne.s32.totalorder %v1119, 15
      %vm1184 = vcmp.ne.s32.totalorder %v1120, 15
      %vm1185 = vcmp.ne.s32.totalorder %v1121, 15
      %vm1186 = vcmp.ne.s32.totalorder %v1122, 15
      %vm1187 = vcmp.ne.s32.totalorder %v1123, 15
      %vm1188 = vcmp.ne.s32.totalorder %v1124, 15
      %vm1189 = vcmp.ne.s32.totalorder %v1125, 15
      %vm1190 = vcmp.ne.s32.totalorder %v1126, 15
      %vm1191 = vcmp.ne.s32.totalorder %v1127, 15
      %vm1192 = vcmp.ne.s32.totalorder %v1128, 15
      %vm1193 = vcmp.ne.s32.totalorder %v1129, 15
      %vm1194 = vcmp.ne.s32.totalorder %v1130, 15
      %vm1195 = vcmp.ne.s32.totalorder %v1131, 15
      %vm1196 = vcmp.ne.s32.totalorder %v1132, 15
      %vm1197 = vcmp.ne.s32.totalorder %v1133, 15
      %vm1198 = vcmp.ne.s32.totalorder %v1134, 15
      %vm1199 = vcmp.ne.s32.totalorder %v1135, 15
      %vm1200 = vcmp.ne.s32.totalorder %v1136, 15
      %vm1201 = vcmp.ne.s32.totalorder %v1137, 15
      %vm1202 = vcmp.ne.s32.totalorder %v1138, 15
      %vm1203 = vcmp.ne.s32.totalorder %v1139, 15
      %vm1204 = vcmp.ne.s32.totalorder %v1140, 15
      %vm1205 = vcmp.ne.s32.totalorder %v1141, 15
      %vm1206 = vcmp.ne.s32.totalorder %v1142, 15
      %vm1207 = vcmp.ne.s32.totalorder %v1143, 15
      %vm1208 = vcmp.ne.s32.totalorder %v1144, 15
      %vm1209 = vcmp.ne.s32.totalorder %v1145, 15
      %vm1210 = vcmp.ne.s32.totalorder %v1146, 15
      %vm1211 = vcmp.ne.s32.totalorder %v1147, 15
      %v1212 = vld [vmem:[#allocation2] sm:$0xf]
      %v1213 = vld [vmem:[#allocation2 + $0x4] sm:$0xf]
      %v1214 = vld [vmem:[#allocation2 + $0x8] sm:$0xf]
      %v1215 = vld [vmem:[#allocation2 + $0xc] sm:$0xf]
      %v1216 = vld [vmem:[#allocation2 + $0x10] sm:$0xf]
      %v1217 = vld [vmem:[#allocation2 + $0x14] sm:$0xf]
      %v1218 = vld [vmem:[#allocation2 + $0x18] sm:$0xf]
      %v1219 = vld [vmem:[#allocation2 + $0x1c] sm:$0xf]
      %v1220 = vld [vmem:[#allocation2 + $0x20] sm:$0xf]
      %v1221 = vld [vmem:[#allocation2 + $0x24] sm:$0xf]
      %v1222 = vld [vmem:[#allocation2 + $0x28] sm:$0xf]
      %v1223 = vld [vmem:[#allocation2 + $0x2c] sm:$0xf]
      %v1224 = vld [vmem:[#allocation2 + $0x30] sm:$0xf]
      %v1225 = vld [vmem:[#allocation2 + $0x34] sm:$0xf]
      %v1226 = vld [vmem:[#allocation2 + $0x38] sm:$0xf]
      %v1227 = vld [vmem:[#allocation2 + $0x3c] sm:$0xf]
      %v1228 = vld [vmem:[#allocation2 + $0x40] sm:$0xf]
      %v1229 = vld [vmem:[#allocation2 + $0x44] sm:$0xf]
      %v1230 = vld [vmem:[#allocation2 + $0x48] sm:$0xf]
      %v1231 = vld [vmem:[#allocation2 + $0x4c] sm:$0xf]
      %v1232 = vld [vmem:[#allocation2 + $0x50] sm:$0xf]
      %v1233 = vld [vmem:[#allocation2 + $0x54] sm:$0xf]
      %v1234 = vld [vmem:[#allocation2 + $0x58] sm:$0xf]
      %v1235 = vld [vmem:[#allocation2 + $0x5c] sm:$0xf]
      %v1236 = vld [vmem:[#allocation2 + $0x60] sm:$0xf]
      %v1237 = vld [vmem:[#allocation2 + $0x64] sm:$0xf]
      %v1238 = vld [vmem:[#allocation2 + $0x68] sm:$0xf]
      %v1239 = vld [vmem:[#allocation2 + $0x6c] sm:$0xf]
      %v1240 = vld [vmem:[#allocation2 + $0x70] sm:$0xf]
      %v1241 = vld [vmem:[#allocation2 + $0x74] sm:$0xf]
      %v1242 = vld [vmem:[#allocation2 + $0x78] sm:$0xf]
      %v1243 = vld [vmem:[#allocation2 + $0x7c] sm:$0xf]
      %v1244 = vld [vmem:[#allocation2 + $0x80] sm:$0xf]
      %v1245 = vld [vmem:[#allocation2 + $0x84] sm:$0xf]
      %v1246 = vld [vmem:[#allocation2 + $0x88] sm:$0xf]
      %v1247 = vld [vmem:[#allocation2 + $0x8c] sm:$0xf]
      %v1280 = vunpack.c.l.b16 %v1212
      %v1281 = vunpack.c.l.b16 %v1213
      %v1282 = vunpack.c.l.b16 %v1214
      %v1283 = vunpack.c.l.b16 %v1215
      %v1284 = vunpack.c.l.b16 %v1216
      %v1285 = vunpack.c.l.b16 %v1217
      %v1286 = vunpack.c.l.b16 %v1218
      %v1287 = vunpack.c.l.b16 %v1219
      %v1288 = vunpack.c.l.b16 %v1220
      %v1289 = vunpack.c.l.b16 %v1221
      %v1290 = vunpack.c.l.b16 %v1222
      %v1291 = vunpack.c.l.b16 %v1223
      %v1292 = vunpack.c.l.b16 %v1224
      %v1293 = vunpack.c.l.b16 %v1225
      %v1294 = vunpack.c.l.b16 %v1226
      %v1295 = vunpack.c.l.b16 %v1227
      %v1296 = vunpack.c.l.b16 %v1228
      %v1297 = vunpack.c.l.b16 %v1229
      %v1298 = vunpack.c.l.b16 %v1230
      %v1299 = vunpack.c.l.b16 %v1231
      %v1300 = vunpack.c.l.b16 %v1232
      %v1301 = vunpack.c.l.b16 %v1233
      %v1302 = vunpack.c.l.b16 %v1234
      %v1303 = vunpack.c.l.b16 %v1235
      %v1304 = vunpack.c.l.b16 %v1236
      %v1305 = vunpack.c.l.b16 %v1237
      %v1306 = vunpack.c.l.b16 %v1238
      %v1307 = vunpack.c.l.b16 %v1239
      %v1308 = vunpack.c.l.b16 %v1240
      %v1309 = vunpack.c.l.b16 %v1241
      %v1310 = vunpack.c.l.b16 %v1242
      %v1311 = vunpack.c.l.b16 %v1243
      %v1312 = vpack.c.b16 %v1281, %v1280
      %v1313 = vpack.c.b16 %v1283, %v1282
      %v1314 = vpack.c.b16 %v1285, %v1284
      %v1315 = vpack.c.b16 %v1287, %v1286
      %v1316 = vpack.c.b16 %v1289, %v1288
      %v1317 = vpack.c.b16 %v1291, %v1290
      %v1318 = vpack.c.b16 %v1293, %v1292
      %v1319 = vpack.c.b16 %v1295, %v1294
      %v1320 = vpack.c.b16 %v1297, %v1296
      %v1321 = vpack.c.b16 %v1299, %v1298
      %v1322 = vpack.c.b16 %v1301, %v1300
      %v1323 = vpack.c.b16 %v1303, %v1302
      %v1324 = vpack.c.b16 %v1305, %v1304
      %v1325 = vpack.c.b16 %v1307, %v1306
      %v1326 = vpack.c.b16 %v1309, %v1308
      %v1327 = vpack.c.b16 %v1311, %v1310
      %v1330 = vunpack.c.l.b16 %v1244
      %v1331 = vunpack.c.l.b16 %v1245
      %v1332 = vpack.c.b16 %v1331, %v1330
      %1333 = vrot.lane.b32.xlu0 %v1313, 4
      %v1334 = vpop.permute.xlu0 %1333
      %1335 = vrot.lane.b32.xlu0 %v1314, 4
      %v1336 = vpop.permute.xlu0 %1335
      %1337 = vrot.lane.b32.xlu0 %v1315, 4
      %v1338 = vpop.permute.xlu0 %1337
      %1339 = vrot.lane.b32.xlu0 %v1316, 4
      %v1340 = vpop.permute.xlu0 %1339
      %1341 = vrot.lane.b32.xlu0 %v1317, 4
      %v1342 = vpop.permute.xlu0 %1341
      %1343 = vrot.lane.b32.xlu0 %v1318, 4
      %v1344 = vpop.permute.xlu0 %1343
      %1345 = vrot.lane.b32.xlu0 %v1319, 4
      %v1346 = vpop.permute.xlu0 %1345
      %1347 = vrot.lane.b32.xlu0 %v1320, 4
      %v1348 = vpop.permute.xlu0 %1347
      %1349 = vrot.lane.b32.xlu0 %v1321, 4
      %v1350 = vpop.permute.xlu0 %1349
      %1351 = vrot.lane.b32.xlu0 %v1322, 4
      %v1352 = vpop.permute.xlu0 %1351
      %1353 = vrot.lane.b32.xlu0 %v1323, 4
      %v1354 = vpop.permute.xlu0 %1353
      %1355 = vrot.lane.b32.xlu0 %v1324, 4
      %v1356 = vpop.permute.xlu0 %1355
      %1357 = vrot.lane.b32.xlu0 %v1325, 4
      %v1358 = vpop.permute.xlu0 %1357
      %1359 = vrot.lane.b32.xlu0 %v1326, 4
      %v1360 = vpop.permute.xlu0 %1359
      %1361 = vrot.lane.b32.xlu0 %v1327, 4
      %v1362 = vpop.permute.xlu0 %1361
      %1363 = vrot.lane.b32.xlu0 %v1332, 4
      %v1364 = vpop.permute.xlu0 %1363
      %v1367 = vunpack.c.l.b16 %v1246
      %v1368 = vunpack.c.l.b16 %v1247
      %v1369 = vpack.c.b16 %v1368, %v1367
      %1370 = vrot.lane.b32.xlu0 %v1314, 8
      %v1371 = vpop.permute.xlu0 %1370
      %1372 = vrot.lane.b32.xlu0 %v1315, 8
      %v1373 = vpop.permute.xlu0 %1372
      %1374 = vrot.lane.b32.xlu0 %v1316, 8
      %v1375 = vpop.permute.xlu0 %1374
      %1376 = vrot.lane.b32.xlu0 %v1317, 8
      %v1377 = vpop.permute.xlu0 %1376
      %1378 = vrot.lane.b32.xlu0 %v1318, 8
      %v1379 = vpop.permute.xlu0 %1378
      %1380 = vrot.lane.b32.xlu0 %v1319, 8
      %v1381 = vpop.permute.xlu0 %1380
      %1382 = vrot.lane.b32.xlu0 %v1320, 8
      %v1383 = vpop.permute.xlu0 %1382
      %1384 = vrot.lane.b32.xlu0 %v1321, 8
      %v1385 = vpop.permute.xlu0 %1384
      %1386 = vrot.lane.b32.xlu0 %v1322, 8
      %v1387 = vpop.permute.xlu0 %1386
      %1388 = vrot.lane.b32.xlu0 %v1323, 8
      %v1389 = vpop.permute.xlu0 %1388
      %1390 = vrot.lane.b32.xlu0 %v1324, 8
      %v1391 = vpop.permute.xlu0 %1390
      %1392 = vrot.lane.b32.xlu0 %v1325, 8
      %v1393 = vpop.permute.xlu0 %1392
      %1394 = vrot.lane.b32.xlu0 %v1326, 8
      %v1395 = vpop.permute.xlu0 %1394
      %1396 = vrot.lane.b32.xlu0 %v1327, 8
      %v1397 = vpop.permute.xlu0 %1396
      %1398 = vrot.lane.b32.xlu0 %v1332, 8
      %v1399 = vpop.permute.xlu0 %1398
      %1400 = vrot.lane.b32.xlu0 %v1369, 8
      %v1401 = vpop.permute.xlu0 %1400
      %vm1402 = vcmask 31744
      %v1405 = vsel %vm1402, %v1312, %v1334
      %v1408 = vsel %vm1402, %v1313, %v1336
      %v1411 = vsel %vm1402, %v1314, %v1338
      %v1414 = vsel %vm1402, %v1315, %v1340
      %v1417 = vsel %vm1402, %v1316, %v1342
      %v1420 = vsel %vm1402, %v1317, %v1344
      %v1423 = vsel %vm1402, %v1318, %v1346
      %v1426 = vsel %vm1402, %v1319, %v1348
      %v1429 = vsel %vm1402, %v1320, %v1350
      %v1432 = vsel %vm1402, %v1321, %v1352
      %v1435 = vsel %vm1402, %v1322, %v1354
      %v1438 = vsel %vm1402, %v1323, %v1356
      %v1441 = vsel %vm1402, %v1324, %v1358
      %v1444 = vsel %vm1402, %v1325, %v1360
      %v1447 = vsel %vm1402, %v1326, %v1362
      %v1450 = vsel %vm1402, %v1327, %v1364
      %vm1451 = vcmask 64512
      %v1453 = vsel %vm1451, %v1405, %v1371
      %v1456 = vsel %vm1451, %v1408, %v1373
      %v1459 = vsel %vm1451, %v1411, %v1375
      %v1462 = vsel %vm1451, %v1414, %v1377
      %v1465 = vsel %vm1451, %v1417, %v1379
      %v1468 = vsel %vm1451, %v1420, %v1381
      %v1471 = vsel %vm1451, %v1423, %v1383
      %v1474 = vsel %vm1451, %v1426, %v1385
      %v1477 = vsel %vm1451, %v1429, %v1387
      %v1480 = vsel %vm1451, %v1432, %v1389
      %v1483 = vsel %vm1451, %v1435, %v1391
      %v1486 = vsel %vm1451, %v1438, %v1393
      %v1489 = vsel %vm1451, %v1441, %v1395
      %v1492 = vsel %vm1451, %v1444, %v1397
      %v1495 = vsel %vm1451, %v1447, %v1399
      %v1498 = vsel %vm1451, %v1450, %v1401
      %v1500 = vsel %vm1148, 1, 0
      %v1501 = vsel %vm1149, 1, 0
      %v1502 = vsel %vm1150, 1, 0
      %v1503 = vsel %vm1151, 1, 0
      %v1504 = vsel %vm1152, 1, 0
      %v1505 = vsel %vm1153, 1, 0
      %v1506 = vsel %vm1154, 1, 0
      %v1507 = vsel %vm1155, 1, 0
      %v1508 = vsel %vm1156, 1, 0
      %v1509 = vsel %vm1157, 1, 0
      %v1510 = vsel %vm1158, 1, 0
      %v1511 = vsel %vm1159, 1, 0
      %v1512 = vsel %vm1160, 1, 0
      %v1513 = vsel %vm1161, 1, 0
      %v1514 = vsel %vm1162, 1, 0
      %v1515 = vsel %vm1163, 1, 0
      %v1516 = vsel %vm1164, 1, 0
      %v1517 = vsel %vm1165, 1, 0
      %v1518 = vsel %vm1166, 1, 0
      %v1519 = vsel %vm1167, 1, 0
      %v1520 = vsel %vm1168, 1, 0
      %v1521 = vsel %vm1169, 1, 0
      %v1522 = vsel %vm1170, 1, 0
      %v1523 = vsel %vm1171, 1, 0
      %v1524 = vsel %vm1172, 1, 0
      %v1525 = vsel %vm1173, 1, 0
      %v1526 = vsel %vm1174, 1, 0
      %v1527 = vsel %vm1175, 1, 0
      %v1528 = vsel %vm1176, 1, 0
      %v1529 = vsel %vm1177, 1, 0
      %v1530 = vsel %vm1178, 1, 0
      %v1531 = vsel %vm1179, 1, 0
      %vm1532 = vcmp.eq.s32.totalorder %v1500, 1
      %vm1533 = vcmp.eq.s32.totalorder %v1501, 1
      %vm1534 = vcmp.eq.s32.totalorder %v1502, 1
      %vm1535 = vcmp.eq.s32.totalorder %v1503, 1
      %vm1536 = vcmp.eq.s32.totalorder %v1504, 1
      %vm1537 = vcmp.eq.s32.totalorder %v1505, 1
      %vm1538 = vcmp.eq.s32.totalorder %v1506, 1
      %vm1539 = vcmp.eq.s32.totalorder %v1507, 1
      %vm1540 = vcmp.eq.s32.totalorder %v1508, 1
      %vm1541 = vcmp.eq.s32.totalorder %v1509, 1
      %vm1542 = vcmp.eq.s32.totalorder %v1510, 1
      %vm1543 = vcmp.eq.s32.totalorder %v1511, 1
      %vm1544 = vcmp.eq.s32.totalorder %v1512, 1
      %vm1545 = vcmp.eq.s32.totalorder %v1513, 1
      %vm1546 = vcmp.eq.s32.totalorder %v1514, 1
      %vm1547 = vcmp.eq.s32.totalorder %v1515, 1
      %vm1548 = vcmp.eq.s32.totalorder %v1516, 1
      %vm1549 = vcmp.eq.s32.totalorder %v1517, 1
      %vm1550 = vcmp.eq.s32.totalorder %v1518, 1
      %vm1551 = vcmp.eq.s32.totalorder %v1519, 1
      %vm1552 = vcmp.eq.s32.totalorder %v1520, 1
      %vm1553 = vcmp.eq.s32.totalorder %v1521, 1
      %vm1554 = vcmp.eq.s32.totalorder %v1522, 1
      %vm1555 = vcmp.eq.s32.totalorder %v1523, 1
      %vm1556 = vcmp.eq.s32.totalorder %v1524, 1
      %vm1557 = vcmp.eq.s32.totalorder %v1525, 1
      %vm1558 = vcmp.eq.s32.totalorder %v1526, 1
      %vm1559 = vcmp.eq.s32.totalorder %v1527, 1
      %vm1560 = vcmp.eq.s32.totalorder %v1528, 1
      %vm1561 = vcmp.eq.s32.totalorder %v1529, 1
      %vm1562 = vcmp.eq.s32.totalorder %v1530, 1
      %vm1563 = vcmp.eq.s32.totalorder %v1531, 1
      %vm1564 = vmpackc.low %vm1532, %vm1532
      %vm1565 = vmpackc.low %vm1533, %vm1533
      %vm1566 = vmpackc.low %vm1534, %vm1534
      %vm1567 = vmpackc.low %vm1535, %vm1535
      %vm1568 = vmpackc.low %vm1536, %vm1536
      %vm1569 = vmpackc.low %vm1537, %vm1537
      %vm1570 = vmpackc.low %vm1538, %vm1538
      %vm1571 = vmpackc.low %vm1539, %vm1539
      %vm1572 = vmpackc.low %vm1540, %vm1540
      %vm1573 = vmpackc.low %vm1541, %vm1541
      %vm1574 = vmpackc.low %vm1542, %vm1542
      %vm1575 = vmpackc.low %vm1543, %vm1543
      %vm1576 = vmpackc.low %vm1544, %vm1544
      %vm1577 = vmpackc.low %vm1545, %vm1545
      %vm1578 = vmpackc.low %vm1546, %vm1546
      %vm1579 = vmpackc.low %vm1547, %vm1547
      %vm1580 = vmpackc.low %vm1548, %vm1548
      %vm1581 = vmpackc.low %vm1549, %vm1549
      %vm1582 = vmpackc.low %vm1550, %vm1550
      %vm1583 = vmpackc.low %vm1551, %vm1551
      %vm1584 = vmpackc.low %vm1552, %vm1552
      %vm1585 = vmpackc.low %vm1553, %vm1553
      %vm1586 = vmpackc.low %vm1554, %vm1554
      %vm1587 = vmpackc.low %vm1555, %vm1555
      %vm1588 = vmpackc.low %vm1556, %vm1556
      %vm1589 = vmpackc.low %vm1557, %vm1557
      %vm1590 = vmpackc.low %vm1558, %vm1558
      %vm1591 = vmpackc.low %vm1559, %vm1559
      %vm1592 = vmpackc.low %vm1560, %vm1560
      %vm1593 = vmpackc.low %vm1561, %vm1561
      %vm1594 = vmpackc.low %vm1562, %vm1562
      %vm1595 = vmpackc.low %vm1563, %vm1563
      %v1596 = vsel %vm1564, 65537, 0
      %v1597 = vsel %vm1565, 65537, 0
      %v1598 = vsel %vm1566, 65537, 0
      %v1599 = vsel %vm1567, 65537, 0
      %v1600 = vsel %vm1568, 65537, 0
      %v1601 = vsel %vm1569, 65537, 0
      %v1602 = vsel %vm1570, 65537, 0
      %v1603 = vsel %vm1571, 65537, 0
      %v1604 = vsel %vm1572, 65537, 0
      %v1605 = vsel %vm1573, 65537, 0
      %v1606 = vsel %vm1574, 65537, 0
      %v1607 = vsel %vm1575, 65537, 0
      %v1608 = vsel %vm1576, 65537, 0
      %v1609 = vsel %vm1577, 65537, 0
      %v1610 = vsel %vm1578, 65537, 0
      %v1611 = vsel %vm1579, 65537, 0
      %v1612 = vsel %vm1580, 65537, 0
      %v1613 = vsel %vm1581, 65537, 0
      %v1614 = vsel %vm1582, 65537, 0
      %v1615 = vsel %vm1583, 65537, 0
      %v1616 = vsel %vm1584, 65537, 0
      %v1617 = vsel %vm1585, 65537, 0
      %v1618 = vsel %vm1586, 65537, 0
      %v1619 = vsel %vm1587, 65537, 0
      %v1620 = vsel %vm1588, 65537, 0
      %v1621 = vsel %vm1589, 65537, 0
      %v1622 = vsel %vm1590, 65537, 0
      %v1623 = vsel %vm1591, 65537, 0
      %v1624 = vsel %vm1592, 65537, 0
      %v1625 = vsel %vm1593, 65537, 0
      %v1626 = vsel %vm1594, 65537, 0
      %v1627 = vsel %vm1595, 65537, 0
      %v1628 = vunpack.c.l.b16 %v1596
      %v1629 = vunpack.c.l.b16 %v1597
      %v1630 = vunpack.c.l.b16 %v1598
      %v1631 = vunpack.c.l.b16 %v1599
      %v1632 = vunpack.c.l.b16 %v1600
      %v1633 = vunpack.c.l.b16 %v1601
      %v1634 = vunpack.c.l.b16 %v1602
      %v1635 = vunpack.c.l.b16 %v1603
      %v1636 = vunpack.c.l.b16 %v1604
      %v1637 = vunpack.c.l.b16 %v1605
      %v1638 = vunpack.c.l.b16 %v1606
      %v1639 = vunpack.c.l.b16 %v1607
      %v1640 = vunpack.c.l.b16 %v1608
      %v1641 = vunpack.c.l.b16 %v1609
      %v1642 = vunpack.c.l.b16 %v1610
      %v1643 = vunpack.c.l.b16 %v1611
      %v1644 = vunpack.c.l.b16 %v1612
      %v1645 = vunpack.c.l.b16 %v1613
      %v1646 = vunpack.c.l.b16 %v1614
      %v1647 = vunpack.c.l.b16 %v1615
      %v1648 = vunpack.c.l.b16 %v1616
      %v1649 = vunpack.c.l.b16 %v1617
      %v1650 = vunpack.c.l.b16 %v1618
      %v1651 = vunpack.c.l.b16 %v1619
      %v1652 = vunpack.c.l.b16 %v1620
      %v1653 = vunpack.c.l.b16 %v1621
      %v1654 = vunpack.c.l.b16 %v1622
      %v1655 = vunpack.c.l.b16 %v1623
      %v1656 = vunpack.c.l.b16 %v1624
      %v1657 = vunpack.c.l.b16 %v1625
      %v1658 = vunpack.c.l.b16 %v1626
      %v1659 = vunpack.c.l.b16 %v1627
      %v1660 = vpack.c.b16 %v1629, %v1628
      %v1661 = vpack.c.b16 %v1631, %v1630
      %v1662 = vpack.c.b16 %v1633, %v1632
      %v1663 = vpack.c.b16 %v1635, %v1634
      %v1664 = vpack.c.b16 %v1637, %v1636
      %v1665 = vpack.c.b16 %v1639, %v1638
      %v1666 = vpack.c.b16 %v1641, %v1640
      %v1667 = vpack.c.b16 %v1643, %v1642
      %v1668 = vpack.c.b16 %v1645, %v1644
      %v1669 = vpack.c.b16 %v1647, %v1646
      %v1670 = vpack.c.b16 %v1649, %v1648
      %v1671 = vpack.c.b16 %v1651, %v1650
      %v1672 = vpack.c.b16 %v1653, %v1652
      %v1673 = vpack.c.b16 %v1655, %v1654
      %v1674 = vpack.c.b16 %v1657, %v1656
      %v1675 = vpack.c.b16 %v1659, %v1658
      %v1676 = vunpack.c.l.b16 %v1660
      %v1677 = vunpack.c.h.b16 %v1660
      %v1678 = vunpack.c.l.b16 0
      %v1679 = vunpack.c.h.b16 0
      %vm1680 = vcmp.ne.s32.totalorder %v1676, %v1678
      %vm1681 = vcmp.ne.s32.totalorder %v1677, %v1679
      %vm1682 = vmpackc.low %vm1681, %vm1680
      %v1683 = vunpack.c.l.b16 %v1661
      %v1684 = vunpack.c.h.b16 %v1661
      %v1685 = vunpack.c.l.b16 0
      %v1686 = vunpack.c.h.b16 0
      %vm1687 = vcmp.ne.s32.totalorder %v1683, %v1685
      %vm1688 = vcmp.ne.s32.totalorder %v1684, %v1686
      %vm1689 = vmpackc.low %vm1688, %vm1687
      %v1690 = vunpack.c.l.b16 %v1662
      %v1691 = vunpack.c.h.b16 %v1662
      %v1692 = vunpack.c.l.b16 0
      %v1693 = vunpack.c.h.b16 0
      %vm1694 = vcmp.ne.s32.totalorder %v1690, %v1692
      %vm1695 = vcmp.ne.s32.totalorder %v1691, %v1693
      %vm1696 = vmpackc.low %vm1695, %vm1694
      %v1697 = vunpack.c.l.b16 %v1663
      %v1698 = vunpack.c.h.b16 %v1663
      %v1699 = vunpack.c.l.b16 0
      %v1700 = vunpack.c.h.b16 0
      %vm1701 = vcmp.ne.s32.totalorder %v1697, %v1699
      %vm1702 = vcmp.ne.s32.totalorder %v1698, %v1700
      %vm1703 = vmpackc.low %vm1702, %vm1701
      %v1704 = vunpack.c.l.b16 %v1664
      %v1705 = vunpack.c.h.b16 %v1664
      %v1706 = vunpack.c.l.b16 0
      %v1707 = vunpack.c.h.b16 0
      %vm1708 = vcmp.ne.s32.totalorder %v1704, %v1706
      %vm1709 = vcmp.ne.s32.totalorder %v1705, %v1707
      %vm1710 = vmpackc.low %vm1709, %vm1708
      %v1711 = vunpack.c.l.b16 %v1665
      %v1712 = vunpack.c.h.b16 %v1665
      %v1713 = vunpack.c.l.b16 0
      %v1714 = vunpack.c.h.b16 0
      %vm1715 = vcmp.ne.s32.totalorder %v1711, %v1713
      %vm1716 = vcmp.ne.s32.totalorder %v1712, %v1714
      %vm1717 = vmpackc.low %vm1716, %vm1715
      %v1718 = vunpack.c.l.b16 %v1666
      %v1719 = vunpack.c.h.b16 %v1666
      %v1720 = vunpack.c.l.b16 0
      %v1721 = vunpack.c.h.b16 0
      %vm1722 = vcmp.ne.s32.totalorder %v1718, %v1720
      %vm1723 = vcmp.ne.s32.totalorder %v1719, %v1721
      %vm1724 = vmpackc.low %vm1723, %vm1722
      %v1725 = vunpack.c.l.b16 %v1667
      %v1726 = vunpack.c.h.b16 %v1667
      %v1727 = vunpack.c.l.b16 0
      %v1728 = vunpack.c.h.b16 0
      %vm1729 = vcmp.ne.s32.totalorder %v1725, %v1727
      %vm1730 = vcmp.ne.s32.totalorder %v1726, %v1728
      %vm1731 = vmpackc.low %vm1730, %vm1729
      %v1732 = vunpack.c.l.b16 %v1668
      %v1733 = vunpack.c.h.b16 %v1668
      %v1734 = vunpack.c.l.b16 0
      %v1735 = vunpack.c.h.b16 0
      %vm1736 = vcmp.ne.s32.totalorder %v1732, %v1734
      %vm1737 = vcmp.ne.s32.totalorder %v1733, %v1735
      %vm1738 = vmpackc.low %vm1737, %vm1736
      %v1739 = vunpack.c.l.b16 %v1669
      %v1740 = vunpack.c.h.b16 %v1669
      %v1741 = vunpack.c.l.b16 0
      %v1742 = vunpack.c.h.b16 0
      %vm1743 = vcmp.ne.s32.totalorder %v1739, %v1741
      %vm1744 = vcmp.ne.s32.totalorder %v1740, %v1742
      %vm1745 = vmpackc.low %vm1744, %vm1743
      %v1746 = vunpack.c.l.b16 %v1670
      %v1747 = vunpack.c.h.b16 %v1670
      %v1748 = vunpack.c.l.b16 0
      %v1749 = vunpack.c.h.b16 0
      %vm1750 = vcmp.ne.s32.totalorder %v1746, %v1748
      %vm1751 = vcmp.ne.s32.totalorder %v1747, %v1749
      %vm1752 = vmpackc.low %vm1751, %vm1750
      %v1753 = vunpack.c.l.b16 %v1671
      %v1754 = vunpack.c.h.b16 %v1671
      %v1755 = vunpack.c.l.b16 0
      %v1756 = vunpack.c.h.b16 0
      %vm1757 = vcmp.ne.s32.totalorder %v1753, %v1755
      %vm1758 = vcmp.ne.s32.totalorder %v1754, %v1756
      %vm1759 = vmpackc.low %vm1758, %vm1757
      %v1760 = vunpack.c.l.b16 %v1672
      %v1761 = vunpack.c.h.b16 %v1672
      %v1762 = vunpack.c.l.b16 0
      %v1763 = vunpack.c.h.b16 0
      %vm1764 = vcmp.ne.s32.totalorder %v1760, %v1762
      %vm1765 = vcmp.ne.s32.totalorder %v1761, %v1763
      %vm1766 = vmpackc.low %vm1765, %vm1764
      %v1767 = vunpack.c.l.b16 %v1673
      %v1768 = vunpack.c.h.b16 %v1673
      %v1769 = vunpack.c.l.b16 0
      %v1770 = vunpack.c.h.b16 0
      %vm1771 = vcmp.ne.s32.totalorder %v1767, %v1769
      %vm1772 = vcmp.ne.s32.totalorder %v1768, %v1770
      %vm1773 = vmpackc.low %vm1772, %vm1771
      %v1774 = vunpack.c.l.b16 %v1674
      %v1775 = vunpack.c.h.b16 %v1674
      %v1776 = vunpack.c.l.b16 0
      %v1777 = vunpack.c.h.b16 0
      %vm1778 = vcmp.ne.s32.totalorder %v1774, %v1776
      %vm1779 = vcmp.ne.s32.totalorder %v1775, %v1777
      %vm1780 = vmpackc.low %vm1779, %vm1778
      %v1781 = vunpack.c.l.b16 %v1675
      %v1782 = vunpack.c.h.b16 %v1675
      %v1783 = vunpack.c.l.b16 0
      %v1784 = vunpack.c.h.b16 0
      %vm1785 = vcmp.ne.s32.totalorder %v1781, %v1783
      %vm1786 = vcmp.ne.s32.totalorder %v1782, %v1784
      %vm1787 = vmpackc.low %vm1786, %vm1785
      %v1788 = vsel %vm1682, %v1453, 0
      %v1789 = vsel %vm1689, %v1456, 0
      %v1790 = vsel %vm1696, %v1459, 0
      %v1791 = vsel %vm1703, %v1462, 0
      %v1792 = vsel %vm1710, %v1465, 0
      %v1793 = vsel %vm1717, %v1468, 0
      %v1794 = vsel %vm1724, %v1471, 0
      %v1795 = vsel %vm1731, %v1474, 0
      %v1796 = vsel %vm1738, %v1477, 0
      %v1797 = vsel %vm1745, %v1480, 0
      %v1798 = vsel %vm1752, %v1483, 0
      %v1799 = vsel %vm1759, %v1486, 0
      %v1800 = vsel %vm1766, %v1489, 0
      %v1801 = vsel %vm1773, %v1492, 0
      %v1802 = vsel %vm1780, %v1495, 0
      %v1803 = vsel %vm1787, %v1498, 0
      %v1804 = vld [vmem:[#allocation2 + $0x80] sm:$0x1]
      %v1805 = vld [vmem:[#allocation2 + $0x88] sm:$0x1]
      %v1806 = vld [vmem:[#allocation2 + $0x90] sm:$0x1]
      %v1808 = vunpack.c.l.b16 %v1804
      %v1809 = vpack.c.b16 %v1808, %v1808
      %v1811 = vunpack.c.l.b16 %v1805
      %v1812 = vpack.c.b16 %v1811, %v1811
      %1813 = vrot.lane.b32.xlu0 %v1812, 4
      %v1814 = vpop.permute.xlu0 %1813
      %v1816 = vunpack.c.l.b16 %v1806
      %v1817 = vpack.c.b16 %v1816, %v1816
      %1818 = vrot.lane.b32.xlu0 %v1817, 8
      %v1819 = vpop.permute.xlu0 %1818
      %v1822 = vsel %vm1402, %v1809, %v1814
      %v1824 = vsel %vm1451, %v1822, %v1819
      %v1825 = vld [vmem:[#allocation2] sm:$0xe]
      %v1826 = vld [vmem:[#allocation2 + $0x8] sm:$0xe]
      %v1827 = vld [vmem:[#allocation2 + $0x10] sm:$0xe]
      %v1829 = vunpack.c.l.b16 %v1825
      %v1830 = vpack.c.b16 %v1281, %v1829
      %v1832 = vunpack.c.l.b16 %v1826
      %v1833 = vpack.c.b16 %v1283, %v1832
      %1834 = vrot.lane.b32.xlu0 %v1833, 4
      %v1835 = vpop.permute.xlu0 %1834
      %v1837 = vunpack.c.l.b16 %v1827
      %v1838 = vpack.c.b16 %v1285, %v1837
      %1839 = vrot.lane.b32.xlu0 %v1838, 8
      %v1840 = vpop.permute.xlu0 %1839
      %v1843 = vsel %vm1402, %v1830, %v1835
      %v1845 = vsel %vm1451, %v1843, %v1840
      %v1848 = vsel %vm1180, 1, 0
      %v1849 = vsel %vm1181, 1, 0
      %v1850 = vsel %vm1182, 1, 0
      %v1851 = vsel %vm1183, 1, 0
      %v1852 = vsel %vm1184, 1, 0
      %v1853 = vsel %vm1185, 1, 0
      %v1854 = vsel %vm1186, 1, 0
      %v1855 = vsel %vm1187, 1, 0
      %v1856 = vsel %vm1188, 1, 0
      %v1857 = vsel %vm1189, 1, 0
      %v1858 = vsel %vm1190, 1, 0
      %v1859 = vsel %vm1191, 1, 0
      %v1860 = vsel %vm1192, 1, 0
      %v1861 = vsel %vm1193, 1, 0
      %v1862 = vsel %vm1194, 1, 0
      %v1863 = vsel %vm1195, 1, 0
      %v1864 = vsel %vm1196, 1, 0
      %v1865 = vsel %vm1197, 1, 0
      %v1866 = vsel %vm1198, 1, 0
      %v1867 = vsel %vm1199, 1, 0
      %v1868 = vsel %vm1200, 1, 0
      %v1869 = vsel %vm1201, 1, 0
      %v1870 = vsel %vm1202, 1, 0
      %v1871 = vsel %vm1203, 1, 0
      %v1872 = vsel %vm1204, 1, 0
      %v1873 = vsel %vm1205, 1, 0
      %v1874 = vsel %vm1206, 1, 0
      %v1875 = vsel %vm1207, 1, 0
      %v1876 = vsel %vm1208, 1, 0
      %v1877 = vsel %vm1209, 1, 0
      %v1878 = vsel %vm1210, 1, 0
      %v1879 = vsel %vm1211, 1, 0
      %vm1880 = vcmp.eq.s32.totalorder %v1848, 1
      %vm1881 = vcmp.eq.s32.totalorder %v1849, 1
      %vm1882 = vcmp.eq.s32.totalorder %v1850, 1
      %vm1883 = vcmp.eq.s32.totalorder %v1851, 1
      %vm1884 = vcmp.eq.s32.totalorder %v1852, 1
      %vm1885 = vcmp.eq.s32.totalorder %v1853, 1
      %vm1886 = vcmp.eq.s32.totalorder %v1854, 1
      %vm1887 = vcmp.eq.s32.totalorder %v1855, 1
      %vm1888 = vcmp.eq.s32.totalorder %v1856, 1
      %vm1889 = vcmp.eq.s32.totalorder %v1857, 1
      %vm1890 = vcmp.eq.s32.totalorder %v1858, 1
      %vm1891 = vcmp.eq.s32.totalorder %v1859, 1
      %vm1892 = vcmp.eq.s32.totalorder %v1860, 1
      %vm1893 = vcmp.eq.s32.totalorder %v1861, 1
      %vm1894 = vcmp.eq.s32.totalorder %v1862, 1
      %vm1895 = vcmp.eq.s32.totalorder %v1863, 1
      %vm1896 = vcmp.eq.s32.totalorder %v1864, 1
      %vm1897 = vcmp.eq.s32.totalorder %v1865, 1
      %vm1898 = vcmp.eq.s32.totalorder %v1866, 1
      %vm1899 = vcmp.eq.s32.totalorder %v1867, 1
      %vm1900 = vcmp.eq.s32.totalorder %v1868, 1
      %vm1901 = vcmp.eq.s32.totalorder %v1869, 1
      %vm1902 = vcmp.eq.s32.totalorder %v1870, 1
      %vm1903 = vcmp.eq.s32.totalorder %v1871, 1
      %vm1904 = vcmp.eq.s32.totalorder %v1872, 1
      %vm1905 = vcmp.eq.s32.totalorder %v1873, 1
      %vm1906 = vcmp.eq.s32.totalorder %v1874, 1
      %vm1907 = vcmp.eq.s32.totalorder %v1875, 1
      %vm1908 = vcmp.eq.s32.totalorder %v1876, 1
      %vm1909 = vcmp.eq.s32.totalorder %v1877, 1
      %vm1910 = vcmp.eq.s32.totalorder %v1878, 1
      %vm1911 = vcmp.eq.s32.totalorder %v1879, 1
      %vm1912 = vmpackc.low %vm1880, %vm1880
      %vm1913 = vmpackc.low %vm1881, %vm1881
      %vm1914 = vmpackc.low %vm1882, %vm1882
      %vm1915 = vmpackc.low %vm1883, %vm1883
      %vm1916 = vmpackc.low %vm1884, %vm1884
      %vm1917 = vmpackc.low %vm1885, %vm1885
      %vm1918 = vmpackc.low %vm1886, %vm1886
      %vm1919 = vmpackc.low %vm1887, %vm1887
      %vm1920 = vmpackc.low %vm1888, %vm1888
      %vm1921 = vmpackc.low %vm1889, %vm1889
      %vm1922 = vmpackc.low %vm1890, %vm1890
      %vm1923 = vmpackc.low %vm1891, %vm1891
      %vm1924 = vmpackc.low %vm1892, %vm1892
      %vm1925 = vmpackc.low %vm1893, %vm1893
      %vm1926 = vmpackc.low %vm1894, %vm1894
      %vm1927 = vmpackc.low %vm1895, %vm1895
      %vm1928 = vmpackc.low %vm1896, %vm1896
      %vm1929 = vmpackc.low %vm1897, %vm1897
      %vm1930 = vmpackc.low %vm1898, %vm1898
      %vm1931 = vmpackc.low %vm1899, %vm1899
      %vm1932 = vmpackc.low %vm1900, %vm1900
      %vm1933 = vmpackc.low %vm1901, %vm1901
      %vm1934 = vmpackc.low %vm1902, %vm1902
      %vm1935 = vmpackc.low %vm1903, %vm1903
      %vm1936 = vmpackc.low %vm1904, %vm1904
      %vm1937 = vmpackc.low %vm1905, %vm1905
      %vm1938 = vmpackc.low %vm1906, %vm1906
      %vm1939 = vmpackc.low %vm1907, %vm1907
      %vm1940 = vmpackc.low %vm1908, %vm1908
      %vm1941 = vmpackc.low %vm1909, %vm1909
      %vm1942 = vmpackc.low %vm1910, %vm1910
      %vm1943 = vmpackc.low %vm1911, %vm1911
      %v1944 = vsel %vm1912, 65537, 0
      %v1945 = vsel %vm1913, 65537, 0
      %v1946 = vsel %vm1914, 65537, 0
      %v1947 = vsel %vm1915, 65537, 0
      %v1948 = vsel %vm1916, 65537, 0
      %v1949 = vsel %vm1917, 65537, 0
      %v1950 = vsel %vm1918, 65537, 0
      %v1951 = vsel %vm1919, 65537, 0
      %v1952 = vsel %vm1920, 65537, 0
      %v1953 = vsel %vm1921, 65537, 0
      %v1954 = vsel %vm1922, 65537, 0
      %v1955 = vsel %vm1923, 65537, 0
      %v1956 = vsel %vm1924, 65537, 0
      %v1957 = vsel %vm1925, 65537, 0
      %v1958 = vsel %vm1926, 65537, 0
      %v1959 = vsel %vm1927, 65537, 0
      %v1960 = vsel %vm1928, 65537, 0
      %v1961 = vsel %vm1929, 65537, 0
      %v1962 = vsel %vm1930, 65537, 0
      %v1963 = vsel %vm1931, 65537, 0
      %v1964 = vsel %vm1932, 65537, 0
      %v1965 = vsel %vm1933, 65537, 0
      %v1966 = vsel %vm1934, 65537, 0
      %v1967 = vsel %vm1935, 65537, 0
      %v1968 = vsel %vm1936, 65537, 0
      %v1969 = vsel %vm1937, 65537, 0
      %v1970 = vsel %vm1938, 65537, 0
      %v1971 = vsel %vm1939, 65537, 0
      %v1972 = vsel %vm1940, 65537, 0
      %v1973 = vsel %vm1941, 65537, 0
      %v1974 = vsel %vm1942, 65537, 0
      %v1975 = vsel %vm1943, 65537, 0
      %v1976 = vunpack.c.l.b16 %v1944
      %v1977 = vunpack.c.l.b16 %v1945
      %v1978 = vunpack.c.l.b16 %v1946
      %v1979 = vunpack.c.l.b16 %v1947
      %v1980 = vunpack.c.l.b16 %v1948
      %v1981 = vunpack.c.l.b16 %v1949
      %v1982 = vunpack.c.l.b16 %v1950
      %v1983 = vunpack.c.l.b16 %v1951
      %v1984 = vunpack.c.l.b16 %v1952
      %v1985 = vunpack.c.l.b16 %v1953
      %v1986 = vunpack.c.l.b16 %v1954
      %v1987 = vunpack.c.l.b16 %v1955
      %v1988 = vunpack.c.l.b16 %v1956
      %v1989 = vunpack.c.l.b16 %v1957
      %v1990 = vunpack.c.l.b16 %v1958
      %v1991 = vunpack.c.l.b16 %v1959
      %v1992 = vunpack.c.l.b16 %v1960
      %v1993 = vunpack.c.l.b16 %v1961
      %v1994 = vunpack.c.l.b16 %v1962
      %v1995 = vunpack.c.l.b16 %v1963
      %v1996 = vunpack.c.l.b16 %v1964
      %v1997 = vunpack.c.l.b16 %v1965
      %v1998 = vunpack.c.l.b16 %v1966
      %v1999 = vunpack.c.l.b16 %v1967
      %v2000 = vunpack.c.l.b16 %v1968
      %v2001 = vunpack.c.l.b16 %v1969
      %v2002 = vunpack.c.l.b16 %v1970
      %v2003 = vunpack.c.l.b16 %v1971
      %v2004 = vunpack.c.l.b16 %v1972
      %v2005 = vunpack.c.l.b16 %v1973
      %v2006 = vunpack.c.l.b16 %v1974
      %v2007 = vunpack.c.l.b16 %v1975
      %v2008 = vpack.c.b16 %v1977, %v1976
      %v2009 = vpack.c.b16 %v1979, %v1978
      %v2010 = vpack.c.b16 %v1981, %v1980
      %v2011 = vpack.c.b16 %v1983, %v1982
      %v2012 = vpack.c.b16 %v1985, %v1984
      %v2013 = vpack.c.b16 %v1987, %v1986
      %v2014 = vpack.c.b16 %v1989, %v1988
      %v2015 = vpack.c.b16 %v1991, %v1990
      %v2016 = vpack.c.b16 %v1993, %v1992
      %v2017 = vpack.c.b16 %v1995, %v1994
      %v2018 = vpack.c.b16 %v1997, %v1996
      %v2019 = vpack.c.b16 %v1999, %v1998
      %v2020 = vpack.c.b16 %v2001, %v2000
      %v2021 = vpack.c.b16 %v2003, %v2002
      %v2022 = vpack.c.b16 %v2005, %v2004
      %v2023 = vpack.c.b16 %v2007, %v2006
      %vm2024 = vcmask 1040384
      %v2025 = vrot.slane %v2008, 7
      %v2026 = vrot.slane %v2009, 7
      %v2027 = vsel %vm2024, %v2025, %v2026
      %v2028 = vrot.slane %v2010, 7
      %v2029 = vsel %vm2024, %v2026, %v2028
      %v2030 = vrot.slane %v2011, 7
      %v2031 = vsel %vm2024, %v2028, %v2030
      %v2032 = vrot.slane %v2012, 7
      %v2033 = vsel %vm2024, %v2030, %v2032
      %v2034 = vrot.slane %v2013, 7
      %v2035 = vsel %vm2024, %v2032, %v2034
      %v2036 = vrot.slane %v2014, 7
      %v2037 = vsel %vm2024, %v2034, %v2036
      %v2038 = vrot.slane %v2015, 7
      %v2039 = vsel %vm2024, %v2036, %v2038
      %v2040 = vrot.slane %v2016, 7
      %v2041 = vsel %vm2024, %v2038, %v2040
      %v2042 = vrot.slane %v2017, 7
      %v2043 = vsel %vm2024, %v2040, %v2042
      %v2044 = vrot.slane %v2018, 7
      %v2045 = vsel %vm2024, %v2042, %v2044
      %v2046 = vrot.slane %v2019, 7
      %v2047 = vsel %vm2024, %v2044, %v2046
      %v2048 = vrot.slane %v2020, 7
      %v2049 = vsel %vm2024, %v2046, %v2048
      %v2050 = vrot.slane %v2021, 7
      %v2051 = vsel %vm2024, %v2048, %v2050
      %v2052 = vrot.slane %v2022, 7
      %v2053 = vsel %vm2024, %v2050, %v2052
      %v2054 = vrot.slane %v2023, 7
      %v2055 = vsel %vm2024, %v2052, %v2054
      %v2056 = vunpack.c.l.b16 %v2025
      %v2057 = vunpack.c.h.b16 %v2025
      %v2058 = vunpack.c.l.b16 0
      %v2059 = vunpack.c.h.b16 0
      %vm2060 = vcmp.ne.s32.totalorder %v2056, %v2058
      %vm2061 = vcmp.ne.s32.totalorder %v2057, %v2059
      %vm2062 = vmpackc.low %vm2061, %vm2060
      %v2063 = vunpack.c.l.b16 %v2027
      %v2064 = vunpack.c.h.b16 %v2027
      %v2065 = vunpack.c.l.b16 0
      %v2066 = vunpack.c.h.b16 0
      %vm2067 = vcmp.ne.s32.totalorder %v2063, %v2065
      %vm2068 = vcmp.ne.s32.totalorder %v2064, %v2066
      %vm2069 = vmpackc.low %vm2068, %vm2067
      %v2070 = vunpack.c.l.b16 %v2029
      %v2071 = vunpack.c.h.b16 %v2029
      %v2072 = vunpack.c.l.b16 0
      %v2073 = vunpack.c.h.b16 0
      %vm2074 = vcmp.ne.s32.totalorder %v2070, %v2072
      %vm2075 = vcmp.ne.s32.totalorder %v2071, %v2073
      %vm2076 = vmpackc.low %vm2075, %vm2074
      %v2077 = vunpack.c.l.b16 %v2031
      %v2078 = vunpack.c.h.b16 %v2031
      %v2079 = vunpack.c.l.b16 0
      %v2080 = vunpack.c.h.b16 0
      %vm2081 = vcmp.ne.s32.totalorder %v2077, %v2079
      %vm2082 = vcmp.ne.s32.totalorder %v2078, %v2080
      %vm2083 = vmpackc.low %vm2082, %vm2081
      %v2084 = vunpack.c.l.b16 %v2033
      %v2085 = vunpack.c.h.b16 %v2033
      %v2086 = vunpack.c.l.b16 0
      %v2087 = vunpack.c.h.b16 0
      %vm2088 = vcmp.ne.s32.totalorder %v2084, %v2086
      %vm2089 = vcmp.ne.s32.totalorder %v2085, %v2087
      %vm2090 = vmpackc.low %vm2089, %vm2088
      %v2091 = vunpack.c.l.b16 %v2035
      %v2092 = vunpack.c.h.b16 %v2035
      %v2093 = vunpack.c.l.b16 0
      %v2094 = vunpack.c.h.b16 0
      %vm2095 = vcmp.ne.s32.totalorder %v2091, %v2093
      %vm2096 = vcmp.ne.s32.totalorder %v2092, %v2094
      %vm2097 = vmpackc.low %vm2096, %vm2095
      %v2098 = vunpack.c.l.b16 %v2037
      %v2099 = vunpack.c.h.b16 %v2037
      %v2100 = vunpack.c.l.b16 0
      %v2101 = vunpack.c.h.b16 0
      %vm2102 = vcmp.ne.s32.totalorder %v2098, %v2100
      %vm2103 = vcmp.ne.s32.totalorder %v2099, %v2101
      %vm2104 = vmpackc.low %vm2103, %vm2102
      %v2105 = vunpack.c.l.b16 %v2039
      %v2106 = vunpack.c.h.b16 %v2039
      %v2107 = vunpack.c.l.b16 0
      %v2108 = vunpack.c.h.b16 0
      %vm2109 = vcmp.ne.s32.totalorder %v2105, %v2107
      %vm2110 = vcmp.ne.s32.totalorder %v2106, %v2108
      %vm2111 = vmpackc.low %vm2110, %vm2109
      %v2112 = vunpack.c.l.b16 %v2041
      %v2113 = vunpack.c.h.b16 %v2041
      %v2114 = vunpack.c.l.b16 0
      %v2115 = vunpack.c.h.b16 0
      %vm2116 = vcmp.ne.s32.totalorder %v2112, %v2114
      %vm2117 = vcmp.ne.s32.totalorder %v2113, %v2115
      %vm2118 = vmpackc.low %vm2117, %vm2116
      %v2119 = vunpack.c.l.b16 %v2043
      %v2120 = vunpack.c.h.b16 %v2043
      %v2121 = vunpack.c.l.b16 0
      %v2122 = vunpack.c.h.b16 0
      %vm2123 = vcmp.ne.s32.totalorder %v2119, %v2121
      %vm2124 = vcmp.ne.s32.totalorder %v2120, %v2122
      %vm2125 = vmpackc.low %vm2124, %vm2123
      %v2126 = vunpack.c.l.b16 %v2045
      %v2127 = vunpack.c.h.b16 %v2045
      %v2128 = vunpack.c.l.b16 0
      %v2129 = vunpack.c.h.b16 0
      %vm2130 = vcmp.ne.s32.totalorder %v2126, %v2128
      %vm2131 = vcmp.ne.s32.totalorder %v2127, %v2129
      %vm2132 = vmpackc.low %vm2131, %vm2130
      %v2133 = vunpack.c.l.b16 %v2047
      %v2134 = vunpack.c.h.b16 %v2047
      %v2135 = vunpack.c.l.b16 0
      %v2136 = vunpack.c.h.b16 0
      %vm2137 = vcmp.ne.s32.totalorder %v2133, %v2135
      %vm2138 = vcmp.ne.s32.totalorder %v2134, %v2136
      %vm2139 = vmpackc.low %vm2138, %vm2137
      %v2140 = vunpack.c.l.b16 %v2049
      %v2141 = vunpack.c.h.b16 %v2049
      %v2142 = vunpack.c.l.b16 0
      %v2143 = vunpack.c.h.b16 0
      %vm2144 = vcmp.ne.s32.totalorder %v2140, %v2142
      %vm2145 = vcmp.ne.s32.totalorder %v2141, %v2143
      %vm2146 = vmpackc.low %vm2145, %vm2144
      %v2147 = vunpack.c.l.b16 %v2051
      %v2148 = vunpack.c.h.b16 %v2051
      %v2149 = vunpack.c.l.b16 0
      %v2150 = vunpack.c.h.b16 0
      %vm2151 = vcmp.ne.s32.totalorder %v2147, %v2149
      %vm2152 = vcmp.ne.s32.totalorder %v2148, %v2150
      %vm2153 = vmpackc.low %vm2152, %vm2151
      %v2154 = vunpack.c.l.b16 %v2053
      %v2155 = vunpack.c.h.b16 %v2053
      %v2156 = vunpack.c.l.b16 0
      %v2157 = vunpack.c.h.b16 0
      %vm2158 = vcmp.ne.s32.totalorder %v2154, %v2156
      %vm2159 = vcmp.ne.s32.totalorder %v2155, %v2157
      %vm2160 = vmpackc.low %vm2159, %vm2158
      %v2161 = vunpack.c.l.b16 %v2055
      %v2162 = vunpack.c.h.b16 %v2055
      %v2163 = vunpack.c.l.b16 0
      %v2164 = vunpack.c.h.b16 0
      %vm2165 = vcmp.ne.s32.totalorder %v2161, %v2163
      %vm2166 = vcmp.ne.s32.totalorder %v2162, %v2164
      %vm2167 = vmpackc.low %vm2166, %vm2165
      %v2168 = vunpack.c.l.b16 %v2054
      %v2169 = vunpack.c.h.b16 %v2054
      %v2170 = vunpack.c.l.b16 0
      %v2171 = vunpack.c.h.b16 0
      %vm2172 = vcmp.ne.s32.totalorder %v2168, %v2170
      %vm2173 = vcmp.ne.s32.totalorder %v2169, %v2171
      %vm2174 = vmpackc.low %vm2173, %vm2172
      %v2175 = vsel %vm2062, %v1845, 0
      %v2176 = vsel %vm2069, %v1456, 0
      %v2177 = vsel %vm2076, %v1459, 0
      %v2178 = vsel %vm2083, %v1462, 0
      %v2179 = vsel %vm2090, %v1465, 0
      %v2180 = vsel %vm2097, %v1468, 0
      %v2181 = vsel %vm2104, %v1471, 0
      %v2182 = vsel %vm2111, %v1474, 0
      %v2183 = vsel %vm2118, %v1477, 0
      %v2184 = vsel %vm2125, %v1480, 0
      %v2185 = vsel %vm2132, %v1483, 0
      %v2186 = vsel %vm2139, %v1486, 0
      %v2187 = vsel %vm2146, %v1489, 0
      %v2188 = vsel %vm2153, %v1492, 0
      %v2189 = vsel %vm2160, %v1495, 0
      %v2190 = vsel %vm2167, %v1498, 0
      %v2191 = vsel %vm2174, %v1824, 0
      %vm2192 = vsmask.f32 7424
      %v2193 = vshrl.u32 %v1453, 16
      %v2195 = vshll.u32 %v1453, 16
      %v2197 = vrot.slane %v2195, 1
      %v2198 = vor.u32 %v2193, %v2197
      %v2199 = vshll.u32 %v1456, 16
      %v2201 = vrot.slane %v2199, 1
      %v2202 = vsel %vm2192, %v2198, %v2201
      %v2203 = vshrl.u32 %v1456, 16
      %v2205 = vor.u32 %v2203, %v2201
      %v2206 = vshll.u32 %v1459, 16
      %v2208 = vrot.slane %v2206, 1
      %v2209 = vsel %vm2192, %v2205, %v2208
      %v2210 = vshrl.u32 %v1459, 16
      %v2212 = vor.u32 %v2210, %v2208
      %v2213 = vshll.u32 %v1462, 16
      %v2215 = vrot.slane %v2213, 1
      %v2216 = vsel %vm2192, %v2212, %v2215
      %v2217 = vshrl.u32 %v1462, 16
      %v2219 = vor.u32 %v2217, %v2215
      %v2220 = vshll.u32 %v1465, 16
      %v2222 = vrot.slane %v2220, 1
      %v2223 = vsel %vm2192, %v2219, %v2222
      %v2224 = vshrl.u32 %v1465, 16
      %v2226 = vor.u32 %v2224, %v2222
      %v2227 = vshll.u32 %v1468, 16
      %v2229 = vrot.slane %v2227, 1
      %v2230 = vsel %vm2192, %v2226, %v2229
      %v2231 = vshrl.u32 %v1468, 16
      %v2233 = vor.u32 %v2231, %v2229
      %v2234 = vshll.u32 %v1471, 16
      %v2236 = vrot.slane %v2234, 1
      %v2237 = vsel %vm2192, %v2233, %v2236
      %v2238 = vshrl.u32 %v1471, 16
      %v2240 = vor.u32 %v2238, %v2236
      %v2241 = vshll.u32 %v1474, 16
      %v2243 = vrot.slane %v2241, 1
      %v2244 = vsel %vm2192, %v2240, %v2243
      %v2245 = vshrl.u32 %v1474, 16
      %v2247 = vor.u32 %v2245, %v2243
      %v2248 = vshll.u32 %v1477, 16
      %v2250 = vrot.slane %v2248, 1
      %v2251 = vsel %vm2192, %v2247, %v2250
      %v2252 = vshrl.u32 %v1477, 16
      %v2254 = vor.u32 %v2252, %v2250
      %v2255 = vshll.u32 %v1480, 16
      %v2257 = vrot.slane %v2255, 1
      %v2258 = vsel %vm2192, %v2254, %v2257
      %v2259 = vshrl.u32 %v1480, 16
      %v2261 = vor.u32 %v2259, %v2257
      %v2262 = vshll.u32 %v1483, 16
      %v2264 = vrot.slane %v2262, 1
      %v2265 = vsel %vm2192, %v2261, %v2264
      %v2266 = vshrl.u32 %v1483, 16
      %v2268 = vor.u32 %v2266, %v2264
      %v2269 = vshll.u32 %v1486, 16
      %v2271 = vrot.slane %v2269, 1
      %v2272 = vsel %vm2192, %v2268, %v2271
      %v2273 = vshrl.u32 %v1486, 16
      %v2275 = vor.u32 %v2273, %v2271
      %v2276 = vshll.u32 %v1489, 16
      %v2278 = vrot.slane %v2276, 1
      %v2279 = vsel %vm2192, %v2275, %v2278
      %v2280 = vshrl.u32 %v1489, 16
      %v2282 = vor.u32 %v2280, %v2278
      %v2283 = vshll.u32 %v1492, 16
      %v2285 = vrot.slane %v2283, 1
      %v2286 = vsel %vm2192, %v2282, %v2285
      %v2287 = vshrl.u32 %v1492, 16
      %v2289 = vor.u32 %v2287, %v2285
      %v2290 = vshll.u32 %v1495, 16
      %v2292 = vrot.slane %v2290, 1
      %v2293 = vsel %vm2192, %v2289, %v2292
      %v2294 = vshrl.u32 %v1495, 16
      %v2296 = vor.u32 %v2294, %v2292
      %v2297 = vshll.u32 %v1498, 16
      %v2299 = vrot.slane %v2297, 1
      %v2300 = vsel %vm2192, %v2296, %v2299
      %v2301 = vshrl.u32 %v1498, 16
      %v2303 = vor.u32 %v2301, %v2299
      %v2304 = vshll.u32 %v1824, 16
      %v2306 = vrot.slane %v2304, 1
      %v2307 = vsel %vm2192, %v2303, %v2306
      %2308 = vrot.lane.b32.xlu0 %v2202, 12
      %v2309 = vpop.permute.xlu0 %2308
      %2310 = vrot.lane.b32.xlu0 %v2209, 12
      %v2311 = vpop.permute.xlu0 %2310
      %2312 = vrot.lane.b32.xlu0 %v2216, 12
      %v2313 = vpop.permute.xlu0 %2312
      %2314 = vrot.lane.b32.xlu0 %v2223, 12
      %v2315 = vpop.permute.xlu0 %2314
      %2316 = vrot.lane.b32.xlu0 %v2230, 12
      %v2317 = vpop.permute.xlu0 %2316
      %2318 = vrot.lane.b32.xlu0 %v2237, 12
      %v2319 = vpop.permute.xlu0 %2318
      %2320 = vrot.lane.b32.xlu0 %v2244, 12
      %v2321 = vpop.permute.xlu0 %2320
      %2322 = vrot.lane.b32.xlu0 %v2251, 12
      %v2323 = vpop.permute.xlu0 %2322
      %2324 = vrot.lane.b32.xlu0 %v2258, 12
      %v2325 = vpop.permute.xlu0 %2324
      %2326 = vrot.lane.b32.xlu0 %v2265, 12
      %v2327 = vpop.permute.xlu0 %2326
      %2328 = vrot.lane.b32.xlu0 %v2272, 12
      %v2329 = vpop.permute.xlu0 %2328
      %2330 = vrot.lane.b32.xlu0 %v2279, 12
      %v2331 = vpop.permute.xlu0 %2330
      %2332 = vrot.lane.b32.xlu0 %v2286, 12
      %v2333 = vpop.permute.xlu0 %2332
      %2334 = vrot.lane.b32.xlu0 %v2293, 12
      %v2335 = vpop.permute.xlu0 %2334
      %2336 = vrot.lane.b32.xlu0 %v2300, 12
      %v2337 = vpop.permute.xlu0 %2336
      %2338 = vrot.lane.b32.xlu0 %v2307, 12
      %v2339 = vpop.permute.xlu0 %2338
      %vm2357 = vcmask 1046528
      %v2358 = vrot.slane %v2175, 1
      %v2359 = vrot.slane %v2176, 1
      %v2360 = vsel %vm2357, %v2358, %v2359
      %v2361 = vrot.slane %v2177, 1
      %v2362 = vsel %vm2357, %v2359, %v2361
      %v2363 = vrot.slane %v2178, 1
      %v2364 = vsel %vm2357, %v2361, %v2363
      %v2365 = vrot.slane %v2179, 1
      %v2366 = vsel %vm2357, %v2363, %v2365
      %v2367 = vrot.slane %v2180, 1
      %v2368 = vsel %vm2357, %v2365, %v2367
      %v2369 = vrot.slane %v2181, 1
      %v2370 = vsel %vm2357, %v2367, %v2369
      %v2371 = vrot.slane %v2182, 1
      %v2372 = vsel %vm2357, %v2369, %v2371
      %v2373 = vrot.slane %v2183, 1
      %v2374 = vsel %vm2357, %v2371, %v2373
      %v2375 = vrot.slane %v2184, 1
      %v2376 = vsel %vm2357, %v2373, %v2375
      %v2377 = vrot.slane %v2185, 1
      %v2378 = vsel %vm2357, %v2375, %v2377
      %v2379 = vrot.slane %v2186, 1
      %v2380 = vsel %vm2357, %v2377, %v2379
      %v2381 = vrot.slane %v2187, 1
      %v2382 = vsel %vm2357, %v2379, %v2381
      %v2383 = vrot.slane %v2188, 1
      %v2384 = vsel %vm2357, %v2381, %v2383
      %v2385 = vrot.slane %v2189, 1
      %v2386 = vsel %vm2357, %v2383, %v2385
      %v2387 = vrot.slane %v2190, 1
      %v2388 = vsel %vm2357, %v2385, %v2387
      %v2389 = vrot.slane %v2191, 1
      %v2390 = vsel %vm2357, %v2387, %v2389
      %2391 = vrot.lane.b32.xlu0 %v2360, 24
      %v2392 = vpop.permute.xlu0 %2391
      %2393 = vrot.lane.b32.xlu0 %v2362, 24
      %v2394 = vpop.permute.xlu0 %2393
      %2395 = vrot.lane.b32.xlu0 %v2364, 24
      %v2396 = vpop.permute.xlu0 %2395
      %2397 = vrot.lane.b32.xlu0 %v2366, 24
      %v2398 = vpop.permute.xlu0 %2397
      %2399 = vrot.lane.b32.xlu0 %v2368, 24
      %v2400 = vpop.permute.xlu0 %2399
      %2401 = vrot.lane.b32.xlu0 %v2370, 24
      %v2402 = vpop.permute.xlu0 %2401
      %2403 = vrot.lane.b32.xlu0 %v2372, 24
      %v2404 = vpop.permute.xlu0 %2403
      %2405 = vrot.lane.b32.xlu0 %v2374, 24
      %v2406 = vpop.permute.xlu0 %2405
      %2407 = vrot.lane.b32.xlu0 %v2376, 24
      %v2408 = vpop.permute.xlu0 %2407
      %2409 = vrot.lane.b32.xlu0 %v2378, 24
      %v2410 = vpop.permute.xlu0 %2409
      %2411 = vrot.lane.b32.xlu0 %v2380, 24
      %v2412 = vpop.permute.xlu0 %2411
      %2413 = vrot.lane.b32.xlu0 %v2382, 24
      %v2414 = vpop.permute.xlu0 %2413
      %2415 = vrot.lane.b32.xlu0 %v2384, 24
      %v2416 = vpop.permute.xlu0 %2415
      %2417 = vrot.lane.b32.xlu0 %v2386, 24
      %v2418 = vpop.permute.xlu0 %2417
      %2419 = vrot.lane.b32.xlu0 %v2388, 24
      %v2420 = vpop.permute.xlu0 %2419
      %2421 = vrot.lane.b32.xlu0 %v2390, 24
      %v2422 = vpop.permute.xlu0 %2421
      %vm2423 = vcmask 97280
      %v2426 = vsel %vm2423, %v1788, %v2309
      %v2429 = vsel %vm2423, %v1789, %v2311
      %v2432 = vsel %vm2423, %v1790, %v2313
      %v2435 = vsel %vm2423, %v1791, %v2315
      %v2438 = vsel %vm2423, %v1792, %v2317
      %v2441 = vsel %vm2423, %v1793, %v2319
      %v2444 = vsel %vm2423, %v1794, %v2321
      %v2447 = vsel %vm2423, %v1795, %v2323
      %v2450 = vsel %vm2423, %v1796, %v2325
      %v2453 = vsel %vm2423, %v1797, %v2327
      %v2456 = vsel %vm2423, %v1798, %v2329
      %v2459 = vsel %vm2423, %v1799, %v2331
      %v2462 = vsel %vm2423, %v1800, %v2333
      %v2465 = vsel %vm2423, %v1801, %v2335
      %v2468 = vsel %vm2423, %v1802, %v2337
      %v2471 = vsel %vm2423, %v1803, %v2339
      %vm2472 = vcmask 195584
      %v2474 = vsel %vm2472, %v2426, %v2392
      %v2476 = vsel %vm2472, %v2429, %v2394
      %v2478 = vsel %vm2472, %v2432, %v2396
      %v2480 = vsel %vm2472, %v2435, %v2398
      %v2482 = vsel %vm2472, %v2438, %v2400
      %v2484 = vsel %vm2472, %v2441, %v2402
      %v2486 = vsel %vm2472, %v2444, %v2404
      %v2488 = vsel %vm2472, %v2447, %v2406
      %v2490 = vsel %vm2472, %v2450, %v2408
      %v2492 = vsel %vm2472, %v2453, %v2410
      %v2494 = vsel %vm2472, %v2456, %v2412
      %v2496 = vsel %vm2472, %v2459, %v2414
      %v2498 = vsel %vm2472, %v2462, %v2416
      %v2500 = vsel %vm2472, %v2465, %v2418
      %v2502 = vsel %vm2472, %v2468, %v2420
      %v2504 = vsel %vm2472, %v2471, %v2422
      %v2505 = vld [vmem:[%s2] sm:$0xf]
      %v2506 = vld [vmem:[%s2 + $0x4] sm:$0xf]
      %v2507 = vld [vmem:[%s2 + $0x8] sm:$0xf]
      %v2508 = vld [vmem:[%s2 + $0xc] sm:$0xf]
      %v2509 = vld [vmem:[%s2 + $0x10] sm:$0x3]
      %v2515 = vunpack.c.l.b16 %v2505
      %v2516 = vunpack.c.l.b16 %v2506
      %v2517 = vunpack.c.l.b16 %v2507
      %v2518 = vunpack.c.l.b16 %v2508
      %v2519 = vunpack.c.l.b16 %v2509
      %v2520 = vpack.c.b16 %v2516, %v2515
      %v2521 = vpack.c.b16 %v2518, %v2517
      %v2522 = vpack.c.b16 %v2519, %v2519
      %vm2525 = vcmask 293888
      %v2526 = vsel %vm2525, %v2474, 0
      %v2528 = vsel %vm2525, %v2476, 0
      %v2530 = vsel %vm2525, %v2478, 0
      %v2532 = vsel %vm2525, %v2480, 0
      %v2534 = vsel %vm2525, %v2482, 0
      %v2536 = vsel %vm2525, %v2484, 0
      %v2538 = vsel %vm2525, %v2486, 0
      %v2540 = vsel %vm2525, %v2488, 0
      %v2542 = vsel %vm2525, %v2490, 0
      %v2544 = vsel %vm2525, %v2492, 0
      %v2546 = vsel %vm2525, %v2494, 0
      %v2548 = vsel %vm2525, %v2496, 0
      %v2550 = vsel %vm2525, %v2498, 0
      %v2552 = vsel %vm2525, %v2500, 0
      %v2554 = vsel %vm2525, %v2502, 0
      %v2556 = vsel %vm2525, %v2504, 0
      %vm2558 = vcmask 1041408
      %v2560 = vsel %vm2558, %v2522, 0
      %2562 = vmatpush.bf16.msra.mxu0 0
      %2563 = vmatpush.bf16.msra.mxu0 0
      %2564 = vmatpush.bf16.msra.mxu0 0
      %2565 = vmatpush.bf16.msra.mxu0 0
      %2566 = vmatpush.bf16.msra.mxu0 0
      %2567 = vmatpush.bf16.msra.mxu0 %v2560
      %2568 = vmatpush.bf16.msra.mxu0 %v2521
      %2569 = vmatpush.bf16.msra.mxu0 %v2520
      %2570 = vmatmul.bf16.gmra.mxu0 %v2526
      %v2571 = vpop.f32.mrf.mxu0
      %v2572 = vadd.f32 0.0, %v2571
      %v2573 = vpop.f32.mrf.mxu0
      %v2574 = vadd.f32 0.0, %v2573
      %2575 = vmatmul.bf16.gmra.mxu0 %v2528
      %v2576 = vpop.f32.mrf.mxu0
      %v2577 = vadd.f32 0.0, %v2576
      %v2578 = vpop.f32.mrf.mxu0
      %v2579 = vadd.f32 0.0, %v2578
      %2580 = vmatmul.bf16.gmra.mxu0 %v2530
      %v2581 = vpop.f32.mrf.mxu0
      %v2582 = vadd.f32 0.0, %v2581
      %v2583 = vpop.f32.mrf.mxu0
      %v2584 = vadd.f32 0.0, %v2583
      %2585 = vmatmul.bf16.gmra.mxu0 %v2532
      %v2586 = vpop.f32.mrf.mxu0
      %v2587 = vadd.f32 0.0, %v2586
      %v2588 = vpop.f32.mrf.mxu0
      %v2589 = vadd.f32 0.0, %v2588
      %2590 = vmatmul.bf16.gmra.mxu0 %v2534
      %v2591 = vpop.f32.mrf.mxu0
      %v2592 = vadd.f32 0.0, %v2591
      %v2593 = vpop.f32.mrf.mxu0
      %v2594 = vadd.f32 0.0, %v2593
      %2595 = vmatmul.bf16.gmra.mxu0 %v2536
      %v2596 = vpop.f32.mrf.mxu0
      %v2597 = vadd.f32 0.0, %v2596
      %v2598 = vpop.f32.mrf.mxu0
      %v2599 = vadd.f32 0.0, %v2598
      %2600 = vmatmul.bf16.gmra.mxu0 %v2538
      %v2601 = vpop.f32.mrf.mxu0
      %v2602 = vadd.f32 0.0, %v2601
      %v2603 = vpop.f32.mrf.mxu0
      %v2604 = vadd.f32 0.0, %v2603
      %2605 = vmatmul.bf16.gmra.mxu0 %v2540
      %v2606 = vpop.f32.mrf.mxu0
      %v2607 = vadd.f32 0.0, %v2606
      %v2608 = vpop.f32.mrf.mxu0
      %v2609 = vadd.f32 0.0, %v2608
      %2610 = vmatmul.bf16.gmra.mxu0 %v2542
      %v2611 = vpop.f32.mrf.mxu0
      %v2612 = vadd.f32 0.0, %v2611
      %v2613 = vpop.f32.mrf.mxu0
      %v2614 = vadd.f32 0.0, %v2613
      %2615 = vmatmul.bf16.gmra.mxu0 %v2544
      %v2616 = vpop.f32.mrf.mxu0
      %v2617 = vadd.f32 0.0, %v2616
      %v2618 = vpop.f32.mrf.mxu0
      %v2619 = vadd.f32 0.0, %v2618
      %2620 = vmatmul.bf16.gmra.mxu0 %v2546
      %v2621 = vpop.f32.mrf.mxu0
      %v2622 = vadd.f32 0.0, %v2621
      %v2623 = vpop.f32.mrf.mxu0
      %v2624 = vadd.f32 0.0, %v2623
      %2625 = vmatmul.bf16.gmra.mxu0 %v2548
      %v2626 = vpop.f32.mrf.mxu0
      %v2627 = vadd.f32 0.0, %v2626
      %v2628 = vpop.f32.mrf.mxu0
      %v2629 = vadd.f32 0.0, %v2628
      %2630 = vmatmul.bf16.gmra.mxu0 %v2550
      %v2631 = vpop.f32.mrf.mxu0
      %v2632 = vadd.f32 0.0, %v2631
      %v2633 = vpop.f32.mrf.mxu0
      %v2634 = vadd.f32 0.0, %v2633
      %2635 = vmatmul.bf16.gmra.mxu0 %v2552
      %v2636 = vpop.f32.mrf.mxu0
      %v2637 = vadd.f32 0.0, %v2636
      %v2638 = vpop.f32.mrf.mxu0
      %v2639 = vadd.f32 0.0, %v2638
      %2640 = vmatmul.bf16.gmra.mxu0 %v2554
      %v2641 = vpop.f32.mrf.mxu0
      %v2642 = vadd.f32 0.0, %v2641
      %v2643 = vpop.f32.mrf.mxu0
      %v2644 = vadd.f32 0.0, %v2643
      %2645 = vmatmul.bf16.gmra.mxu0 %v2556
      %v2646 = vpop.f32.mrf.mxu0
      %v2647 = vadd.f32 0.0, %v2646
      %v2648 = vpop.f32.mrf.mxu0
      %v2649 = vadd.f32 0.0, %v2648
      %2650 = vdwg.mxu0
      %v2651 = vpack.c.bf16 %v2572, %v2572
      %v2652 = vpack.c.bf16 %v2574, %v2574
      %v2653 = vpack.c.bf16 %v2577, %v2577
      %v2654 = vpack.c.bf16 %v2579, %v2579
      %v2655 = vpack.c.bf16 %v2582, %v2582
      %v2656 = vpack.c.bf16 %v2584, %v2584
      %v2657 = vpack.c.bf16 %v2587, %v2587
      %v2658 = vpack.c.bf16 %v2589, %v2589
      %v2659 = vpack.c.bf16 %v2592, %v2592
      %v2660 = vpack.c.bf16 %v2594, %v2594
      %v2661 = vpack.c.bf16 %v2597, %v2597
      %v2662 = vpack.c.bf16 %v2599, %v2599
      %v2663 = vpack.c.bf16 %v2602, %v2602
      %v2664 = vpack.c.bf16 %v2604, %v2604
      %v2665 = vpack.c.bf16 %v2607, %v2607
      %v2666 = vpack.c.bf16 %v2609, %v2609
      %v2667 = vpack.c.bf16 %v2612, %v2612
      %v2668 = vpack.c.bf16 %v2614, %v2614
      %v2669 = vpack.c.bf16 %v2617, %v2617
      %v2670 = vpack.c.bf16 %v2619, %v2619
      %v2671 = vpack.c.bf16 %v2622, %v2622
      %v2672 = vpack.c.bf16 %v2624, %v2624
      %v2673 = vpack.c.bf16 %v2627, %v2627
      %v2674 = vpack.c.bf16 %v2629, %v2629
      %v2675 = vpack.c.bf16 %v2632, %v2632
      %v2676 = vpack.c.bf16 %v2634, %v2634
      %v2677 = vpack.c.bf16 %v2637, %v2637
      %v2678 = vpack.c.bf16 %v2639, %v2639
      %v2679 = vpack.c.bf16 %v2642, %v2642
      %v2680 = vpack.c.bf16 %v2644, %v2644
      %v2681 = vpack.c.bf16 %v2647, %v2647
      %v2682 = vpack.c.bf16 %v2649, %v2649
      %2683 = vst.msk [vmem:[%s257] sm:$0xf] %vm338, %v2651
      %2684 = vst.msk [vmem:[%s257 + $0x4] sm:$0xf] %vm338, %v2652
      %2685 = vst.msk [vmem:[%s257 + $0x8] sm:$0xf] %vm338, %v2653
      %2686 = vst.msk [vmem:[%s257 + $0xc] sm:$0xf] %vm338, %v2654
      %2687 = vst.msk [vmem:[%s257 + $0x10] sm:$0xf] %vm338, %v2655
      %2688 = vst.msk [vmem:[%s257 + $0x14] sm:$0xf] %vm338, %v2656
      %2689 = vst.msk [vmem:[%s257 + $0x18] sm:$0xf] %vm338, %v2657
      %2690 = vst.msk [vmem:[%s257 + $0x1c] sm:$0xf] %vm338, %v2658
      %2691 = vst.msk [vmem:[%s257 + $0x20] sm:$0xf] %vm338, %v2659
      %2692 = vst.msk [vmem:[%s257 + $0x24] sm:$0xf] %vm338, %v2660
      %2693 = vst.msk [vmem:[%s257 + $0x28] sm:$0xf] %vm338, %v2661
      %2694 = vst.msk [vmem:[%s257 + $0x2c] sm:$0xf] %vm338, %v2662
      %2695 = vst.msk [vmem:[%s257 + $0x30] sm:$0xf] %vm338, %v2663
      %2696 = vst.msk [vmem:[%s257 + $0x34] sm:$0xf] %vm338, %v2664
      %2697 = vst.msk [vmem:[%s257 + $0x38] sm:$0xf] %vm338, %v2665
      %2698 = vst.msk [vmem:[%s257 + $0x3c] sm:$0xf] %vm338, %v2666
      %2699 = vst.msk [vmem:[%s257 + $0x40] sm:$0xf] %vm338, %v2667
      %2700 = vst.msk [vmem:[%s257 + $0x44] sm:$0xf] %vm338, %v2668
      %2701 = vst.msk [vmem:[%s257 + $0x48] sm:$0xf] %vm338, %v2669
      %2702 = vst.msk [vmem:[%s257 + $0x4c] sm:$0xf] %vm338, %v2670
      %2703 = vst.msk [vmem:[%s257 + $0x50] sm:$0xf] %vm338, %v2671
      %2704 = vst.msk [vmem:[%s257 + $0x54] sm:$0xf] %vm338, %v2672
      %2705 = vst.msk [vmem:[%s257 + $0x58] sm:$0xf] %vm338, %v2673
      %2706 = vst.msk [vmem:[%s257 + $0x5c] sm:$0xf] %vm338, %v2674
      %2707 = vst.msk [vmem:[%s257 + $0x60] sm:$0xf] %vm338, %v2675
      %2708 = vst.msk [vmem:[%s257 + $0x64] sm:$0xf] %vm338, %v2676
      %2709 = vst.msk [vmem:[%s257 + $0x68] sm:$0xf] %vm338, %v2677
      %2710 = vst.msk [vmem:[%s257 + $0x6c] sm:$0xf] %vm338, %v2678
      %2711 = vst.msk [vmem:[%s257 + $0x70] sm:$0xf] %vm338, %v2679
      %2712 = vst.msk [vmem:[%s257 + $0x74] sm:$0xf] %vm338, %v2680
      %2713 = vst.msk [vmem:[%s257 + $0x78] sm:$0xf] %vm338, %v2681
      %2714 = vst.msk [vmem:[%s257 + $0x7c] sm:$0xf] %vm338, %v2682
      %v2715 = vunpack.c.l.bf16 %v2651
      %v2716 = vunpack.c.l.bf16 %v2652
      %v2717 = vunpack.c.l.bf16 %v2653
      %v2718 = vunpack.c.l.bf16 %v2654
      %v2719 = vunpack.c.l.bf16 %v2655
      %v2720 = vunpack.c.l.bf16 %v2656
      %v2721 = vunpack.c.l.bf16 %v2657
      %v2722 = vunpack.c.l.bf16 %v2658
      %v2723 = vunpack.c.l.bf16 %v2659
      %v2724 = vunpack.c.l.bf16 %v2660
      %v2725 = vunpack.c.l.bf16 %v2661
      %v2726 = vunpack.c.l.bf16 %v2662
      %v2727 = vunpack.c.l.bf16 %v2663
      %v2728 = vunpack.c.l.bf16 %v2664
      %v2729 = vunpack.c.l.bf16 %v2665
      %v2730 = vunpack.c.l.bf16 %v2666
      %v2731 = vunpack.c.l.bf16 %v2667
      %v2732 = vunpack.c.l.bf16 %v2668
      %v2733 = vunpack.c.l.bf16 %v2669
      %v2734 = vunpack.c.l.bf16 %v2670
      %v2735 = vunpack.c.l.bf16 %v2671
      %v2736 = vunpack.c.l.bf16 %v2672
      %v2737 = vunpack.c.l.bf16 %v2673
      %v2738 = vunpack.c.l.bf16 %v2674
      %v2739 = vunpack.c.l.bf16 %v2675
      %v2740 = vunpack.c.l.bf16 %v2676
      %v2741 = vunpack.c.l.bf16 %v2677
      %v2742 = vunpack.c.l.bf16 %v2678
      %v2743 = vunpack.c.l.bf16 %v2679
      %v2744 = vunpack.c.l.bf16 %v2680
      %v2745 = vunpack.c.l.bf16 %v2681
      %v2746 = vunpack.c.l.bf16 %v2682
      %v2747 = vsel %vm1402, %v2715, 0.0
      %v2748 = vsel %vm1402, %v2716, 0.0
      %v2749 = vadd.f32 %v2747, %v2748
      %v2750 = vsel %vm1402, %v2717, 0.0
      %v2751 = vadd.f32 %v2749, %v2750
      %v2752 = vsel %vm1402, %v2718, 0.0
      %v2753 = vadd.f32 %v2751, %v2752
      %v2754 = vsel %vm1402, %v2719, 0.0
      %v2755 = vadd.f32 %v2753, %v2754
      %v2756 = vsel %vm1402, %v2720, 0.0
      %v2757 = vadd.f32 %v2755, %v2756
      %v2758 = vsel %vm1402, %v2721, 0.0
      %v2759 = vadd.f32 %v2757, %v2758
      %v2760 = vsel %vm1402, %v2722, 0.0
      %v2761 = vadd.f32 %v2759, %v2760
      %v2762 = vsel %vm1402, %v2723, 0.0
      %v2763 = vadd.f32 %v2761, %v2762
      %v2764 = vsel %vm1402, %v2724, 0.0
      %v2765 = vadd.f32 %v2763, %v2764
      %v2766 = vsel %vm1402, %v2725, 0.0
      %v2767 = vadd.f32 %v2765, %v2766
      %v2768 = vsel %vm1402, %v2726, 0.0
      %v2769 = vadd.f32 %v2767, %v2768
      %v2770 = vsel %vm1402, %v2727, 0.0
      %v2771 = vadd.f32 %v2769, %v2770
      %v2772 = vsel %vm1402, %v2728, 0.0
      %v2773 = vadd.f32 %v2771, %v2772
      %v2774 = vsel %vm1402, %v2729, 0.0
      %v2775 = vadd.f32 %v2773, %v2774
      %v2776 = vsel %vm1402, %v2730, 0.0
      %v2777 = vadd.f32 %v2775, %v2776
      %v2778 = vsel %vm1402, %v2731, 0.0
      %v2779 = vadd.f32 %v2777, %v2778
      %v2780 = vsel %vm1402, %v2732, 0.0
      %v2781 = vadd.f32 %v2779, %v2780
      %v2782 = vsel %vm1402, %v2733, 0.0
      %v2783 = vadd.f32 %v2781, %v2782
      %v2784 = vsel %vm1402, %v2734, 0.0
      %v2785 = vadd.f32 %v2783, %v2784
      %v2786 = vsel %vm1402, %v2735, 0.0
      %v2787 = vadd.f32 %v2785, %v2786
      %v2788 = vsel %vm1402, %v2736, 0.0
      %v2789 = vadd.f32 %v2787, %v2788
      %v2790 = vsel %vm1402, %v2737, 0.0
      %v2791 = vadd.f32 %v2789, %v2790
      %v2792 = vsel %vm1402, %v2738, 0.0
      %v2793 = vadd.f32 %v2791, %v2792
      %v2794 = vsel %vm1402, %v2739, 0.0
      %v2795 = vadd.f32 %v2793, %v2794
      %v2796 = vsel %vm1402, %v2740, 0.0
      %v2797 = vadd.f32 %v2795, %v2796
      %v2798 = vsel %vm1402, %v2741, 0.0
      %v2799 = vadd.f32 %v2797, %v2798
      %v2800 = vsel %vm1402, %v2742, 0.0
      %v2801 = vadd.f32 %v2799, %v2800
      %v2802 = vsel %vm1402, %v2743, 0.0
      %v2803 = vadd.f32 %v2801, %v2802
      %v2804 = vsel %vm1402, %v2744, 0.0
      %v2805 = vadd.f32 %v2803, %v2804
      %v2806 = vsel %vm1402, %v2745, 0.0
      %v2807 = vadd.f32 %v2805, %v2806
      %v2808 = vsel %vm1402, %v2746, 0.0
      %v2809 = vadd.f32 %v2807, %v2808
      %v2810 = vrot.slane %v2809, 4
      %v2811 = vadd.f32 %v2809, %v2810
      %v2812 = vrot.slane %v2811, 2
      %v2813 = vadd.f32 %v2811, %v2812
      %v2814 = vrot.slane %v2813, 1
      %v2815 = vadd.f32 %v2813, %v2814
      %v2816 = vmul.f32 %v2715, %v2715
      %v2817 = vmul.f32 %v2716, %v2716
      %v2818 = vmul.f32 %v2717, %v2717
      %v2819 = vmul.f32 %v2718, %v2718
      %v2820 = vmul.f32 %v2719, %v2719
      %v2821 = vmul.f32 %v2720, %v2720
      %v2822 = vmul.f32 %v2721, %v2721
      %v2823 = vmul.f32 %v2722, %v2722
      %v2824 = vmul.f32 %v2723, %v2723
      %v2825 = vmul.f32 %v2724, %v2724
      %v2826 = vmul.f32 %v2725, %v2725
      %v2827 = vmul.f32 %v2726, %v2726
      %v2828 = vmul.f32 %v2727, %v2727
      %v2829 = vmul.f32 %v2728, %v2728
      %v2830 = vmul.f32 %v2729, %v2729
      %v2831 = vmul.f32 %v2730, %v2730
      %v2832 = vmul.f32 %v2731, %v2731
      %v2833 = vmul.f32 %v2732, %v2732
      %v2834 = vmul.f32 %v2733, %v2733
      %v2835 = vmul.f32 %v2734, %v2734
      %v2836 = vmul.f32 %v2735, %v2735
      %v2837 = vmul.f32 %v2736, %v2736
      %v2838 = vmul.f32 %v2737, %v2737
      %v2839 = vmul.f32 %v2738, %v2738
      %v2840 = vmul.f32 %v2739, %v2739
      %v2841 = vmul.f32 %v2740, %v2740
      %v2842 = vmul.f32 %v2741, %v2741
      %v2843 = vmul.f32 %v2742, %v2742
      %v2844 = vmul.f32 %v2743, %v2743
      %v2845 = vmul.f32 %v2744, %v2744
      %v2846 = vmul.f32 %v2745, %v2745
      %v2847 = vmul.f32 %v2746, %v2746
      %v2848 = vsel %vm1402, %v2816, 0.0
      %v2849 = vsel %vm1402, %v2817, 0.0
      %v2850 = vadd.f32 %v2848, %v2849
      %v2851 = vsel %vm1402, %v2818, 0.0
      %v2852 = vadd.f32 %v2850, %v2851
      %v2853 = vsel %vm1402, %v2819, 0.0
      %v2854 = vadd.f32 %v2852, %v2853
      %v2855 = vsel %vm1402, %v2820, 0.0
      %v2856 = vadd.f32 %v2854, %v2855
      %v2857 = vsel %vm1402, %v2821, 0.0
      %v2858 = vadd.f32 %v2856, %v2857
      %v2859 = vsel %vm1402, %v2822, 0.0
      %v2860 = vadd.f32 %v2858, %v2859
      %v2861 = vsel %vm1402, %v2823, 0.0
      %v2862 = vadd.f32 %v2860, %v2861
      %v2863 = vsel %vm1402, %v2824, 0.0
      %v2864 = vadd.f32 %v2862, %v2863
      %v2865 = vsel %vm1402, %v2825, 0.0
      %v2866 = vadd.f32 %v2864, %v2865
      %v2867 = vsel %vm1402, %v2826, 0.0
      %v2868 = vadd.f32 %v2866, %v2867
      %v2869 = vsel %vm1402, %v2827, 0.0
      %v2870 = vadd.f32 %v2868, %v2869
      %v2871 = vsel %vm1402, %v2828, 0.0
      %v2872 = vadd.f32 %v2870, %v2871
      %v2873 = vsel %vm1402, %v2829, 0.0
      %v2874 = vadd.f32 %v2872, %v2873
      %v2875 = vsel %vm1402, %v2830, 0.0
      %v2876 = vadd.f32 %v2874, %v2875
      %v2877 = vsel %vm1402, %v2831, 0.0
      %v2878 = vadd.f32 %v2876, %v2877
      %v2879 = vsel %vm1402, %v2832, 0.0
      %v2880 = vadd.f32 %v2878, %v2879
      %v2881 = vsel %vm1402, %v2833, 0.0
      %v2882 = vadd.f32 %v2880, %v2881
      %v2883 = vsel %vm1402, %v2834, 0.0
      %v2884 = vadd.f32 %v2882, %v2883
      %v2885 = vsel %vm1402, %v2835, 0.0
      %v2886 = vadd.f32 %v2884, %v2885
      %v2887 = vsel %vm1402, %v2836, 0.0
      %v2888 = vadd.f32 %v2886, %v2887
      %v2889 = vsel %vm1402, %v2837, 0.0
      %v2890 = vadd.f32 %v2888, %v2889
      %v2891 = vsel %vm1402, %v2838, 0.0
      %v2892 = vadd.f32 %v2890, %v2891
      %v2893 = vsel %vm1402, %v2839, 0.0
      %v2894 = vadd.f32 %v2892, %v2893
      %v2895 = vsel %vm1402, %v2840, 0.0
      %v2896 = vadd.f32 %v2894, %v2895
      %v2897 = vsel %vm1402, %v2841, 0.0
      %v2898 = vadd.f32 %v2896, %v2897
      %v2899 = vsel %vm1402, %v2842, 0.0
      %v2900 = vadd.f32 %v2898, %v2899
      %v2901 = vsel %vm1402, %v2843, 0.0
      %v2902 = vadd.f32 %v2900, %v2901
      %v2903 = vsel %vm1402, %v2844, 0.0
      %v2904 = vadd.f32 %v2902, %v2903
      %v2905 = vsel %vm1402, %v2845, 0.0
      %v2906 = vadd.f32 %v2904, %v2905
      %v2907 = vsel %vm1402, %v2846, 0.0
      %v2908 = vadd.f32 %v2906, %v2907
      %v2909 = vsel %vm1402, %v2847, 0.0
      %v2910 = vadd.f32 %v2908, %v2909
      %v2911 = vrot.slane %v2910, 4
      %v2912 = vadd.f32 %v2910, %v2911
      %v2913 = vrot.slane %v2912, 2
      %v2914 = vadd.f32 %v2912, %v2913
      %v2915 = vrot.slane %v2914, 1
      %v2916 = vadd.f32 %v2914, %v2915
      %vm2917 = vcmask 1040384
      %v2918 = vsel %vm2917, %v2815, %v2916
      %vm2919 = vcmask 25600
      %2920 = vst.msk [vmem:[%s263] sm:$0x3] %vm2919, %v2918
      %s2921 = sadd.s32 %s20, %s21
      %p2922 = scmp.lt.s32.totalorder %s2921, 1
      %s2923 = scalar_select %p2922, %s2921, 1
      %s2924 = smul.addr %s2923, 32
      %s2925 = smul.addr %s2924, 4
      %s2926 = scalar_lea.vmem %s3, %s2925
      %s2927 = sadd.s32 %s20, %s21
      %p2928 = scmp.lt.s32.totalorder %s2927, 1
      %s2929 = scalar_select %p2928, %s2927, 1
      %s2930 = smul.addr %s2929, 2
      %s2931 = scalar_lea.vmem %s4, %s2930
      // Predicated region
      $region33: #{block_forward.3} parent=31 // pred_check
        %p2932 = pneg %p125
      $region34: #{block_forward.3} parent=31 // pred_check_branch
        %2934 = sbr.rel (%p2932) target = $region36
      $region35: #{block_forward.3} parent=31 // pred_region
        %s2935 = sadd.s32 %s20, %s21
      $region36: #{block_forward.3} parent=31 // pred_fallthru
        _
      // Predicated region
      $region37: #{block_forward.3} parent=31 // pred_check
        %p2936 = pneg %p153
      $region38: #{block_forward.3} parent=31 // pred_check_branch
        %2938 = sbr.rel (%p2936) target = $region40
      $region39: #{block_forward.3} parent=31 // pred_region
        %s2939 = sadd.s32 %s20, %s21
      $region40: #{block_forward.3} parent=31 // pred_fallthru
        _
    $region32: #{block_forward.3} parent=5 // pred_fallthru
      _
    %p2940 = scmp.le.s32.totalorder 2, %s11
    // Predicated region
    $region41: #{block_forward.3} parent=5 // pred_check
      %p2941 = pneg %p2940
    $region42: #{block_forward.3} parent=5 // pred_check_branch
      %2943 = sbr.rel (%p2941) target = $region44
    $region43: #{block_forward.3} parent=5 // pred_region
      %s2944 = ssub.s32 %s11, 2
      // Predicated region
      $region45: #{block_forward.3} parent=43 // pred_check
        %p2945 = pneg %p131
      $region46: #{block_forward.3} parent=43 // pred_check_branch
        %2947 = sbr.rel (%p2945) target = $region48
      $region47: #{block_forward.3} parent=43 // pred_region
        %s2948 = sadd.s32 %s22, %s23
        %p2949 = scmp.lt.s32.totalorder %s2948, 1
        %s2950 = scalar_select %p2949, %s2948, 1
        %s2951 = smul.addr %s2950, 32
        %s2952 = smul.addr %s2951, 4
        %s2953 = scalar_lea.vmem %s3, %s2952
      $region48: #{block_forward.3} parent=43 // pred_fallthru
        _
      // Predicated region
      $region49: #{block_forward.3} parent=43 // pred_check
        %p2954 = pneg %p159
      $region50: #{block_forward.3} parent=43 // pred_check_branch
        %2956 = sbr.rel (%p2954) target = $region52
      $region51: #{block_forward.3} parent=43 // pred_region
        %s2957 = sadd.s32 %s22, %s23
        %p2958 = scmp.lt.s32.totalorder %s2957, 1
        %s2959 = scalar_select %p2958, %s2957, 1
        %s2960 = smul.addr %s2959, 2
        %s2961 = scalar_lea.vmem %s4, %s2960
      $region52: #{block_forward.3} parent=43 // pred_fallthru
        _
    $region44: #{block_forward.3} parent=5 // pred_fallthru
      _
  $region6: #{block_forward.3} parent=0 // loop_footer
    %s15 = sadd.s32 1, %s11
  $region7: #{block_forward.3} parent=0 // loop_footer_branch
    %10 = sbr.rel target = $region3
  $region8: #{block_forward.3} parent=0 // loop_exit
    _

// kernel: block_forward.4
$region0: #{block_forward.4}
  #allocation0 [shape = 'u32[]', space=smem, size = 0x4, offset = 0x4, fixed_abs, tag = 'smem constant byte address 0x4 - core index']
  #allocation1 [shape = 'u32[72,128]{1,0:T(1,128)}', space=vmem, size = 0x9000, scoped, tag = 'internal scratch']
  #allocation2 [shape = 'bf16[290,4]{1,0:T(8,128)(2,1)}', space=vmem, size = 0x12800, scoped, tag = 'scratch operand']
  %s0 = inlined_call_operand.vmem [shape: bf16[2,256,4], index: 0, kind: input, shape index: {}]
  %s1 = inlined_call_operand.vmem [shape: bf16[2,32,4], index: 1, kind: input, shape index: {}]
  %s2 = inlined_call_operand.vmem [shape: bf16[36,4], index: 2, kind: input, shape index: {}]
  %s3 = inlined_call_operand.vmem [shape: f32[1,4], index: 3, kind: input, shape index: {}]
  %s4 = inlined_call_operand.vmem [shape: f32[1,4], index: 4, kind: input, shape index: {}]
  %s5 = inlined_call_operand.vmem [shape: bf16[2,256,4], index: 5, kind: output, shape index: {0}]
  %s6 = inlined_call_operand.vmem [shape: f32[2,2,4], index: 6, kind: output, shape index: {1}]
  %7 = xla_tuple %s5, %s6
  %s8 = sld [smem:[#allocation0]]
  $region61: #{block_forward.4} parent=0
    _
  %s10 = ssub.s32 1, %s8
  %s11 = scalar_select 0, %s10, %s8
  loop: start=0, step=1, limit=4
  $region2: #{block_forward.4} parent=0 // loop_pre_header
    _
  $region3: #{block_forward.4} parent=0 // loop_header
    %s13 = sphi 0, %s17
    %p14 = scmp.ge.s32.totalorder %s13, 4
    %s20 = sphi 0, %s32
    %s21 = sphi 0, %s28
    %s22 = sphi 0, %s20
    %s23 = sphi 0, %s21
    %s24 = sphi 0, %s22
    %s25 = sphi 0, %s23
    %s37 = sphi 0, %s39
    %s40 = sphi 0, %s37
    %s41 = sphi 0, %s40
    %s57 = sphi 0, %s41
    %s65 = sphi 0, %s67
    %s68 = sphi 0, %s65
    %s69 = sphi 0, %s68
    %s85 = sphi 0, %s69
    %s89 = sphi 0, %s89
    %s91 = sphi 0, %s89
    %s92 = sphi 0, %s91
    %s106 = sphi 0, %s92
    %s110 = sphi 0, %s110
    %s112 = sphi 0, %s110
    %s113 = sphi 0, %s112
    %s127 = sphi 0, %s113
    %s131 = sphi 0, %s131
    %s133 = sphi 0, %s131
    %s134 = sphi 0, %s133
    %s148 = sphi 0, %s134
    %s156 = sphi 0, %s158
    %s159 = sphi 0, %s156
    %s160 = sphi 0, %s159
    %s176 = sphi 0, %s160
    %s184 = sphi 0, %s186
    %s187 = sphi 0, %s184
    %s188 = sphi 0, %s187
    %s204 = sphi 0, %s188
  $region4: #{block_forward.4} parent=0 // loop_header_branch
    %16 = sbr.rel (%p14) target = $region8
  $region5: #{block_forward.4} parent=0 // loop_body
    %s18 = ssub.s32 %s13, 1
    %s19 = ssub.s32 %s13, 2
    %s26 = sadd.s32 1, %s21
    %p27 = scmp.ge.s32.totalorder %s26, 1
    %s28 = scalar_select %p27, 0, %s26
    %s29 = sadd.s32 1, %s20
    %s30 = scalar_select %p27, %s29, %s20
    %p31 = scmp.ge.s32.totalorder %s30, 2
    %s32 = scalar_select %p31, 0, %s30
    %s33 = sadd.s32 %s20, %s21
    %s34 = sadd.s32 %s32, %s28
    %s35 = ssub.s32 %s33, %s34
    %p36 = scmp.eq.s32.totalorder %s35, 0
    %s38 = sadd.s32 %s37, 1
    %s39 = scalar_select %p36, %s37, %s38
    %p42 = pneg %p36
    %p43 = scmp.eq.s32.totalorder %s13, 1
    %p44 = por %p42, %p43
    %p45 = scmp.ne.s32.totalorder %s37, %s40
    %p46 = scmp.eq.s32.totalorder %s13, 0
    %p47 = por %p45, %p46
    %p48 = scmp.ne.s32.totalorder %s37, %s40
    %p49 = scmp.eq.s32.totalorder %s18, 1
    %p50 = por %p48, %p49
    %p51 = scmp.ne.s32.totalorder %s40, %s41
    %p52 = scmp.eq.s32.totalorder %s18, 0
    %p53 = por %p51, %p52
    %p54 = scmp.ne.s32.totalorder %s40, %s41
    %p55 = scmp.eq.s32.totalorder %s19, 1
    %p56 = por %p54, %p55
    %p58 = scmp.ne.s32.totalorder %s41, %s57
    %p59 = scmp.eq.s32.totalorder %s19, 0
    %p60 = por %p58, %p59
    %s61 = sadd.s32 %s20, %s21
    %s62 = sadd.s32 %s32, %s28
    %s63 = ssub.s32 %s61, %s62
    %p64 = scmp.eq.s32.totalorder %s63, 0
    %s66 = sadd.s32 %s65, 1
    %s67 = scalar_select %p64, %s65, %s66
    %p70 = pneg %p64
    %p71 = scmp.eq.s32.totalorder %s13, 1
    %p72 = por %p70, %p71
    %p73 = scmp.ne.s32.totalorder %s65, %s68
    %p74 = scmp.eq.s32.totalorder %s13, 0
    %p75 = por %p73, %p74
    %p76 = scmp.ne.s32.totalorder %s65, %s68
    %p77 = scmp.eq.s32.totalorder %s18, 1
    %p78 = por %p76, %p77
    %p79 = scmp.ne.s32.totalorder %s68, %s69
    %p80 = scmp.eq.s32.totalorder %s18, 0
    %p81 = por %p79, %p80
    %p82 = scmp.ne.s32.totalorder %s68, %s69
    %p83 = scmp.eq.s32.totalorder %s19, 1
    %p84 = por %p82, %p83
    %p86 = scmp.ne.s32.totalorder %s69, %s85
    %p87 = scmp.eq.s32.totalorder %s19, 0
    %p88 = por %p86, %p87
    %s90 = sadd.s32 %s89, 1
    %p93 = scmp.eq.s32.totalorder %s13, 1
    %p94 = scmp.ne.s32.totalorder %s89, %s91
    %p95 = scmp.eq.s32.totalorder %s13, 0
    %p96 = por %p94, %p95
    %p97 = scmp.ne.s32.totalorder %s89, %s91
    %p98 = scmp.eq.s32.totalorder %s18, 1
    %p99 = por %p97, %p98
    %p100 = scmp.ne.s32.totalorder %s91, %s92
    %p101 = scmp.eq.s32.totalorder %s18, 0
    %p102 = por %p100, %p101
    %p103 = scmp.ne.s32.totalorder %s91, %s92
    %p104 = scmp.eq.s32.totalorder %s19, 1
    %p105 = por %p103, %p104
    %p107 = scmp.ne.s32.totalorder %s92, %s106
    %p108 = scmp.eq.s32.totalorder %s19, 0
    %p109 = por %p107, %p108
    %s111 = sadd.s32 %s110, 1
    %p114 = scmp.eq.s32.totalorder %s13, 1
    %p115 = scmp.ne.s32.totalorder %s110, %s112
    %p116 = scmp.eq.s32.totalorder %s13, 0
    %p117 = por %p115, %p116
    %p118 = scmp.ne.s32.totalorder %s110, %s112
    %p119 = scmp.eq.s32.totalorder %s18, 1
    %p120 = por %p118, %p119
    %p121 = scmp.ne.s32.totalorder %s112, %s113
    %p122 = scmp.eq.s32.totalorder %s18, 0
    %p123 = por %p121, %p122
    %p124 = scmp.ne.s32.totalorder %s112, %s113
    %p125 = scmp.eq.s32.totalorder %s19, 1
    %p126 = por %p124, %p125
    %p128 = scmp.ne.s32.totalorder %s113, %s127
    %p129 = scmp.eq.s32.totalorder %s19, 0
    %p130 = por %p128, %p129
    %s132 = sadd.s32 %s131, 1
    %p135 = scmp.eq.s32.totalorder %s13, 1
    %p136 = scmp.ne.s32.totalorder %s131, %s133
    %p137 = scmp.eq.s32.totalorder %s13, 0
    %p138 = por %p136, %p137
    %p139 = scmp.ne.s32.totalorder %s131, %s133
    %p140 = scmp.eq.s32.totalorder %s18, 1
    %p141 = por %p139, %p140
    %p142 = scmp.ne.s32.totalorder %s133, %s134
    %p143 = scmp.eq.s32.totalorder %s18, 0
    %p144 = por %p142, %p143
    %p145 = scmp.ne.s32.totalorder %s133, %s134
    %p146 = scmp.eq.s32.totalorder %s19, 1
    %p147 = por %p145, %p146
    %p149 = scmp.ne.s32.totalorder %s134, %s148
    %p150 = scmp.eq.s32.totalorder %s19, 0
    %p151 = por %p149, %p150
    %s152 = sadd.s32 %s20, %s21
    %s153 = sadd.s32 %s32, %s28
    %s154 = ssub.s32 %s152, %s153
    %p155 = scmp.eq.s32.totalorder %s154, 0
    %s157 = sadd.s32 %s156, 1
    %s158 = scalar_select %p155, %s156, %s157
    %p161 = pneg %p155
    %p162 = scmp.eq.s32.totalorder %s13, 1
    %p163 = por %p161, %p162
    %p164 = scmp.ne.s32.totalorder %s156, %s159
    %p165 = scmp.eq.s32.totalorder %s13, 0
    %p166 = por %p164, %p165
    %p167 = scmp.ne.s32.totalorder %s156, %s159
    %p168 = scmp.eq.s32.totalorder %s18, 1
    %p169 = por %p167, %p168
    %p170 = scmp.ne.s32.totalorder %s159, %s160
    %p171 = scmp.eq.s32.totalorder %s18, 0
    %p172 = por %p170, %p171
    %p173 = scmp.ne.s32.totalorder %s159, %s160
    %p174 = scmp.eq.s32.totalorder %s19, 1
    %p175 = por %p173, %p174
    %p177 = scmp.ne.s32.totalorder %s160, %s176
    %p178 = scmp.eq.s32.totalorder %s19, 0
    %p179 = por %p177, %p178
    %s180 = sadd.s32 %s20, %s21
    %s181 = sadd.s32 %s32, %s28
    %s182 = ssub.s32 %s180, %s181
    %p183 = scmp.eq.s32.totalorder %s182, 0
    %s185 = sadd.s32 %s184, 1
    %s186 = scalar_select %p183, %s184, %s185
    %p189 = pneg %p183
    %p190 = scmp.eq.s32.totalorder %s13, 1
    %p191 = por %p189, %p190
    %p192 = scmp.ne.s32.totalorder %s184, %s187
    %p193 = scmp.eq.s32.totalorder %s13, 0
    %p194 = por %p192, %p193
    %p195 = scmp.ne.s32.totalorder %s184, %s187
    %p196 = scmp.eq.s32.totalorder %s18, 1
    %p197 = por %p195, %p196
    %p198 = scmp.ne.s32.totalorder %s187, %s188
    %p199 = scmp.eq.s32.totalorder %s18, 0
    %p200 = por %p198, %p199
    %p201 = scmp.ne.s32.totalorder %s187, %s188
    %p202 = scmp.eq.s32.totalorder %s19, 1
    %p203 = por %p201, %p202
    %p205 = scmp.ne.s32.totalorder %s188, %s204
    %p206 = scmp.eq.s32.totalorder %s19, 0
    %p207 = por %p205, %p206
    %p208 = scmp.le.s32.totalorder 1, %s13
    %p209 = scmp.lt.s32.totalorder %s13, 3
    %p210 = pnand %p208, %p209
    %p211 = pneg %p210
    // Predicated region
    $region9: #{block_forward.4} parent=5 // pred_check
      _
    $region10: #{block_forward.4} parent=5 // pred_check_branch
      %213 = sbr.rel (%p210) target = $region12
    $region11: #{block_forward.4} parent=5 // pred_region
      %s214 = ssub.s32 %s13, 1
      // Predicated region
      $region13: #{block_forward.4} parent=11 // pred_check
        %p215 = pneg %p102
      $region14: #{block_forward.4} parent=11 // pred_check_branch
        %217 = sbr.rel (%p215) target = $region16
      $region15: #{block_forward.4} parent=11 // pred_region
        _
      $region16: #{block_forward.4} parent=11 // pred_fallthru
        _
      // Predicated region
      $region17: #{block_forward.4} parent=11 // pred_check
        %p218 = pneg %p123
      $region18: #{block_forward.4} parent=11 // pred_check_branch
        %220 = sbr.rel (%p218) target = $region20
      $region19: #{block_forward.4} parent=11 // pred_region
        _
      $region20: #{block_forward.4} parent=11 // pred_fallthru
        _
      // Predicated region
      $region21: #{block_forward.4} parent=11 // pred_check
        %p221 = pneg %p144
      $region22: #{block_forward.4} parent=11 // pred_check_branch
        %223 = sbr.rel (%p221) target = $region24
      $region23: #{block_forward.4} parent=11 // pred_region
        _
      $region24: #{block_forward.4} parent=11 // pred_fallthru
        _
    $region12: #{block_forward.4} parent=5 // pred_fallthru
      _
    %p224 = scmp.lt.s32.totalorder %s13, 2
    // Predicated region
    $region25: #{block_forward.4} parent=5 // pred_check
      %p225 = pneg %p224
    $region26: #{block_forward.4} parent=5 // pred_check_branch
      %227 = sbr.rel (%p225) target = $region28
    $region27: #{block_forward.4} parent=5 // pred_region
      // Predicated region
      $region29: #{block_forward.4} parent=27 // pred_check
        %p228 = pneg %p47
      $region30: #{block_forward.4} parent=27 // pred_check_branch
        %230 = sbr.rel (%p228) target = $region32
      $region31: #{block_forward.4} parent=27 // pred_region
        %s231 = sadd.s32 %s20, %s21
        %p232 = scmp.lt.s32.totalorder %s231, 1
        %s233 = scalar_select %p232, %s231, 1
        %s234 = smul.addr %s233, 32
        %s235 = smul.addr %s234, 4
        %s236 = scalar_lea.vmem %s0, %s235
        %s237 = sadd.s32 %s20, %s21
      $region32: #{block_forward.4} parent=27 // pred_fallthru
        _
      // Predicated region
      $region33: #{block_forward.4} parent=27 // pred_check
        %p238 = pneg %p75
      $region34: #{block_forward.4} parent=27 // pred_check_branch
        %240 = sbr.rel (%p238) target = $region36
      $region35: #{block_forward.4} parent=27 // pred_region
        %s241 = sadd.s32 %s20, %s21
        %p242 = scmp.lt.s32.totalorder %s241, 1
        %s243 = scalar_select %p242, %s241, 1
        %s244 = smul.addr %s243, 4
        %s245 = smul.addr %s244, 4
        %s246 = scalar_lea.vmem %s1, %s245
        %s247 = sadd.s32 %s20, %s21
      $region36: #{block_forward.4} parent=27 // pred_fallthru
        _
    $region28: #{block_forward.4} parent=5 // pred_fallthru
      _
    %p248 = scmp.le.s32.totalorder 1, %s13
    %p249 = scmp.lt.s32.totalorder %s13, 3
    %p250 = pnand %p248, %p249
    %p251 = pneg %p250
    // Predicated region
    $region37: #{block_forward.4} parent=5 // pred_check
      _
    $region38: #{block_forward.4} parent=5 // pred_check_branch
      %253 = sbr.rel (%p250) target = $region40
    $region39: #{block_forward.4} parent=5 // pred_region
      %s254 = ssub.s32 %s13, 1
      %s255 = sadd.s32 %s22, %s23
      %p256 = scmp.lt.s32.totalorder %s255, 1
      %s257 = scalar_select %p256, %s255, 1
      %s258 = smul.addr %s257, 32
      %s259 = smul.addr %s258, 4
      %s260 = scalar_lea.vmem %s0, %s259
      %p261 = pneg %p53
      %p262 = pneg %p50
      %s263 = sadd.s32 %s22, %s23
      %p264 = scmp.lt.s32.totalorder %s263, 1
      %s265 = scalar_select %p264, %s263, 1
      %s266 = smul.addr %s265, 4
      %s267 = smul.addr %s266, 4
      %s268 = scalar_lea.vmem %s1, %s267
      %p269 = pneg %p81
      %p270 = pneg %p78
      %p271 = pneg %p102
      %p272 = pneg %p99
      %p273 = pneg %p123
      %p274 = pneg %p120
      %p275 = pneg %p144
      %p276 = pneg %p141
      %p277 = pneg %p172
      %p278 = pneg %p169
      %s279 = sadd.s32 %s22, %s23
      %p280 = scmp.lt.s32.totalorder %s279, 1
      %s281 = scalar_select %p280, %s279, 1
      %s282 = smul.addr %s281, 32
      %s283 = smul.addr %s282, 4
      %s284 = scalar_lea.vmem %s5, %s283
      %p285 = pneg %p200
      %p286 = pneg %p197
      %s287 = sadd.s32 %s22, %s23
      %p288 = scmp.lt.s32.totalorder %s287, 1
      %s289 = scalar_select %p288, %s287, 1
      %s290 = smul.addr %s289, 2
      %s291 = scalar_lea.vmem %s6, %s290
      %s292 = sadd.s32 %s22, %s23
      %p293 = scmp.lt.s32.totalorder %s292, 1
      %s294 = scalar_select %p293, %s292, 1
      %s295 = smul.addr %s294, 32
      %s296 = smul.addr %s295, 4
      %s297 = scalar_lea.vmem %s0, %s296
      %s298 = sadd.s32 %s22, %s23
      %s299 = sadd.s32 %s22, %s23
      %p300 = scmp.lt.s32.totalorder %s299, 1
      %s301 = scalar_select %p300, %s299, 1
      %s302 = smul.addr %s301, 4
      %s303 = smul.addr %s302, 4
      %s304 = scalar_lea.vmem %s1, %s303
      %s305 = sadd.s32 %s22, %s23
      %s306 = sadd.s32 %s22, %s23
      %p307 = scmp.lt.s32.totalorder %s306, 1
      %s308 = scalar_select %p307, %s306, 1
      %s309 = smul.addr %s308, 32
      %s310 = smul.addr %s309, 4
      %s311 = scalar_lea.vmem %s5, %s310
      %s312 = sadd.s32 %s22, %s23
      %s313 = sadd.s32 %s22, %s23
      %p314 = scmp.lt.s32.totalorder %s313, 1
      %s315 = scalar_select %p314, %s313, 1
      %s316 = smul.addr %s315, 2
      %s317 = scalar_lea.vmem %s6, %s316
      %s318 = sadd.s32 %s22, %s23
      %v322 = vld [vmem:[%s297] sm:$0xf]
      %v323 = vld [vmem:[%s297 + $0x4] sm:$0xf]
      %v324 = vld [vmem:[%s297 + $0x8] sm:$0xf]
      %v325 = vld [vmem:[%s297 + $0xc] sm:$0xf]
      %v326 = vld [vmem:[%s297 + $0x10] sm:$0xf]
      %v327 = vld [vmem:[%s297 + $0x14] sm:$0xf]
      %v328 = vld [vmem:[%s297 + $0x18] sm:$0xf]
      %v329 = vld [vmem:[%s297 + $0x1c] sm:$0xf]
      %v330 = vld [vmem:[%s297 + $0x20] sm:$0xf]
      %v331 = vld [vmem:[%s297 + $0x24] sm:$0xf]
      %v332 = vld [vmem:[%s297 + $0x28] sm:$0xf]
      %v333 = vld [vmem:[%s297 + $0x2c] sm:$0xf]
      %v334 = vld [vmem:[%s297 + $0x30] sm:$0xf]
      %v335 = vld [vmem:[%s297 + $0x34] sm:$0xf]
      %v336 = vld [vmem:[%s297 + $0x38] sm:$0xf]
      %v337 = vld [vmem:[%s297 + $0x3c] sm:$0xf]
      %v338 = vld [vmem:[%s297 + $0x40] sm:$0xf]
      %v339 = vld [vmem:[%s297 + $0x44] sm:$0xf]
      %v340 = vld [vmem:[%s297 + $0x48] sm:$0xf]
      %v341 = vld [vmem:[%s297 + $0x4c] sm:$0xf]
      %v342 = vld [vmem:[%s297 + $0x50] sm:$0xf]
      %v343 = vld [vmem:[%s297 + $0x54] sm:$0xf]
      %v344 = vld [vmem:[%s297 + $0x58] sm:$0xf]
      %v345 = vld [vmem:[%s297 + $0x5c] sm:$0xf]
      %v346 = vld [vmem:[%s297 + $0x60] sm:$0xf]
      %v347 = vld [vmem:[%s297 + $0x64] sm:$0xf]
      %v348 = vld [vmem:[%s297 + $0x68] sm:$0xf]
      %v349 = vld [vmem:[%s297 + $0x6c] sm:$0xf]
      %v350 = vld [vmem:[%s297 + $0x70] sm:$0xf]
      %v351 = vld [vmem:[%s297 + $0x74] sm:$0xf]
      %v352 = vld [vmem:[%s297 + $0x78] sm:$0xf]
      %v353 = vld [vmem:[%s297 + $0x7c] sm:$0xf]
      %v354 = vunpack.c.l.bf16 %v322
      %v355 = vunpack.c.l.bf16 %v323
      %v356 = vunpack.c.l.bf16 %v324
      %v357 = vunpack.c.l.bf16 %v325
      %v358 = vunpack.c.l.bf16 %v326
      %v359 = vunpack.c.l.bf16 %v327
      %v360 = vunpack.c.l.bf16 %v328
      %v361 = vunpack.c.l.bf16 %v329
      %v362 = vunpack.c.l.bf16 %v330
      %v363 = vunpack.c.l.bf16 %v331
      %v364 = vunpack.c.l.bf16 %v332
      %v365 = vunpack.c.l.bf16 %v333
      %v366 = vunpack.c.l.bf16 %v334
      %v367 = vunpack.c.l.bf16 %v335
      %v368 = vunpack.c.l.bf16 %v336
      %v369 = vunpack.c.l.bf16 %v337
      %v370 = vunpack.c.l.bf16 %v338
      %v371 = vunpack.c.l.bf16 %v339
      %v372 = vunpack.c.l.bf16 %v340
      %v373 = vunpack.c.l.bf16 %v341
      %v374 = vunpack.c.l.bf16 %v342
      %v375 = vunpack.c.l.bf16 %v343
      %v376 = vunpack.c.l.bf16 %v344
      %v377 = vunpack.c.l.bf16 %v345
      %v378 = vunpack.c.l.bf16 %v346
      %v379 = vunpack.c.l.bf16 %v347
      %v380 = vunpack.c.l.bf16 %v348
      %v381 = vunpack.c.l.bf16 %v349
      %v382 = vunpack.c.l.bf16 %v350
      %v383 = vunpack.c.l.bf16 %v351
      %v384 = vunpack.c.l.bf16 %v352
      %v385 = vunpack.c.l.bf16 %v353
      %v386 = vld [vmem:[%s3] sm:$0x1]
      %v388 = vperm.slane %v386, 0
      %v390 = vmul.f32 %v354, %v388
      %v391 = vmul.f32 %v355, %v388
      %v392 = vmul.f32 %v356, %v388
      %v393 = vmul.f32 %v357, %v388
      %v394 = vmul.f32 %v358, %v388
      %v395 = vmul.f32 %v359, %v388
      %v396 = vmul.f32 %v360, %v388
      %v397 = vmul.f32 %v361, %v388
      %v398 = vmul.f32 %v362, %v388
      %v399 = vmul.f32 %v363, %v388
      %v400 = vmul.f32 %v364, %v388
      %v401 = vmul.f32 %v365, %v388
      %v402 = vmul.f32 %v366, %v388
      %v403 = vmul.f32 %v367, %v388
      %v404 = vmul.f32 %v368, %v388
      %v405 = vmul.f32 %v369, %v388
      %v406 = vmul.f32 %v370, %v388
      %v407 = vmul.f32 %v371, %v388
      %v408 = vmul.f32 %v372, %v388
      %v409 = vmul.f32 %v373, %v388
      %v410 = vmul.f32 %v374, %v388
      %v411 = vmul.f32 %v375, %v388
      %v412 = vmul.f32 %v376, %v388
      %v413 = vmul.f32 %v377, %v388
      %v414 = vmul.f32 %v378, %v388
      %v415 = vmul.f32 %v379, %v388
      %v416 = vmul.f32 %v380, %v388
      %v417 = vmul.f32 %v381, %v388
      %v418 = vmul.f32 %v382, %v388
      %v419 = vmul.f32 %v383, %v388
      %v420 = vmul.f32 %v384, %v388
      %v421 = vmul.f32 %v385, %v388
      %v422 = vld [vmem:[%s4] sm:$0x1]
      %v424 = vperm.slane %v422, 0
      %v426 = vadd.f32 %v390, %v424
      %v427 = vadd.f32 %v391, %v424
      %v428 = vadd.f32 %v392, %v424
      %v429 = vadd.f32 %v393, %v424
      %v430 = vadd.f32 %v394, %v424
      %v431 = vadd.f32 %v395, %v424
      %v432 = vadd.f32 %v396, %v424
      %v433 = vadd.f32 %v397, %v424
      %v434 = vadd.f32 %v398, %v424
      %v435 = vadd.f32 %v399, %v424
      %v436 = vadd.f32 %v400, %v424
      %v437 = vadd.f32 %v401, %v424
      %v438 = vadd.f32 %v402, %v424
      %v439 = vadd.f32 %v403, %v424
      %v440 = vadd.f32 %v404, %v424
      %v441 = vadd.f32 %v405, %v424
      %v442 = vadd.f32 %v406, %v424
      %v443 = vadd.f32 %v407, %v424
      %v444 = vadd.f32 %v408, %v424
      %v445 = vadd.f32 %v409, %v424
      %v446 = vadd.f32 %v410, %v424
      %v447 = vadd.f32 %v411, %v424
      %v448 = vadd.f32 %v412, %v424
      %v449 = vadd.f32 %v413, %v424
      %v450 = vadd.f32 %v414, %v424
      %v451 = vadd.f32 %v415, %v424
      %v452 = vadd.f32 %v416, %v424
      %v453 = vadd.f32 %v417, %v424
      %v454 = vadd.f32 %v418, %v424
      %v455 = vadd.f32 %v419, %v424
      %v456 = vadd.f32 %v420, %v424
      %v457 = vadd.f32 %v421, %v424
      %v458 = vmax.f32 %v426, 0.0
      %v459 = vmax.f32 %v427, 0.0
      %v460 = vmax.f32 %v428, 0.0
      %v461 = vmax.f32 %v429, 0.0
      %v462 = vmax.f32 %v430, 0.0
      %v463 = vmax.f32 %v431, 0.0
      %v464 = vmax.f32 %v432, 0.0
      %v465 = vmax.f32 %v433, 0.0
      %v466 = vmax.f32 %v434, 0.0
      %v467 = vmax.f32 %v435, 0.0
      %v468 = vmax.f32 %v436, 0.0
      %v469 = vmax.f32 %v437, 0.0
      %v470 = vmax.f32 %v438, 0.0
      %v471 = vmax.f32 %v439, 0.0
      %v472 = vmax.f32 %v440, 0.0
      %v473 = vmax.f32 %v441, 0.0
      %v474 = vmax.f32 %v442, 0.0
      %v475 = vmax.f32 %v443, 0.0
      %v476 = vmax.f32 %v444, 0.0
      %v477 = vmax.f32 %v445, 0.0
      %v478 = vmax.f32 %v446, 0.0
      %v479 = vmax.f32 %v447, 0.0
      %v480 = vmax.f32 %v448, 0.0
      %v481 = vmax.f32 %v449, 0.0
      %v482 = vmax.f32 %v450, 0.0
      %v483 = vmax.f32 %v451, 0.0
      %v484 = vmax.f32 %v452, 0.0
      %v485 = vmax.f32 %v453, 0.0
      %v486 = vmax.f32 %v454, 0.0
      %v487 = vmax.f32 %v455, 0.0
      %v488 = vmax.f32 %v456, 0.0
      %v489 = vmax.f32 %v457, 0.0
      %p490 = scmp.gt.s32.totalorder %s23, 0
      %v491 = vld [vmem:[%s304] sm:$0xf]
      %v492 = vld [vmem:[%s304 + $0x4] sm:$0xf]
      %v493 = vunpack.c.l.bf16 %v491
      %v494 = vunpack.c.l.bf16 %v492
      %v495 = vmul.f32 %v493, %v388
      %v496 = vmul.f32 %v494, %v388
      %v497 = vadd.f32 %v495, %v424
      %v498 = vadd.f32 %v496, %v424
      %v499 = vmax.f32 %v497, 0.0
      %v500 = vmax.f32 %v498, 0.0
      %s501 = scalar_select %p490, 1, 0
      %v502 = vstv %s501
      %vm503 = vcmp.eq.s32.totalorder %v502, 1
      %v504 = vsel %vm503, %v499, 0.0
      %v505 = vsel %vm503, %v500, 0.0
      %p506 = scmp.lt.s32.totalorder %s23, 0
      %v507 = vld [vmem:[%s304 + $0x8] sm:$0xf]
      %v508 = vld [vmem:[%s304 + $0xc] sm:$0xf]
      %v509 = vunpack.c.l.bf16 %v507
      %v510 = vunpack.c.l.bf16 %v508
      %v511 = vmul.f32 %v509, %v388
      %v512 = vmul.f32 %v510, %v388
      %v513 = vadd.f32 %v511, %v424
      %v514 = vadd.f32 %v512, %v424
      %v515 = vmax.f32 %v513, 0.0
      %v516 = vmax.f32 %v514, 0.0
      %s517 = scalar_select %p506, 1, 0
      %v518 = vstv %s517
      %vm519 = vcmp.eq.s32.totalorder %v518, 1
      %v520 = vsel %vm519, %v515, 0.0
      %v521 = vsel %vm519, %v516, 0.0
      %vm522 = vcmask 24576
      %vm523 = vsmask.f32 256
      %vm524 = vmand %vm522, %vm523
      %v525 = vld [vmem:[#allocation2] sm:$0x1]
      %v526 = vsel %vm524, 0, %v525
      %527 = vst [vmem:[#allocation2] sm:$0x1] %v526
      %v528 = vpack.c.bf16 %v504, %v504
      %v529 = vpack.c.bf16 %v505, %v505
      %vm530 = vsmask.f32 4368
      %vm531 = vmor %vm523, %vm530
      %v533 = vshrl.u32 %v528, 16
      %v535 = vrot.slane %v533, 7
      %v536 = vshll.u32 %v528, 16
      %v538 = vor.u32 %v535, %v536
      %v539 = vrot.slane %v535, 4
      %v541 = vshrl.u32 %v529, 16
      %v543 = vrot.slane %v541, 7
      %v544 = vshll.u32 %v529, 16
      %v546 = vor.u32 %v543, %v544
      %v547 = vsel %vm531, %v539, %v546
      %v548 = vrot.slane %v543, 4
      %vm552 = vcmask 27648
      %vm553 = vsmask.f32 7938
      %vm554 = vmand %vm552, %vm553
      %v555 = vld [vmem:[#allocation2] sm:$0xf]
      %v556 = vsel %vm554, %v538, %v555
      %557 = vst [vmem:[#allocation2] sm:$0xf] %v556
      %vm558 = vcmask 27648
      %559 = vst.msk [vmem:[#allocation2 + $0x4] sm:$0xf] %vm558, %v547
      %v560 = vld [vmem:[#allocation2 + $0x8] sm:$0x1]
      %v561 = vsel %vm524, %v548, %v560
      %562 = vst [vmem:[#allocation2 + $0x8] sm:$0x1] %v561
      %v563 = vpack.c.bf16 %v458, %v458
      %v564 = vpack.c.bf16 %v459, %v459
      %v565 = vpack.c.bf16 %v460, %v460
      %v566 = vpack.c.bf16 %v461, %v461
      %v567 = vpack.c.bf16 %v462, %v462
      %v568 = vpack.c.bf16 %v463, %v463
      %v569 = vpack.c.bf16 %v464, %v464
      %v570 = vpack.c.bf16 %v465, %v465
      %v571 = vpack.c.bf16 %v466, %v466
      %v572 = vpack.c.bf16 %v467, %v467
      %v573 = vpack.c.bf16 %v468, %v468
      %v574 = vpack.c.bf16 %v469, %v469
      %v575 = vpack.c.bf16 %v470, %v470
      %v576 = vpack.c.bf16 %v471, %v471
      %v577 = vpack.c.bf16 %v472, %v472
      %v578 = vpack.c.bf16 %v473, %v473
      %v579 = vpack.c.bf16 %v474, %v474
      %v580 = vpack.c.bf16 %v475, %v475
      %v581 = vpack.c.bf16 %v476, %v476
      %v582 = vpack.c.bf16 %v477, %v477
      %v583 = vpack.c.bf16 %v478, %v478
      %v584 = vpack.c.bf16 %v479, %v479
      %v585 = vpack.c.bf16 %v480, %v480
      %v586 = vpack.c.bf16 %v481, %v481
      %v587 = vpack.c.bf16 %v482, %v482
      %v588 = vpack.c.bf16 %v483, %v483
      %v589 = vpack.c.bf16 %v484, %v484
      %v590 = vpack.c.bf16 %v485, %v485
      %v591 = vpack.c.bf16 %v486, %v486
      %v592 = vpack.c.bf16 %v487, %v487
      %v593 = vpack.c.bf16 %v488, %v488
      %v594 = vpack.c.bf16 %v489, %v489
      %v596 = vshrl.u32 %v563, 16
      %v598 = vrot.slane %v596, 7
      %v599 = vshll.u32 %v563, 16
      %v601 = vor.u32 %v598, %v599
      %v602 = vrot.slane %v598, 4
      %v604 = vshrl.u32 %v564, 16
      %v606 = vrot.slane %v604, 7
      %v607 = vshll.u32 %v564, 16
      %v609 = vor.u32 %v606, %v607
      %v610 = vsel %vm531, %v602, %v609
      %v611 = vrot.slane %v606, 4
      %v613 = vshrl.u32 %v565, 16
      %v615 = vrot.slane %v613, 7
      %v616 = vshll.u32 %v565, 16
      %v618 = vor.u32 %v615, %v616
      %v619 = vsel %vm531, %v611, %v618
      %v620 = vrot.slane %v615, 4
      %v622 = vshrl.u32 %v566, 16
      %v624 = vrot.slane %v622, 7
      %v625 = vshll.u32 %v566, 16
      %v627 = vor.u32 %v624, %v625
      %v628 = vsel %vm531, %v620, %v627
      %v629 = vrot.slane %v624, 4
      %v631 = vshrl.u32 %v567, 16
      %v633 = vrot.slane %v631, 7
      %v634 = vshll.u32 %v567, 16
      %v636 = vor.u32 %v633, %v634
      %v637 = vsel %vm531, %v629, %v636
      %v638 = vrot.slane %v633, 4
      %v640 = vshrl.u32 %v568, 16
      %v642 = vrot.slane %v640, 7
      %v643 = vshll.u32 %v568, 16
      %v645 = vor.u32 %v642, %v643
      %v646 = vsel %vm531, %v638, %v645
      %v647 = vrot.slane %v642, 4
      %v649 = vshrl.u32 %v569, 16
      %v651 = vrot.slane %v649, 7
      %v652 = vshll.u32 %v569, 16
      %v654 = vor.u32 %v651, %v652
      %v655 = vsel %vm531, %v647, %v654
      %v656 = vrot.slane %v651, 4
      %v658 = vshrl.u32 %v570, 16
      %v660 = vrot.slane %v658, 7
      %v661 = vshll.u32 %v570, 16
      %v663 = vor.u32 %v660, %v661
      %v664 = vsel %vm531, %v656, %v663
      %v665 = vrot.slane %v660, 4
      %v667 = vshrl.u32 %v571, 16
      %v669 = vrot.slane %v667, 7
      %v670 = vshll.u32 %v571, 16
      %v672 = vor.u32 %v669, %v670
      %v673 = vsel %vm531, %v665, %v672
      %v674 = vrot.slane %v669, 4
      %v676 = vshrl.u32 %v572, 16
      %v678 = vrot.slane %v676, 7
      %v679 = vshll.u32 %v572, 16
      %v681 = vor.u32 %v678, %v679
      %v682 = vsel %vm531, %v674, %v681
      %v683 = vrot.slane %v678, 4
      %v685 = vshrl.u32 %v573, 16
      %v687 = vrot.slane %v685, 7
      %v688 = vshll.u32 %v573, 16
      %v690 = vor.u32 %v687, %v688
      %v691 = vsel %vm531, %v683, %v690
      %v692 = vrot.slane %v687, 4
      %v694 = vshrl.u32 %v574, 16
      %v696 = vrot.slane %v694, 7
      %v697 = vshll.u32 %v574, 16
      %v699 = vor.u32 %v696, %v697
      %v700 = vsel %vm531, %v692, %v699
      %v701 = vrot.slane %v696, 4
      %v703 = vshrl.u32 %v575, 16
      %v705 = vrot.slane %v703, 7
      %v706 = vshll.u32 %v575, 16
      %v708 = vor.u32 %v705, %v706
      %v709 = vsel %vm531, %v701, %v708
      %v710 = vrot.slane %v705, 4
      %v712 = vshrl.u32 %v576, 16
      %v714 = vrot.slane %v712, 7
      %v715 = vshll.u32 %v576, 16
      %v717 = vor.u32 %v714, %v715
      %v718 = vsel %vm531, %v710, %v717
      %v719 = vrot.slane %v714, 4
      %v721 = vshrl.u32 %v577, 16
      %v723 = vrot.slane %v721, 7
      %v724 = vshll.u32 %v577, 16
      %v726 = vor.u32 %v723, %v724
      %v727 = vsel %vm531, %v719, %v726
      %v728 = vrot.slane %v723, 4
      %v730 = vshrl.u32 %v578, 16
      %v732 = vrot.slane %v730, 7
      %v733 = vshll.u32 %v578, 16
      %v735 = vor.u32 %v732, %v733
      %v736 = vsel %vm531, %v728, %v735
      %v737 = vrot.slane %v732, 4
      %v739 = vshrl.u32 %v579, 16
      %v741 = vrot.slane %v739, 7
      %v742 = vshll.u32 %v579, 16
      %v744 = vor.u32 %v741, %v742
      %v745 = vsel %vm531, %v737, %v744
      %v746 = vrot.slane %v741, 4
      %v748 = vshrl.u32 %v580, 16
      %v750 = vrot.slane %v748, 7
      %v751 = vshll.u32 %v580, 16
      %v753 = vor.u32 %v750, %v751
      %v754 = vsel %vm531, %v746, %v753
      %v755 = vrot.slane %v750, 4
      %v757 = vshrl.u32 %v581, 16
      %v759 = vrot.slane %v757, 7
      %v760 = vshll.u32 %v581, 16
      %v762 = vor.u32 %v759, %v760
      %v763 = vsel %vm531, %v755, %v762
      %v764 = vrot.slane %v759, 4
      %v766 = vshrl.u32 %v582, 16
      %v768 = vrot.slane %v766, 7
      %v769 = vshll.u32 %v582, 16
      %v771 = vor.u32 %v768, %v769
      %v772 = vsel %vm531, %v764, %v771
      %v773 = vrot.slane %v768, 4
      %v775 = vshrl.u32 %v583, 16
      %v777 = vrot.slane %v775, 7
      %v778 = vshll.u32 %v583, 16
      %v780 = vor.u32 %v777, %v778
      %v781 = vsel %vm531, %v773, %v780
      %v782 = vrot.slane %v777, 4
      %v784 = vshrl.u32 %v584, 16
      %v786 = vrot.slane %v784, 7
      %v787 = vshll.u32 %v584, 16
      %v789 = vor.u32 %v786, %v787
      %v790 = vsel %vm531, %v782, %v789
      %v791 = vrot.slane %v786, 4
      %v793 = vshrl.u32 %v585, 16
      %v795 = vrot.slane %v793, 7
      %v796 = vshll.u32 %v585, 16
      %v798 = vor.u32 %v795, %v796
      %v799 = vsel %vm531, %v791, %v798
      %v800 = vrot.slane %v795, 4
      %v802 = vshrl.u32 %v586, 16
      %v804 = vrot.slane %v802, 7
      %v805 = vshll.u32 %v586, 16
      %v807 = vor.u32 %v804, %v805
      %v808 = vsel %vm531, %v800, %v807
      %v809 = vrot.slane %v804, 4
      %v811 = vshrl.u32 %v587, 16
      %v813 = vrot.slane %v811, 7
      %v814 = vshll.u32 %v587, 16
      %v816 = vor.u32 %v813, %v814
      %v817 = vsel %vm531, %v809, %v816
      %v818 = vrot.slane %v813, 4
      %v820 = vshrl.u32 %v588, 16
      %v822 = vrot.slane %v820, 7
      %v823 = vshll.u32 %v588, 16
      %v825 = vor.u32 %v822, %v823
      %v826 = vsel %vm531, %v818, %v825
      %v827 = vrot.slane %v822, 4
      %v829 = vshrl.u32 %v589, 16
      %v831 = vrot.slane %v829, 7
      %v832 = vshll.u32 %v589, 16
      %v834 = vor.u32 %v831, %v832
      %v835 = vsel %vm531, %v827, %v834
      %v836 = vrot.slane %v831, 4
      %v838 = vshrl.u32 %v590, 16
      %v840 = vrot.slane %v838, 7
      %v841 = vshll.u32 %v590, 16
      %v843 = vor.u32 %v840, %v841
      %v844 = vsel %vm531, %v836, %v843
      %v845 = vrot.slane %v840, 4
      %v847 = vshrl.u32 %v591, 16
      %v849 = vrot.slane %v847, 7
      %v850 = vshll.u32 %v591, 16
      %v852 = vor.u32 %v849, %v850
      %v853 = vsel %vm531, %v845, %v852
      %v854 = vrot.slane %v849, 4
      %v856 = vshrl.u32 %v592, 16
      %v858 = vrot.slane %v856, 7
      %v859 = vshll.u32 %v592, 16
      %v861 = vor.u32 %v858, %v859
      %v862 = vsel %vm531, %v854, %v861
      %v863 = vrot.slane %v858, 4
      %v865 = vshrl.u32 %v593, 16
      %v867 = vrot.slane %v865, 7
      %v868 = vshll.u32 %v593, 16
      %v870 = vor.u32 %v867, %v868
      %v871 = vsel %vm531, %v863, %v870
      %v872 = vrot.slane %v867, 4
      %v874 = vshrl.u32 %v594, 16
      %v876 = vrot.slane %v874, 7
      %v877 = vshll.u32 %v594, 16
      %v879 = vor.u32 %v876, %v877
      %v880 = vsel %vm531, %v872, %v879
      %v881 = vrot.slane %v876, 4
      %v915 = vld [vmem:[#allocation2 + $0x8] sm:$0xf]
      %v916 = vsel %vm554, %v601, %v915
      %917 = vst [vmem:[#allocation2 + $0x8] sm:$0xf] %v916
      %918 = vst.msk [vmem:[#allocation2 + $0xc] sm:$0xf] %vm558, %v610
      %919 = vst.msk [vmem:[#allocation2 + $0x10] sm:$0xf] %vm558, %v619
      %920 = vst.msk [vmem:[#allocation2 + $0x14] sm:$0xf] %vm558, %v628
      %921 = vst.msk [vmem:[#allocation2 + $0x18] sm:$0xf] %vm558, %v637
      %922 = vst.msk [vmem:[#allocation2 + $0x1c] sm:$0xf] %vm558, %v646
      %923 = vst.msk [vmem:[#allocation2 + $0x20] sm:$0xf] %vm558, %v655
      %924 = vst.msk [vmem:[#allocation2 + $0x24] sm:$0xf] %vm558, %v664
      %925 = vst.msk [vmem:[#allocation2 + $0x28] sm:$0xf] %vm558, %v673
      %926 = vst.msk [vmem:[#allocation2 + $0x2c] sm:$0xf] %vm558, %v682
      %927 = vst.msk [vmem:[#allocation2 + $0x30] sm:$0xf] %vm558, %v691
      %928 = vst.msk [vmem:[#allocation2 + $0x34] sm:$0xf] %vm558, %v700
      %929 = vst.msk [vmem:[#allocation2 + $0x38] sm:$0xf] %vm558, %v709
      %930 = vst.msk [vmem:[#allocation2 + $0x3c] sm:$0xf] %vm558, %v718
      %931 = vst.msk [vmem:[#allocation2 + $0x40] sm:$0xf] %vm558, %v727
      %932 = vst.msk [vmem:[#allocation2 + $0x44] sm:$0xf] %vm558, %v736
      %933 = vst.msk [vmem:[#allocation2 + $0x48] sm:$0xf] %vm558, %v745
      %934 = vst.msk [vmem:[#allocation2 + $0x4c] sm:$0xf] %vm558, %v754
      %935 = vst.msk [vmem:[#allocation2 + $0x50] sm:$0xf] %vm558, %v763
      %936 = vst.msk [vmem:[#allocation2 + $0x54] sm:$0xf] %vm558, %v772
      %937 = vst.msk [vmem:[#allocation2 + $0x58] sm:$0xf] %vm558, %v781
      %938 = vst.msk [vmem:[#allocation2 + $0x5c] sm:$0xf] %vm558, %v790
      %939 = vst.msk [vmem:[#allocation2 + $0x60] sm:$0xf] %vm558, %v799
      %940 = vst.msk [vmem:[#allocation2 + $0x64] sm:$0xf] %vm558, %v808
      %941 = vst.msk [vmem:[#allocation2 + $0x68] sm:$0xf] %vm558, %v817
      %942 = vst.msk [vmem:[#allocation2 + $0x6c] sm:$0xf] %vm558, %v826
      %943 = vst.msk [vmem:[#allocation2 + $0x70] sm:$0xf] %vm558, %v835
      %944 = vst.msk [vmem:[#allocation2 + $0x74] sm:$0xf] %vm558, %v844
      %945 = vst.msk [vmem:[#allocation2 + $0x78] sm:$0xf] %vm558, %v853
      %946 = vst.msk [vmem:[#allocation2 + $0x7c] sm:$0xf] %vm558, %v862
      %947 = vst.msk [vmem:[#allocation2 + $0x80] sm:$0xf] %vm558, %v871
      %948 = vst.msk [vmem:[#allocation2 + $0x84] sm:$0xf] %vm558, %v880
      %v949 = vld [vmem:[#allocation2 + $0x88] sm:$0x1]
      %v950 = vsel %vm524, %v881, %v949
      %951 = vst [vmem:[#allocation2 + $0x88] sm:$0x1] %v950
      %v952 = vpack.c.bf16 %v520, %v520
      %v953 = vpack.c.bf16 %v521, %v521
      %v955 = vshrl.u32 %v952, 16
      %v957 = vrot.slane %v955, 7
      %v958 = vshll.u32 %v952, 16
      %v960 = vor.u32 %v957, %v958
      %v961 = vrot.slane %v957, 4
      %v963 = vshrl.u32 %v953, 16
      %v965 = vrot.slane %v963, 7
      %v966 = vshll.u32 %v953, 16
      %v968 = vor.u32 %v965, %v966
      %v969 = vsel %vm531, %v961, %v968
      %v970 = vrot.slane %v965, 4
      %v974 = vld [vmem:[#allocation2 + $0x88] sm:$0xf]
      %v975 = vsel %vm554, %v960, %v974
      %976 = vst [vmem:[#allocation2 + $0x88] sm:$0xf] %v975
      %977 = vst.msk [vmem:[#allocation2 + $0x8c] sm:$0xf] %vm558, %v969
      %v978 = vld [vmem:[#allocation2 + $0x90] sm:$0x1]
      %v979 = vsel %vm524, %v970, %v978
      %980 = vst [vmem:[#allocation2 + $0x90] sm:$0x1] %v979
      %vm981 = vmand %vm522, %vm553
      %v982 = vld [vmem:[#allocation2 + $0x90] sm:$0x1]
      %v983 = vsel %vm981, 0, %v982
      %984 = vst [vmem:[#allocation2 + $0x90] sm:$0x1] %v983
      %v985 = vlaneseq
      %v986 = vshrl.u32 %v985, 7
      %v987 = vadd.s32 %v986, 8
      %v988 = vadd.s32 %v986, 16
      %v989 = vadd.s32 %v986, 24
      %v990 = vadd.s32 %v986, 32
      %v991 = vadd.s32 %v986, 40
      %v992 = vadd.s32 %v986, 48
      %v993 = vadd.s32 %v986, 56
      %v994 = vadd.s32 %v986, 64
      %v995 = vadd.s32 %v986, 72
      %v996 = vadd.s32 %v986, 80
      %v997 = vadd.s32 %v986, 88
      %v998 = vadd.s32 %v986, 96
      %v999 = vadd.s32 %v986, 104
      %v1000 = vadd.s32 %v986, 112
      %v1001 = vadd.s32 %v986, 120
      %v1002 = vadd.s32 %v986, 128
      %v1003 = vadd.s32 %v986, 136
      %v1004 = vadd.s32 %v986, 144
      %v1005 = vadd.s32 %v986, 152
      %v1006 = vadd.s32 %v986, 160
      %v1007 = vadd.s32 %v986, 168
      %v1008 = vadd.s32 %v986, 176
      %v1009 = vadd.s32 %v986, 184
      %v1010 = vadd.s32 %v986, 192
      %v1011 = vadd.s32 %v986, 200
      %v1012 = vadd.s32 %v986, 208
      %v1013 = vadd.s32 %v986, 216
      %v1014 = vadd.s32 %v986, 224
      %v1015 = vadd.s32 %v986, 232
      %v1016 = vadd.s32 %v986, 240
      %v1017 = vadd.s32 %v986, 248
      %vm1018 = vcmp.lt.s32.totalorder %v986, 0
      %v1019 = vsub.s32 0, %v986
      %v1020 = vsel %vm1018, %v1019, %v986
      %v1021 = vshrl.u32 %v1020, 4
      %v1022 = vand.u32 %v1020, 15
      %v1023 = vsub.s32 0, %v1022
      %v1024 = vsel %vm1018, %v1023, %v1022
      %vm1025 = vcmp.lt.s32.totalorder %v987, 0
      %v1026 = vsub.s32 0, %v987
      %v1027 = vsel %vm1025, %v1026, %v987
      %v1028 = vshrl.u32 %v1027, 4
      %v1029 = vand.u32 %v1027, 15
      %v1030 = vsub.s32 0, %v1029
      %v1031 = vsel %vm1025, %v1030, %v1029
      %vm1032 = vcmp.lt.s32.totalorder %v988, 0
      %v1033 = vsub.s32 0, %v988
      %v1034 = vsel %vm1032, %v1033, %v988
      %v1035 = vshrl.u32 %v1034, 4
      %v1036 = vand.u32 %v1034, 15
      %v1037 = vsub.s32 0, %v1036
      %v1038 = vsel %vm1032, %v1037, %v1036
      %vm1039 = vcmp.lt.s32.totalorder %v989, 0
      %v1040 = vsub.s32 0, %v989
      %v1041 = vsel %vm1039, %v1040, %v989
      %v1042 = vshrl.u32 %v1041, 4
      %v1043 = vand.u32 %v1041, 15
      %v1044 = vsub.s32 0, %v1043
      %v1045 = vsel %vm1039, %v1044, %v1043
      %vm1046 = vcmp.lt.s32.totalorder %v990, 0
      %v1047 = vsub.s32 0, %v990
      %v1048 = vsel %vm1046, %v1047, %v990
      %v1049 = vshrl.u32 %v1048, 4
      %v1050 = vand.u32 %v1048, 15
      %v1051 = vsub.s32 0, %v1050
      %v1052 = vsel %vm1046, %v1051, %v1050
      %vm1053 = vcmp.lt.s32.totalorder %v991, 0
      %v1054 = vsub.s32 0, %v991
      %v1055 = vsel %vm1053, %v1054, %v991
      %v1056 = vshrl.u32 %v1055, 4
      %v1057 = vand.u32 %v1055, 15
      %v1058 = vsub.s32 0, %v1057
      %v1059 = vsel %vm1053, %v1058, %v1057
      %vm1060 = vcmp.lt.s32.totalorder %v992, 0
      %v1061 = vsub.s32 0, %v992
      %v1062 = vsel %vm1060, %v1061, %v992
      %v1063 = vshrl.u32 %v1062, 4
      %v1064 = vand.u32 %v1062, 15
      %v1065 = vsub.s32 0, %v1064
      %v1066 = vsel %vm1060, %v1065, %v1064
      %vm1067 = vcmp.lt.s32.totalorder %v993, 0
      %v1068 = vsub.s32 0, %v993
      %v1069 = vsel %vm1067, %v1068, %v993
      %v1070 = vshrl.u32 %v1069, 4
      %v1071 = vand.u32 %v1069, 15
      %v1072 = vsub.s32 0, %v1071
      %v1073 = vsel %vm1067, %v1072, %v1071
      %vm1074 = vcmp.lt.s32.totalorder %v994, 0
      %v1075 = vsub.s32 0, %v994
      %v1076 = vsel %vm1074, %v1075, %v994
      %v1077 = vshrl.u32 %v1076, 4
      %v1078 = vand.u32 %v1076, 15
      %v1079 = vsub.s32 0, %v1078
      %v1080 = vsel %vm1074, %v1079, %v1078
      %vm1081 = vcmp.lt.s32.totalorder %v995, 0
      %v1082 = vsub.s32 0, %v995
      %v1083 = vsel %vm1081, %v1082, %v995
      %v1084 = vshrl.u32 %v1083, 4
      %v1085 = vand.u32 %v1083, 15
      %v1086 = vsub.s32 0, %v1085
      %v1087 = vsel %vm1081, %v1086, %v1085
      %vm1088 = vcmp.lt.s32.totalorder %v996, 0
      %v1089 = vsub.s32 0, %v996
      %v1090 = vsel %vm1088, %v1089, %v996
      %v1091 = vshrl.u32 %v1090, 4
      %v1092 = vand.u32 %v1090, 15
      %v1093 = vsub.s32 0, %v1092
      %v1094 = vsel %vm1088, %v1093, %v1092
      %vm1095 = vcmp.lt.s32.totalorder %v997, 0
      %v1096 = vsub.s32 0, %v997
      %v1097 = vsel %vm1095, %v1096, %v997
      %v1098 = vshrl.u32 %v1097, 4
      %v1099 = vand.u32 %v1097, 15
      %v1100 = vsub.s32 0, %v1099
      %v1101 = vsel %vm1095, %v1100, %v1099
      %vm1102 = vcmp.lt.s32.totalorder %v998, 0
      %v1103 = vsub.s32 0, %v998
      %v1104 = vsel %vm1102, %v1103, %v998
      %v1105 = vshrl.u32 %v1104, 4
      %v1106 = vand.u32 %v1104, 15
      %v1107 = vsub.s32 0, %v1106
      %v1108 = vsel %vm1102, %v1107, %v1106
      %vm1109 = vcmp.lt.s32.totalorder %v999, 0
      %v1110 = vsub.s32 0, %v999
      %v1111 = vsel %vm1109, %v1110, %v999
      %v1112 = vshrl.u32 %v1111, 4
      %v1113 = vand.u32 %v1111, 15
      %v1114 = vsub.s32 0, %v1113
      %v1115 = vsel %vm1109, %v1114, %v1113
      %vm1116 = vcmp.lt.s32.totalorder %v1000, 0
      %v1117 = vsub.s32 0, %v1000
      %v1118 = vsel %vm1116, %v1117, %v1000
      %v1119 = vshrl.u32 %v1118, 4
      %v1120 = vand.u32 %v1118, 15
      %v1121 = vsub.s32 0, %v1120
      %v1122 = vsel %vm1116, %v1121, %v1120
      %vm1123 = vcmp.lt.s32.totalorder %v1001, 0
      %v1124 = vsub.s32 0, %v1001
      %v1125 = vsel %vm1123, %v1124, %v1001
      %v1126 = vshrl.u32 %v1125, 4
      %v1127 = vand.u32 %v1125, 15
      %v1128 = vsub.s32 0, %v1127
      %v1129 = vsel %vm1123, %v1128, %v1127
      %vm1130 = vcmp.lt.s32.totalorder %v1002, 0
      %v1131 = vsub.s32 0, %v1002
      %v1132 = vsel %vm1130, %v1131, %v1002
      %v1133 = vshrl.u32 %v1132, 4
      %v1134 = vand.u32 %v1132, 15
      %v1135 = vsub.s32 0, %v1134
      %v1136 = vsel %vm1130, %v1135, %v1134
      %vm1137 = vcmp.lt.s32.totalorder %v1003, 0
      %v1138 = vsub.s32 0, %v1003
      %v1139 = vsel %vm1137, %v1138, %v1003
      %v1140 = vshrl.u32 %v1139, 4
      %v1141 = vand.u32 %v1139, 15
      %v1142 = vsub.s32 0, %v1141
      %v1143 = vsel %vm1137, %v1142, %v1141
      %vm1144 = vcmp.lt.s32.totalorder %v1004, 0
      %v1145 = vsub.s32 0, %v1004
      %v1146 = vsel %vm1144, %v1145, %v1004
      %v1147 = vshrl.u32 %v1146, 4
      %v1148 = vand.u32 %v1146, 15
      %v1149 = vsub.s32 0, %v1148
      %v1150 = vsel %vm1144, %v1149, %v1148
      %vm1151 = vcmp.lt.s32.totalorder %v1005, 0
      %v1152 = vsub.s32 0, %v1005
      %v1153 = vsel %vm1151, %v1152, %v1005
      %v1154 = vshrl.u32 %v1153, 4
      %v1155 = vand.u32 %v1153, 15
      %v1156 = vsub.s32 0, %v1155
      %v1157 = vsel %vm1151, %v1156, %v1155
      %vm1158 = vcmp.lt.s32.totalorder %v1006, 0
      %v1159 = vsub.s32 0, %v1006
      %v1160 = vsel %vm1158, %v1159, %v1006
      %v1161 = vshrl.u32 %v1160, 4
      %v1162 = vand.u32 %v1160, 15
      %v1163 = vsub.s32 0, %v1162
      %v1164 = vsel %vm1158, %v1163, %v1162
      %vm1165 = vcmp.lt.s32.totalorder %v1007, 0
      %v1166 = vsub.s32 0, %v1007
      %v1167 = vsel %vm1165, %v1166, %v1007
      %v1168 = vshrl.u32 %v1167, 4
      %v1169 = vand.u32 %v1167, 15
      %v1170 = vsub.s32 0, %v1169
      %v1171 = vsel %vm1165, %v1170, %v1169
      %vm1172 = vcmp.lt.s32.totalorder %v1008, 0
      %v1173 = vsub.s32 0, %v1008
      %v1174 = vsel %vm1172, %v1173, %v1008
      %v1175 = vshrl.u32 %v1174, 4
      %v1176 = vand.u32 %v1174, 15
      %v1177 = vsub.s32 0, %v1176
      %v1178 = vsel %vm1172, %v1177, %v1176
      %vm1179 = vcmp.lt.s32.totalorder %v1009, 0
      %v1180 = vsub.s32 0, %v1009
      %v1181 = vsel %vm1179, %v1180, %v1009
      %v1182 = vshrl.u32 %v1181, 4
      %v1183 = vand.u32 %v1181, 15
      %v1184 = vsub.s32 0, %v1183
      %v1185 = vsel %vm1179, %v1184, %v1183
      %vm1186 = vcmp.lt.s32.totalorder %v1010, 0
      %v1187 = vsub.s32 0, %v1010
      %v1188 = vsel %vm1186, %v1187, %v1010
      %v1189 = vshrl.u32 %v1188, 4
      %v1190 = vand.u32 %v1188, 15
      %v1191 = vsub.s32 0, %v1190
      %v1192 = vsel %vm1186, %v1191, %v1190
      %vm1193 = vcmp.lt.s32.totalorder %v1011, 0
      %v1194 = vsub.s32 0, %v1011
      %v1195 = vsel %vm1193, %v1194, %v1011
      %v1196 = vshrl.u32 %v1195, 4
      %v1197 = vand.u32 %v1195, 15
      %v1198 = vsub.s32 0, %v1197
      %v1199 = vsel %vm1193, %v1198, %v1197
      %vm1200 = vcmp.lt.s32.totalorder %v1012, 0
      %v1201 = vsub.s32 0, %v1012
      %v1202 = vsel %vm1200, %v1201, %v1012
      %v1203 = vshrl.u32 %v1202, 4
      %v1204 = vand.u32 %v1202, 15
      %v1205 = vsub.s32 0, %v1204
      %v1206 = vsel %vm1200, %v1205, %v1204
      %vm1207 = vcmp.lt.s32.totalorder %v1013, 0
      %v1208 = vsub.s32 0, %v1013
      %v1209 = vsel %vm1207, %v1208, %v1013
      %v1210 = vshrl.u32 %v1209, 4
      %v1211 = vand.u32 %v1209, 15
      %v1212 = vsub.s32 0, %v1211
      %v1213 = vsel %vm1207, %v1212, %v1211
      %vm1214 = vcmp.lt.s32.totalorder %v1014, 0
      %v1215 = vsub.s32 0, %v1014
      %v1216 = vsel %vm1214, %v1215, %v1014
      %v1217 = vshrl.u32 %v1216, 4
      %v1218 = vand.u32 %v1216, 15
      %v1219 = vsub.s32 0, %v1218
      %v1220 = vsel %vm1214, %v1219, %v1218
      %vm1221 = vcmp.lt.s32.totalorder %v1015, 0
      %v1222 = vsub.s32 0, %v1015
      %v1223 = vsel %vm1221, %v1222, %v1015
      %v1224 = vshrl.u32 %v1223, 4
      %v1225 = vand.u32 %v1223, 15
      %v1226 = vsub.s32 0, %v1225
      %v1227 = vsel %vm1221, %v1226, %v1225
      %vm1228 = vcmp.lt.s32.totalorder %v1016, 0
      %v1229 = vsub.s32 0, %v1016
      %v1230 = vsel %vm1228, %v1229, %v1016
      %v1231 = vshrl.u32 %v1230, 4
      %v1232 = vand.u32 %v1230, 15
      %v1233 = vsub.s32 0, %v1232
      %v1234 = vsel %vm1228, %v1233, %v1232
      %vm1235 = vcmp.lt.s32.totalorder %v1017, 0
      %v1236 = vsub.s32 0, %v1017
      %v1237 = vsel %vm1235, %v1236, %v1017
      %v1238 = vshrl.u32 %v1237, 4
      %v1239 = vand.u32 %v1237, 15
      %v1240 = vsub.s32 0, %v1239
      %v1241 = vsel %vm1235, %v1240, %v1239
      %vm1242 = vcmp.ne.s32.totalorder %v1024, 0
      %vm1243 = vcmp.ne.s32.totalorder %v1031, 0
      %vm1244 = vcmp.ne.s32.totalorder %v1038, 0
      %vm1245 = vcmp.ne.s32.totalorder %v1045, 0
      %vm1246 = vcmp.ne.s32.totalorder %v1052, 0
      %vm1247 = vcmp.ne.s32.totalorder %v1059, 0
      %vm1248 = vcmp.ne.s32.totalorder %v1066, 0
      %vm1249 = vcmp.ne.s32.totalorder %v1073, 0
      %vm1250 = vcmp.ne.s32.totalorder %v1080, 0
      %vm1251 = vcmp.ne.s32.totalorder %v1087, 0
      %vm1252 = vcmp.ne.s32.totalorder %v1094, 0
      %vm1253 = vcmp.ne.s32.totalorder %v1101, 0
      %vm1254 = vcmp.ne.s32.totalorder %v1108, 0
      %vm1255 = vcmp.ne.s32.totalorder %v1115, 0
      %vm1256 = vcmp.ne.s32.totalorder %v1122, 0
      %vm1257 = vcmp.ne.s32.totalorder %v1129, 0
      %vm1258 = vcmp.ne.s32.totalorder %v1136, 0
      %vm1259 = vcmp.ne.s32.totalorder %v1143, 0
      %vm1260 = vcmp.ne.s32.totalorder %v1150, 0
      %vm1261 = vcmp.ne.s32.totalorder %v1157, 0
      %vm1262 = vcmp.ne.s32.totalorder %v1164, 0
      %vm1263 = vcmp.ne.s32.totalorder %v1171, 0
      %vm1264 = vcmp.ne.s32.totalorder %v1178, 0
      %vm1265 = vcmp.ne.s32.totalorder %v1185, 0
      %vm1266 = vcmp.ne.s32.totalorder %v1192, 0
      %vm1267 = vcmp.ne.s32.totalorder %v1199, 0
      %vm1268 = vcmp.ne.s32.totalorder %v1206, 0
      %vm1269 = vcmp.ne.s32.totalorder %v1213, 0
      %vm1270 = vcmp.ne.s32.totalorder %v1220, 0
      %vm1271 = vcmp.ne.s32.totalorder %v1227, 0
      %vm1272 = vcmp.ne.s32.totalorder %v1234, 0
      %vm1273 = vcmp.ne.s32.totalorder %v1241, 0
      %vm1274 = vcmp.lt.s32.totalorder %v1024, 0
      %vm1275 = vcmp.lt.s32.totalorder %v1031, 0
      %vm1276 = vcmp.lt.s32.totalorder %v1038, 0
      %vm1277 = vcmp.lt.s32.totalorder %v1045, 0
      %vm1278 = vcmp.lt.s32.totalorder %v1052, 0
      %vm1279 = vcmp.lt.s32.totalorder %v1059, 0
      %vm1280 = vcmp.lt.s32.totalorder %v1066, 0
      %vm1281 = vcmp.lt.s32.totalorder %v1073, 0
      %vm1282 = vcmp.lt.s32.totalorder %v1080, 0
      %vm1283 = vcmp.lt.s32.totalorder %v1087, 0
      %vm1284 = vcmp.lt.s32.totalorder %v1094, 0
      %vm1285 = vcmp.lt.s32.totalorder %v1101, 0
      %vm1286 = vcmp.lt.s32.totalorder %v1108, 0
      %vm1287 = vcmp.lt.s32.totalorder %v1115, 0
      %vm1288 = vcmp.lt.s32.totalorder %v1122, 0
      %vm1289 = vcmp.lt.s32.totalorder %v1129, 0
      %vm1290 = vcmp.lt.s32.totalorder %v1136, 0
      %vm1291 = vcmp.lt.s32.totalorder %v1143, 0
      %vm1292 = vcmp.lt.s32.totalorder %v1150, 0
      %vm1293 = vcmp.lt.s32.totalorder %v1157, 0
      %vm1294 = vcmp.lt.s32.totalorder %v1164, 0
      %vm1295 = vcmp.lt.s32.totalorder %v1171, 0
      %vm1296 = vcmp.lt.s32.totalorder %v1178, 0
      %vm1297 = vcmp.lt.s32.totalorder %v1185, 0
      %vm1298 = vcmp.lt.s32.totalorder %v1192, 0
      %vm1299 = vcmp.lt.s32.totalorder %v1199, 0
      %vm1300 = vcmp.lt.s32.totalorder %v1206, 0
      %vm1301 = vcmp.lt.s32.totalorder %v1213, 0
      %vm1302 = vcmp.lt.s32.totalorder %v1220, 0
      %vm1303 = vcmp.lt.s32.totalorder %v1227, 0
      %vm1304 = vcmp.lt.s32.totalorder %v1234, 0
      %vm1305 = vcmp.lt.s32.totalorder %v1241, 0
      %vm1306 = vmand %vm1274, %vm1242
      %vm1307 = vmand %vm1275, %vm1243
      %vm1308 = vmand %vm1276, %vm1244
      %vm1309 = vmand %vm1277, %vm1245
      %vm1310 = vmand %vm1278, %vm1246
      %vm1311 = vmand %vm1279, %vm1247
      %vm1312 = vmand %vm1280, %vm1248
      %vm1313 = vmand %vm1281, %vm1249
      %vm1314 = vmand %vm1282, %vm1250
      %vm1315 = vmand %vm1283, %vm1251
      %vm1316 = vmand %vm1284, %vm1252
      %vm1317 = vmand %vm1285, %vm1253
      %vm1318 = vmand %vm1286, %vm1254
      %vm1319 = vmand %vm1287, %vm1255
      %vm1320 = vmand %vm1288, %vm1256
      %vm1321 = vmand %vm1289, %vm1257
      %vm1322 = vmand %vm1290, %vm1258
      %vm1323 = vmand %vm1291, %vm1259
      %vm1324 = vmand %vm1292, %vm1260
      %vm1325 = vmand %vm1293, %vm1261
      %vm1326 = vmand %vm1294, %vm1262
      %vm1327 = vmand %vm1295, %vm1263
      %vm1328 = vmand %vm1296, %vm1264
      %vm1329 = vmand %vm1297, %vm1265
      %vm1330 = vmand %vm1298, %vm1266
      %vm1331 = vmand %vm1299, %vm1267
      %vm1332 = vmand %vm1300, %vm1268
      %vm1333 = vmand %vm1301, %vm1269
      %vm1334 = vmand %vm1302, %vm1270
      %vm1335 = vmand %vm1303, %vm1271
      %vm1336 = vmand %vm1304, %vm1272
      %vm1337 = vmand %vm1305, %vm1273
      %v1338 = vadd.s32 %v1024, 16
      %v1339 = vadd.s32 %v1031, 16
      %v1340 = vadd.s32 %v1038, 16
      %v1341 = vadd.s32 %v1045, 16
      %v1342 = vadd.s32 %v1052, 16
      %v1343 = vadd.s32 %v1059, 16
      %v1344 = vadd.s32 %v1066, 16
      %v1345 = vadd.s32 %v1073, 16
      %v1346 = vadd.s32 %v1080, 16
      %v1347 = vadd.s32 %v1087, 16
      %v1348 = vadd.s32 %v1094, 16
      %v1349 = vadd.s32 %v1101, 16
      %v1350 = vadd.s32 %v1108, 16
      %v1351 = vadd.s32 %v1115, 16
      %v1352 = vadd.s32 %v1122, 16
      %v1353 = vadd.s32 %v1129, 16
      %v1354 = vadd.s32 %v1136, 16
      %v1355 = vadd.s32 %v1143, 16
      %v1356 = vadd.s32 %v1150, 16
      %v1357 = vadd.s32 %v1157, 16
      %v1358 = vadd.s32 %v1164, 16
      %v1359 = vadd.s32 %v1171, 16
      %v1360 = vadd.s32 %v1178, 16
      %v1361 = vadd.s32 %v1185, 16
      %v1362 = vadd.s32 %v1192, 16
      %v1363 = vadd.s32 %v1199, 16
      %v1364 = vadd.s32 %v1206, 16
      %v1365 = vadd.s32 %v1213, 16
      %v1366 = vadd.s32 %v1220, 16
      %v1367 = vadd.s32 %v1227, 16
      %v1368 = vadd.s32 %v1234, 16
      %v1369 = vadd.s32 %v1241, 16
      %v1370 = vsel %vm1306, %v1338, %v1024
      %v1371 = vsel %vm1307, %v1339, %v1031
      %v1372 = vsel %vm1308, %v1340, %v1038
      %v1373 = vsel %vm1309, %v1341, %v1045
      %v1374 = vsel %vm1310, %v1342, %v1052
      %v1375 = vsel %vm1311, %v1343, %v1059
      %v1376 = vsel %vm1312, %v1344, %v1066
      %v1377 = vsel %vm1313, %v1345, %v1073
      %v1378 = vsel %vm1314, %v1346, %v1080
      %v1379 = vsel %vm1315, %v1347, %v1087
      %v1380 = vsel %vm1316, %v1348, %v1094
      %v1381 = vsel %vm1317, %v1349, %v1101
      %v1382 = vsel %vm1318, %v1350, %v1108
      %v1383 = vsel %vm1319, %v1351, %v1115
      %v1384 = vsel %vm1320, %v1352, %v1122
      %v1385 = vsel %vm1321, %v1353, %v1129
      %v1386 = vsel %vm1322, %v1354, %v1136
      %v1387 = vsel %vm1323, %v1355, %v1143
      %v1388 = vsel %vm1324, %v1356, %v1150
      %v1389 = vsel %vm1325, %v1357, %v1157
      %v1390 = vsel %vm1326, %v1358, %v1164
      %v1391 = vsel %vm1327, %v1359, %v1171
      %v1392 = vsel %vm1328, %v1360, %v1178
      %v1393 = vsel %vm1329, %v1361, %v1185
      %v1394 = vsel %vm1330, %v1362, %v1192
      %v1395 = vsel %vm1331, %v1363, %v1199
      %v1396 = vsel %vm1332, %v1364, %v1206
      %v1397 = vsel %vm1333, %v1365, %v1213
      %v1398 = vsel %vm1334, %v1366, %v1220
      %v1399 = vsel %vm1335, %v1367, %v1227
      %v1400 = vsel %vm1336, %v1368, %v1234
      %v1401 = vsel %vm1337, %v1369, %v1241
      %vm1402 = vcmp.ne.s32.totalorder %v1370, 0
      %vm1403 = vcmp.ne.s32.totalorder %v1371, 0
      %vm1404 = vcmp.ne.s32.totalorder %v1372, 0
      %vm1405 = vcmp.ne.s32.totalorder %v1373, 0
      %vm1406 = vcmp.ne.s32.totalorder %v1374, 0
      %vm1407 = vcmp.ne.s32.totalorder %v1375, 0
      %vm1408 = vcmp.ne.s32.totalorder %v1376, 0
      %vm1409 = vcmp.ne.s32.totalorder %v1377, 0
      %vm1410 = vcmp.ne.s32.totalorder %v1378, 0
      %vm1411 = vcmp.ne.s32.totalorder %v1379, 0
      %vm1412 = vcmp.ne.s32.totalorder %v1380, 0
      %vm1413 = vcmp.ne.s32.totalorder %v1381, 0
      %vm1414 = vcmp.ne.s32.totalorder %v1382, 0
      %vm1415 = vcmp.ne.s32.totalorder %v1383, 0
      %vm1416 = vcmp.ne.s32.totalorder %v1384, 0
      %vm1417 = vcmp.ne.s32.totalorder %v1385, 0
      %vm1418 = vcmp.ne.s32.totalorder %v1386, 0
      %vm1419 = vcmp.ne.s32.totalorder %v1387, 0
      %vm1420 = vcmp.ne.s32.totalorder %v1388, 0
      %vm1421 = vcmp.ne.s32.totalorder %v1389, 0
      %vm1422 = vcmp.ne.s32.totalorder %v1390, 0
      %vm1423 = vcmp.ne.s32.totalorder %v1391, 0
      %vm1424 = vcmp.ne.s32.totalorder %v1392, 0
      %vm1425 = vcmp.ne.s32.totalorder %v1393, 0
      %vm1426 = vcmp.ne.s32.totalorder %v1394, 0
      %vm1427 = vcmp.ne.s32.totalorder %v1395, 0
      %vm1428 = vcmp.ne.s32.totalorder %v1396, 0
      %vm1429 = vcmp.ne.s32.totalorder %v1397, 0
      %vm1430 = vcmp.ne.s32.totalorder %v1398, 0
      %vm1431 = vcmp.ne.s32.totalorder %v1399, 0
      %vm1432 = vcmp.ne.s32.totalorder %v1400, 0
      %vm1433 = vcmp.ne.s32.totalorder %v1401, 0
      %vm1434 = vcmp.ne.s32.totalorder %v1370, 15
      %vm1435 = vcmp.ne.s32.totalorder %v1371, 15
      %vm1436 = vcmp.ne.s32.totalorder %v1372, 15
      %vm1437 = vcmp.ne.s32.totalorder %v1373, 15
      %vm1438 = vcmp.ne.s32.totalorder %v1374, 15
      %vm1439 = vcmp.ne.s32.totalorder %v1375, 15
      %vm1440 = vcmp.ne.s32.totalorder %v1376, 15
      %vm1441 = vcmp.ne.s32.totalorder %v1377, 15
      %vm1442 = vcmp.ne.s32.totalorder %v1378, 15
      %vm1443 = vcmp.ne.s32.totalorder %v1379, 15
      %vm1444 = vcmp.ne.s32.totalorder %v1380, 15
      %vm1445 = vcmp.ne.s32.totalorder %v1381, 15
      %vm1446 = vcmp.ne.s32.totalorder %v1382, 15
      %vm1447 = vcmp.ne.s32.totalorder %v1383, 15
      %vm1448 = vcmp.ne.s32.totalorder %v1384, 15
      %vm1449 = vcmp.ne.s32.totalorder %v1385, 15
      %vm1450 = vcmp.ne.s32.totalorder %v1386, 15
      %vm1451 = vcmp.ne.s32.totalorder %v1387, 15
      %vm1452 = vcmp.ne.s32.totalorder %v1388, 15
      %vm1453 = vcmp.ne.s32.totalorder %v1389, 15
      %vm1454 = vcmp.ne.s32.totalorder %v1390, 15
      %vm1455 = vcmp.ne.s32.totalorder %v1391, 15
      %vm1456 = vcmp.ne.s32.totalorder %v1392, 15
      %vm1457 = vcmp.ne.s32.totalorder %v1393, 15
      %vm1458 = vcmp.ne.s32.totalorder %v1394, 15
      %vm1459 = vcmp.ne.s32.totalorder %v1395, 15
      %vm1460 = vcmp.ne.s32.totalorder %v1396, 15
      %vm1461 = vcmp.ne.s32.totalorder %v1397, 15
      %vm1462 = vcmp.ne.s32.totalorder %v1398, 15
      %vm1463 = vcmp.ne.s32.totalorder %v1399, 15
      %vm1464 = vcmp.ne.s32.totalorder %v1400, 15
      %vm1465 = vcmp.ne.s32.totalorder %v1401, 15
      %v1466 = vld [vmem:[#allocation2] sm:$0xf]
      %v1467 = vld [vmem:[#allocation2 + $0x4] sm:$0xf]
      %v1468 = vld [vmem:[#allocation2 + $0x8] sm:$0xf]
      %v1469 = vld [vmem:[#allocation2 + $0xc] sm:$0xf]
      %v1470 = vld [vmem:[#allocation2 + $0x10] sm:$0xf]
      %v1471 = vld [vmem:[#allocation2 + $0x14] sm:$0xf]
      %v1472 = vld [vmem:[#allocation2 + $0x18] sm:$0xf]
      %v1473 = vld [vmem:[#allocation2 + $0x1c] sm:$0xf]
      %v1474 = vld [vmem:[#allocation2 + $0x20] sm:$0xf]
      %v1475 = vld [vmem:[#allocation2 + $0x24] sm:$0xf]
      %v1476 = vld [vmem:[#allocation2 + $0x28] sm:$0xf]
      %v1477 = vld [vmem:[#allocation2 + $0x2c] sm:$0xf]
      %v1478 = vld [vmem:[#allocation2 + $0x30] sm:$0xf]
      %v1479 = vld [vmem:[#allocation2 + $0x34] sm:$0xf]
      %v1480 = vld [vmem:[#allocation2 + $0x38] sm:$0xf]
      %v1481 = vld [vmem:[#allocation2 + $0x3c] sm:$0xf]
      %v1482 = vld [vmem:[#allocation2 + $0x40] sm:$0xf]
      %v1483 = vld [vmem:[#allocation2 + $0x44] sm:$0xf]
      %v1484 = vld [vmem:[#allocation2 + $0x48] sm:$0xf]
      %v1485 = vld [vmem:[#allocation2 + $0x4c] sm:$0xf]
      %v1486 = vld [vmem:[#allocation2 + $0x50] sm:$0xf]
      %v1487 = vld [vmem:[#allocation2 + $0x54] sm:$0xf]
      %v1488 = vld [vmem:[#allocation2 + $0x58] sm:$0xf]
      %v1489 = vld [vmem:[#allocation2 + $0x5c] sm:$0xf]
      %v1490 = vld [vmem:[#allocation2 + $0x60] sm:$0xf]
      %v1491 = vld [vmem:[#allocation2 + $0x64] sm:$0xf]
      %v1492 = vld [vmem:[#allocation2 + $0x68] sm:$0xf]
      %v1493 = vld [vmem:[#allocation2 + $0x6c] sm:$0xf]
      %v1494 = vld [vmem:[#allocation2 + $0x70] sm:$0xf]
      %v1495 = vld [vmem:[#allocation2 + $0x74] sm:$0xf]
      %v1496 = vld [vmem:[#allocation2 + $0x78] sm:$0xf]
      %v1497 = vld [vmem:[#allocation2 + $0x7c] sm:$0xf]
      %v1498 = vld [vmem:[#allocation2 + $0x80] sm:$0xf]
      %v1499 = vld [vmem:[#allocation2 + $0x84] sm:$0xf]
      %v1500 = vld [vmem:[#allocation2 + $0x88] sm:$0xf]
      %v1501 = vld [vmem:[#allocation2 + $0x8c] sm:$0xf]
      %v1534 = vunpack.c.l.b16 %v1466
      %v1535 = vunpack.c.l.b16 %v1467
      %v1536 = vunpack.c.l.b16 %v1468
      %v1537 = vunpack.c.l.b16 %v1469
      %v1538 = vunpack.c.l.b16 %v1470
      %v1539 = vunpack.c.l.b16 %v1471
      %v1540 = vunpack.c.l.b16 %v1472
      %v1541 = vunpack.c.l.b16 %v1473
      %v1542 = vunpack.c.l.b16 %v1474
      %v1543 = vunpack.c.l.b16 %v1475
      %v1544 = vunpack.c.l.b16 %v1476
      %v1545 = vunpack.c.l.b16 %v1477
      %v1546 = vunpack.c.l.b16 %v1478
      %v1547 = vunpack.c.l.b16 %v1479
      %v1548 = vunpack.c.l.b16 %v1480
      %v1549 = vunpack.c.l.b16 %v1481
      %v1550 = vunpack.c.l.b16 %v1482
      %v1551 = vunpack.c.l.b16 %v1483
      %v1552 = vunpack.c.l.b16 %v1484
      %v1553 = vunpack.c.l.b16 %v1485
      %v1554 = vunpack.c.l.b16 %v1486
      %v1555 = vunpack.c.l.b16 %v1487
      %v1556 = vunpack.c.l.b16 %v1488
      %v1557 = vunpack.c.l.b16 %v1489
      %v1558 = vunpack.c.l.b16 %v1490
      %v1559 = vunpack.c.l.b16 %v1491
      %v1560 = vunpack.c.l.b16 %v1492
      %v1561 = vunpack.c.l.b16 %v1493
      %v1562 = vunpack.c.l.b16 %v1494
      %v1563 = vunpack.c.l.b16 %v1495
      %v1564 = vunpack.c.l.b16 %v1496
      %v1565 = vunpack.c.l.b16 %v1497
      %v1566 = vpack.c.b16 %v1535, %v1534
      %v1567 = vpack.c.b16 %v1537, %v1536
      %v1568 = vpack.c.b16 %v1539, %v1538
      %v1569 = vpack.c.b16 %v1541, %v1540
      %v1570 = vpack.c.b16 %v1543, %v1542
      %v1571 = vpack.c.b16 %v1545, %v1544
      %v1572 = vpack.c.b16 %v1547, %v1546
      %v1573 = vpack.c.b16 %v1549, %v1548
      %v1574 = vpack.c.b16 %v1551, %v1550
      %v1575 = vpack.c.b16 %v1553, %v1552
      %v1576 = vpack.c.b16 %v1555, %v1554
      %v1577 = vpack.c.b16 %v1557, %v1556
      %v1578 = vpack.c.b16 %v1559, %v1558
      %v1579 = vpack.c.b16 %v1561, %v1560
      %v1580 = vpack.c.b16 %v1563, %v1562
      %v1581 = vpack.c.b16 %v1565, %v1564
      %v1584 = vunpack.c.l.b16 %v1498
      %v1585 = vunpack.c.l.b16 %v1499
      %v1586 = vpack.c.b16 %v1585, %v1584
      %1587 = vrot.lane.b32.xlu0 %v1567, 4
      %v1588 = vpop.permute.xlu0 %1587
      %1589 = vrot.lane.b32.xlu0 %v1568, 4
      %v1590 = vpop.permute.xlu0 %1589
      %1591 = vrot.lane.b32.xlu0 %v1569, 4
      %v1592 = vpop.permute.xlu0 %1591
      %1593 = vrot.lane.b32.xlu0 %v1570, 4
      %v1594 = vpop.permute.xlu0 %1593
      %1595 = vrot.lane.b32.xlu0 %v1571, 4
      %v1596 = vpop.permute.xlu0 %1595
      %1597 = vrot.lane.b32.xlu0 %v1572, 4
      %v1598 = vpop.permute.xlu0 %1597
      %1599 = vrot.lane.b32.xlu0 %v1573, 4
      %v1600 = vpop.permute.xlu0 %1599
      %1601 = vrot.lane.b32.xlu0 %v1574, 4
      %v1602 = vpop.permute.xlu0 %1601
      %1603 = vrot.lane.b32.xlu0 %v1575, 4
      %v1604 = vpop.permute.xlu0 %1603
      %1605 = vrot.lane.b32.xlu0 %v1576, 4
      %v1606 = vpop.permute.xlu0 %1605
      %1607 = vrot.lane.b32.xlu0 %v1577, 4
      %v1608 = vpop.permute.xlu0 %1607
      %1609 = vrot.lane.b32.xlu0 %v1578, 4
      %v1610 = vpop.permute.xlu0 %1609
      %1611 = vrot.lane.b32.xlu0 %v1579, 4
      %v1612 = vpop.permute.xlu0 %1611
      %1613 = vrot.lane.b32.xlu0 %v1580, 4
      %v1614 = vpop.permute.xlu0 %1613
      %1615 = vrot.lane.b32.xlu0 %v1581, 4
      %v1616 = vpop.permute.xlu0 %1615
      %1617 = vrot.lane.b32.xlu0 %v1586, 4
      %v1618 = vpop.permute.xlu0 %1617
      %v1621 = vunpack.c.l.b16 %v1500
      %v1622 = vunpack.c.l.b16 %v1501
      %v1623 = vpack.c.b16 %v1622, %v1621
      %1624 = vrot.lane.b32.xlu0 %v1568, 8
      %v1625 = vpop.permute.xlu0 %1624
      %1626 = vrot.lane.b32.xlu0 %v1569, 8
      %v1627 = vpop.permute.xlu0 %1626
      %1628 = vrot.lane.b32.xlu0 %v1570, 8
      %v1629 = vpop.permute.xlu0 %1628
      %1630 = vrot.lane.b32.xlu0 %v1571, 8
      %v1631 = vpop.permute.xlu0 %1630
      %1632 = vrot.lane.b32.xlu0 %v1572, 8
      %v1633 = vpop.permute.xlu0 %1632
      %1634 = vrot.lane.b32.xlu0 %v1573, 8
      %v1635 = vpop.permute.xlu0 %1634
      %1636 = vrot.lane.b32.xlu0 %v1574, 8
      %v1637 = vpop.permute.xlu0 %1636
      %1638 = vrot.lane.b32.xlu0 %v1575, 8
      %v1639 = vpop.permute.xlu0 %1638
      %1640 = vrot.lane.b32.xlu0 %v1576, 8
      %v1641 = vpop.permute.xlu0 %1640
      %1642 = vrot.lane.b32.xlu0 %v1577, 8
      %v1643 = vpop.permute.xlu0 %1642
      %1644 = vrot.lane.b32.xlu0 %v1578, 8
      %v1645 = vpop.permute.xlu0 %1644
      %1646 = vrot.lane.b32.xlu0 %v1579, 8
      %v1647 = vpop.permute.xlu0 %1646
      %1648 = vrot.lane.b32.xlu0 %v1580, 8
      %v1649 = vpop.permute.xlu0 %1648
      %1650 = vrot.lane.b32.xlu0 %v1581, 8
      %v1651 = vpop.permute.xlu0 %1650
      %1652 = vrot.lane.b32.xlu0 %v1586, 8
      %v1653 = vpop.permute.xlu0 %1652
      %1654 = vrot.lane.b32.xlu0 %v1623, 8
      %v1655 = vpop.permute.xlu0 %1654
      %vm1656 = vcmask 31744
      %v1659 = vsel %vm1656, %v1566, %v1588
      %v1662 = vsel %vm1656, %v1567, %v1590
      %v1665 = vsel %vm1656, %v1568, %v1592
      %v1668 = vsel %vm1656, %v1569, %v1594
      %v1671 = vsel %vm1656, %v1570, %v1596
      %v1674 = vsel %vm1656, %v1571, %v1598
      %v1677 = vsel %vm1656, %v1572, %v1600
      %v1680 = vsel %vm1656, %v1573, %v1602
      %v1683 = vsel %vm1656, %v1574, %v1604
      %v1686 = vsel %vm1656, %v1575, %v1606
      %v1689 = vsel %vm1656, %v1576, %v1608
      %v1692 = vsel %vm1656, %v1577, %v1610
      %v1695 = vsel %vm1656, %v1578, %v1612
      %v1698 = vsel %vm1656, %v1579, %v1614
      %v1701 = vsel %vm1656, %v1580, %v1616
      %v1704 = vsel %vm1656, %v1581, %v1618
      %vm1705 = vcmask 64512
      %v1707 = vsel %vm1705, %v1659, %v1625
      %v1710 = vsel %vm1705, %v1662, %v1627
      %v1713 = vsel %vm1705, %v1665, %v1629
      %v1716 = vsel %vm1705, %v1668, %v1631
      %v1719 = vsel %vm1705, %v1671, %v1633
      %v1722 = vsel %vm1705, %v1674, %v1635
      %v1725 = vsel %vm1705, %v1677, %v1637
      %v1728 = vsel %vm1705, %v1680, %v1639
      %v1731 = vsel %vm1705, %v1683, %v1641
      %v1734 = vsel %vm1705, %v1686, %v1643
      %v1737 = vsel %vm1705, %v1689, %v1645
      %v1740 = vsel %vm1705, %v1692, %v1647
      %v1743 = vsel %vm1705, %v1695, %v1649
      %v1746 = vsel %vm1705, %v1698, %v1651
      %v1749 = vsel %vm1705, %v1701, %v1653
      %v1752 = vsel %vm1705, %v1704, %v1655
      %v1754 = vsel %vm1402, 1, 0
      %v1755 = vsel %vm1403, 1, 0
      %v1756 = vsel %vm1404, 1, 0
      %v1757 = vsel %vm1405, 1, 0
      %v1758 = vsel %vm1406, 1, 0
      %v1759 = vsel %vm1407, 1, 0
      %v1760 = vsel %vm1408, 1, 0
      %v1761 = vsel %vm1409, 1, 0
      %v1762 = vsel %vm1410, 1, 0
      %v1763 = vsel %vm1411, 1, 0
      %v1764 = vsel %vm1412, 1, 0
      %v1765 = vsel %vm1413, 1, 0
      %v1766 = vsel %vm1414, 1, 0
      %v1767 = vsel %vm1415, 1, 0
      %v1768 = vsel %vm1416, 1, 0
      %v1769 = vsel %vm1417, 1, 0
      %v1770 = vsel %vm1418, 1, 0
      %v1771 = vsel %vm1419, 1, 0
      %v1772 = vsel %vm1420, 1, 0
      %v1773 = vsel %vm1421, 1, 0
      %v1774 = vsel %vm1422, 1, 0
      %v1775 = vsel %vm1423, 1, 0
      %v1776 = vsel %vm1424, 1, 0
      %v1777 = vsel %vm1425, 1, 0
      %v1778 = vsel %vm1426, 1, 0
      %v1779 = vsel %vm1427, 1, 0
      %v1780 = vsel %vm1428, 1, 0
      %v1781 = vsel %vm1429, 1, 0
      %v1782 = vsel %vm1430, 1, 0
      %v1783 = vsel %vm1431, 1, 0
      %v1784 = vsel %vm1432, 1, 0
      %v1785 = vsel %vm1433, 1, 0
      %vm1786 = vcmp.eq.s32.totalorder %v1754, 1
      %vm1787 = vcmp.eq.s32.totalorder %v1755, 1
      %vm1788 = vcmp.eq.s32.totalorder %v1756, 1
      %vm1789 = vcmp.eq.s32.totalorder %v1757, 1
      %vm1790 = vcmp.eq.s32.totalorder %v1758, 1
      %vm1791 = vcmp.eq.s32.totalorder %v1759, 1
      %vm1792 = vcmp.eq.s32.totalorder %v1760, 1
      %vm1793 = vcmp.eq.s32.totalorder %v1761, 1
      %vm1794 = vcmp.eq.s32.totalorder %v1762, 1
      %vm1795 = vcmp.eq.s32.totalorder %v1763, 1
      %vm1796 = vcmp.eq.s32.totalorder %v1764, 1
      %vm1797 = vcmp.eq.s32.totalorder %v1765, 1
      %vm1798 = vcmp.eq.s32.totalorder %v1766, 1
      %vm1799 = vcmp.eq.s32.totalorder %v1767, 1
      %vm1800 = vcmp.eq.s32.totalorder %v1768, 1
      %vm1801 = vcmp.eq.s32.totalorder %v1769, 1
      %vm1802 = vcmp.eq.s32.totalorder %v1770, 1
      %vm1803 = vcmp.eq.s32.totalorder %v1771, 1
      %vm1804 = vcmp.eq.s32.totalorder %v1772, 1
      %vm1805 = vcmp.eq.s32.totalorder %v1773, 1
      %vm1806 = vcmp.eq.s32.totalorder %v1774, 1
      %vm1807 = vcmp.eq.s32.totalorder %v1775, 1
      %vm1808 = vcmp.eq.s32.totalorder %v1776, 1
      %vm1809 = vcmp.eq.s32.totalorder %v1777, 1
      %vm1810 = vcmp.eq.s32.totalorder %v1778, 1
      %vm1811 = vcmp.eq.s32.totalorder %v1779, 1
      %vm1812 = vcmp.eq.s32.totalorder %v1780, 1
      %vm1813 = vcmp.eq.s32.totalorder %v1781, 1
      %vm1814 = vcmp.eq.s32.totalorder %v1782, 1
      %vm1815 = vcmp.eq.s32.totalorder %v1783, 1
      %vm1816 = vcmp.eq.s32.totalorder %v1784, 1
      %vm1817 = vcmp.eq.s32.totalorder %v1785, 1
      %vm1818 = vmpackc.low %vm1786, %vm1786
      %vm1819 = vmpackc.low %vm1787, %vm1787
      %vm1820 = vmpackc.low %vm1788, %vm1788
      %vm1821 = vmpackc.low %vm1789, %vm1789
      %vm1822 = vmpackc.low %vm1790, %vm1790
      %vm1823 = vmpackc.low %vm1791, %vm1791
      %vm1824 = vmpackc.low %vm1792, %vm1792
      %vm1825 = vmpackc.low %vm1793, %vm1793
      %vm1826 = vmpackc.low %vm1794, %vm1794
      %vm1827 = vmpackc.low %vm1795, %vm1795
      %vm1828 = vmpackc.low %vm1796, %vm1796
      %vm1829 = vmpackc.low %vm1797, %vm1797
      %vm1830 = vmpackc.low %vm1798, %vm1798
      %vm1831 = vmpackc.low %vm1799, %vm1799
      %vm1832 = vmpackc.low %vm1800, %vm1800
      %vm1833 = vmpackc.low %vm1801, %vm1801
      %vm1834 = vmpackc.low %vm1802, %vm1802
      %vm1835 = vmpackc.low %vm1803, %vm1803
      %vm1836 = vmpackc.low %vm1804, %vm1804
      %vm1837 = vmpackc.low %vm1805, %vm1805
      %vm1838 = vmpackc.low %vm1806, %vm1806
      %vm1839 = vmpackc.low %vm1807, %vm1807
      %vm1840 = vmpackc.low %vm1808, %vm1808
      %vm1841 = vmpackc.low %vm1809, %vm1809
      %vm1842 = vmpackc.low %vm1810, %vm1810
      %vm1843 = vmpackc.low %vm1811, %vm1811
      %vm1844 = vmpackc.low %vm1812, %vm1812
      %vm1845 = vmpackc.low %vm1813, %vm1813
      %vm1846 = vmpackc.low %vm1814, %vm1814
      %vm1847 = vmpackc.low %vm1815, %vm1815
      %vm1848 = vmpackc.low %vm1816, %vm1816
      %vm1849 = vmpackc.low %vm1817, %vm1817
      %v1850 = vsel %vm1818, 65537, 0
      %v1851 = vsel %vm1819, 65537, 0
      %v1852 = vsel %vm1820, 65537, 0
      %v1853 = vsel %vm1821, 65537, 0
      %v1854 = vsel %vm1822, 65537, 0
      %v1855 = vsel %vm1823, 65537, 0
      %v1856 = vsel %vm1824, 65537, 0
      %v1857 = vsel %vm1825, 65537, 0
      %v1858 = vsel %vm1826, 65537, 0
      %v1859 = vsel %vm1827, 65537, 0
      %v1860 = vsel %vm1828, 65537, 0
      %v1861 = vsel %vm1829, 65537, 0
      %v1862 = vsel %vm1830, 65537, 0
      %v1863 = vsel %vm1831, 65537, 0
      %v1864 = vsel %vm1832, 65537, 0
      %v1865 = vsel %vm1833, 65537, 0
      %v1866 = vsel %vm1834, 65537, 0
      %v1867 = vsel %vm1835, 65537, 0
      %v1868 = vsel %vm1836, 65537, 0
      %v1869 = vsel %vm1837, 65537, 0
      %v1870 = vsel %vm1838, 65537, 0
      %v1871 = vsel %vm1839, 65537, 0
      %v1872 = vsel %vm1840, 65537, 0
      %v1873 = vsel %vm1841, 65537, 0
      %v1874 = vsel %vm1842, 65537, 0
      %v1875 = vsel %vm1843, 65537, 0
      %v1876 = vsel %vm1844, 65537, 0
      %v1877 = vsel %vm1845, 65537, 0
      %v1878 = vsel %vm1846, 65537, 0
      %v1879 = vsel %vm1847, 65537, 0
      %v1880 = vsel %vm1848, 65537, 0
      %v1881 = vsel %vm1849, 65537, 0
      %v1882 = vunpack.c.l.b16 %v1850
      %v1883 = vunpack.c.l.b16 %v1851
      %v1884 = vunpack.c.l.b16 %v1852
      %v1885 = vunpack.c.l.b16 %v1853
      %v1886 = vunpack.c.l.b16 %v1854
      %v1887 = vunpack.c.l.b16 %v1855
      %v1888 = vunpack.c.l.b16 %v1856
      %v1889 = vunpack.c.l.b16 %v1857
      %v1890 = vunpack.c.l.b16 %v1858
      %v1891 = vunpack.c.l.b16 %v1859
      %v1892 = vunpack.c.l.b16 %v1860
      %v1893 = vunpack.c.l.b16 %v1861
      %v1894 = vunpack.c.l.b16 %v1862
      %v1895 = vunpack.c.l.b16 %v1863
      %v1896 = vunpack.c.l.b16 %v1864
      %v1897 = vunpack.c.l.b16 %v1865
      %v1898 = vunpack.c.l.b16 %v1866
      %v1899 = vunpack.c.l.b16 %v1867
      %v1900 = vunpack.c.l.b16 %v1868
      %v1901 = vunpack.c.l.b16 %v1869
      %v1902 = vunpack.c.l.b16 %v1870
      %v1903 = vunpack.c.l.b16 %v1871
      %v1904 = vunpack.c.l.b16 %v1872
      %v1905 = vunpack.c.l.b16 %v1873
      %v1906 = vunpack.c.l.b16 %v1874
      %v1907 = vunpack.c.l.b16 %v1875
      %v1908 = vunpack.c.l.b16 %v1876
      %v1909 = vunpack.c.l.b16 %v1877
      %v1910 = vunpack.c.l.b16 %v1878
      %v1911 = vunpack.c.l.b16 %v1879
      %v1912 = vunpack.c.l.b16 %v1880
      %v1913 = vunpack.c.l.b16 %v1881
      %v1914 = vpack.c.b16 %v1883, %v1882
      %v1915 = vpack.c.b16 %v1885, %v1884
      %v1916 = vpack.c.b16 %v1887, %v1886
      %v1917 = vpack.c.b16 %v1889, %v1888
      %v1918 = vpack.c.b16 %v1891, %v1890
      %v1919 = vpack.c.b16 %v1893, %v1892
      %v1920 = vpack.c.b16 %v1895, %v1894
      %v1921 = vpack.c.b16 %v1897, %v1896
      %v1922 = vpack.c.b16 %v1899, %v1898
      %v1923 = vpack.c.b16 %v1901, %v1900
      %v1924 = vpack.c.b16 %v1903, %v1902
      %v1925 = vpack.c.b16 %v1905, %v1904
      %v1926 = vpack.c.b16 %v1907, %v1906
      %v1927 = vpack.c.b16 %v1909, %v1908
      %v1928 = vpack.c.b16 %v1911, %v1910
      %v1929 = vpack.c.b16 %v1913, %v1912
      %v1930 = vunpack.c.l.b16 %v1914
      %v1931 = vunpack.c.h.b16 %v1914
      %v1932 = vunpack.c.l.b16 0
      %v1933 = vunpack.c.h.b16 0
      %vm1934 = vcmp.ne.s32.totalorder %v1930, %v1932
      %vm1935 = vcmp.ne.s32.totalorder %v1931, %v1933
      %vm1936 = vmpackc.low %vm1935, %vm1934
      %v1937 = vunpack.c.l.b16 %v1915
      %v1938 = vunpack.c.h.b16 %v1915
      %v1939 = vunpack.c.l.b16 0
      %v1940 = vunpack.c.h.b16 0
      %vm1941 = vcmp.ne.s32.totalorder %v1937, %v1939
      %vm1942 = vcmp.ne.s32.totalorder %v1938, %v1940
      %vm1943 = vmpackc.low %vm1942, %vm1941
      %v1944 = vunpack.c.l.b16 %v1916
      %v1945 = vunpack.c.h.b16 %v1916
      %v1946 = vunpack.c.l.b16 0
      %v1947 = vunpack.c.h.b16 0
      %vm1948 = vcmp.ne.s32.totalorder %v1944, %v1946
      %vm1949 = vcmp.ne.s32.totalorder %v1945, %v1947
      %vm1950 = vmpackc.low %vm1949, %vm1948
      %v1951 = vunpack.c.l.b16 %v1917
      %v1952 = vunpack.c.h.b16 %v1917
      %v1953 = vunpack.c.l.b16 0
      %v1954 = vunpack.c.h.b16 0
      %vm1955 = vcmp.ne.s32.totalorder %v1951, %v1953
      %vm1956 = vcmp.ne.s32.totalorder %v1952, %v1954
      %vm1957 = vmpackc.low %vm1956, %vm1955
      %v1958 = vunpack.c.l.b16 %v1918
      %v1959 = vunpack.c.h.b16 %v1918
      %v1960 = vunpack.c.l.b16 0
      %v1961 = vunpack.c.h.b16 0
      %vm1962 = vcmp.ne.s32.totalorder %v1958, %v1960
      %vm1963 = vcmp.ne.s32.totalorder %v1959, %v1961
      %vm1964 = vmpackc.low %vm1963, %vm1962
      %v1965 = vunpack.c.l.b16 %v1919
      %v1966 = vunpack.c.h.b16 %v1919
      %v1967 = vunpack.c.l.b16 0
      %v1968 = vunpack.c.h.b16 0
      %vm1969 = vcmp.ne.s32.totalorder %v1965, %v1967
      %vm1970 = vcmp.ne.s32.totalorder %v1966, %v1968
      %vm1971 = vmpackc.low %vm1970, %vm1969
      %v1972 = vunpack.c.l.b16 %v1920
      %v1973 = vunpack.c.h.b16 %v1920
      %v1974 = vunpack.c.l.b16 0
      %v1975 = vunpack.c.h.b16 0
      %vm1976 = vcmp.ne.s32.totalorder %v1972, %v1974
      %vm1977 = vcmp.ne.s32.totalorder %v1973, %v1975
      %vm1978 = vmpackc.low %vm1977, %vm1976
      %v1979 = vunpack.c.l.b16 %v1921
      %v1980 = vunpack.c.h.b16 %v1921
      %v1981 = vunpack.c.l.b16 0
      %v1982 = vunpack.c.h.b16 0
      %vm1983 = vcmp.ne.s32.totalorder %v1979, %v1981
      %vm1984 = vcmp.ne.s32.totalorder %v1980, %v1982
      %vm1985 = vmpackc.low %vm1984, %vm1983
      %v1986 = vunpack.c.l.b16 %v1922
      %v1987 = vunpack.c.h.b16 %v1922
      %v1988 = vunpack.c.l.b16 0
      %v1989 = vunpack.c.h.b16 0
      %vm1990 = vcmp.ne.s32.totalorder %v1986, %v1988
      %vm1991 = vcmp.ne.s32.totalorder %v1987, %v1989
      %vm1992 = vmpackc.low %vm1991, %vm1990
      %v1993 = vunpack.c.l.b16 %v1923
      %v1994 = vunpack.c.h.b16 %v1923
      %v1995 = vunpack.c.l.b16 0
      %v1996 = vunpack.c.h.b16 0
      %vm1997 = vcmp.ne.s32.totalorder %v1993, %v1995
      %vm1998 = vcmp.ne.s32.totalorder %v1994, %v1996
      %vm1999 = vmpackc.low %vm1998, %vm1997
      %v2000 = vunpack.c.l.b16 %v1924
      %v2001 = vunpack.c.h.b16 %v1924
      %v2002 = vunpack.c.l.b16 0
      %v2003 = vunpack.c.h.b16 0
      %vm2004 = vcmp.ne.s32.totalorder %v2000, %v2002
      %vm2005 = vcmp.ne.s32.totalorder %v2001, %v2003
      %vm2006 = vmpackc.low %vm2005, %vm2004
      %v2007 = vunpack.c.l.b16 %v1925
      %v2008 = vunpack.c.h.b16 %v1925
      %v2009 = vunpack.c.l.b16 0
      %v2010 = vunpack.c.h.b16 0
      %vm2011 = vcmp.ne.s32.totalorder %v2007, %v2009
      %vm2012 = vcmp.ne.s32.totalorder %v2008, %v2010
      %vm2013 = vmpackc.low %vm2012, %vm2011
      %v2014 = vunpack.c.l.b16 %v1926
      %v2015 = vunpack.c.h.b16 %v1926
      %v2016 = vunpack.c.l.b16 0
      %v2017 = vunpack.c.h.b16 0
      %vm2018 = vcmp.ne.s32.totalorder %v2014, %v2016
      %vm2019 = vcmp.ne.s32.totalorder %v2015, %v2017
      %vm2020 = vmpackc.low %vm2019, %vm2018
      %v2021 = vunpack.c.l.b16 %v1927
      %v2022 = vunpack.c.h.b16 %v1927
      %v2023 = vunpack.c.l.b16 0
      %v2024 = vunpack.c.h.b16 0
      %vm2025 = vcmp.ne.s32.totalorder %v2021, %v2023
      %vm2026 = vcmp.ne.s32.totalorder %v2022, %v2024
      %vm2027 = vmpackc.low %vm2026, %vm2025
      %v2028 = vunpack.c.l.b16 %v1928
      %v2029 = vunpack.c.h.b16 %v1928
      %v2030 = vunpack.c.l.b16 0
      %v2031 = vunpack.c.h.b16 0
      %vm2032 = vcmp.ne.s32.totalorder %v2028, %v2030
      %vm2033 = vcmp.ne.s32.totalorder %v2029, %v2031
      %vm2034 = vmpackc.low %vm2033, %vm2032
      %v2035 = vunpack.c.l.b16 %v1929
      %v2036 = vunpack.c.h.b16 %v1929
      %v2037 = vunpack.c.l.b16 0
      %v2038 = vunpack.c.h.b16 0
      %vm2039 = vcmp.ne.s32.totalorder %v2035, %v2037
      %vm2040 = vcmp.ne.s32.totalorder %v2036, %v2038
      %vm2041 = vmpackc.low %vm2040, %vm2039
      %v2042 = vsel %vm1936, %v1707, 0
      %v2043 = vsel %vm1943, %v1710, 0
      %v2044 = vsel %vm1950, %v1713, 0
      %v2045 = vsel %vm1957, %v1716, 0
      %v2046 = vsel %vm1964, %v1719, 0
      %v2047 = vsel %vm1971, %v1722, 0
      %v2048 = vsel %vm1978, %v1725, 0
      %v2049 = vsel %vm1985, %v1728, 0
      %v2050 = vsel %vm1992, %v1731, 0
      %v2051 = vsel %vm1999, %v1734, 0
      %v2052 = vsel %vm2006, %v1737, 0
      %v2053 = vsel %vm2013, %v1740, 0
      %v2054 = vsel %vm2020, %v1743, 0
      %v2055 = vsel %vm2027, %v1746, 0
      %v2056 = vsel %vm2034, %v1749, 0
      %v2057 = vsel %vm2041, %v1752, 0
      %v2058 = vld [vmem:[#allocation2 + $0x80] sm:$0x1]
      %v2059 = vld [vmem:[#allocation2 + $0x88] sm:$0x1]
      %v2060 = vld [vmem:[#allocation2 + $0x90] sm:$0x1]
      %v2062 = vunpack.c.l.b16 %v2058
      %v2063 = vpack.c.b16 %v2062, %v2062
      %v2065 = vunpack.c.l.b16 %v2059
      %v2066 = vpack.c.b16 %v2065, %v2065
      %2067 = vrot.lane.b32.xlu0 %v2066, 4
      %v2068 = vpop.permute.xlu0 %2067
      %v2070 = vunpack.c.l.b16 %v2060
      %v2071 = vpack.c.b16 %v2070, %v2070
      %2072 = vrot.lane.b32.xlu0 %v2071, 8
      %v2073 = vpop.permute.xlu0 %2072
      %v2076 = vsel %vm1656, %v2063, %v2068
      %v2078 = vsel %vm1705, %v2076, %v2073
      %v2079 = vld [vmem:[#allocation2] sm:$0xe]
      %v2080 = vld [vmem:[#allocation2 + $0x8] sm:$0xe]
      %v2081 = vld [vmem:[#allocation2 + $0x10] sm:$0xe]
      %v2083 = vunpack.c.l.b16 %v2079
      %v2084 = vpack.c.b16 %v1535, %v2083
      %v2086 = vunpack.c.l.b16 %v2080
      %v2087 = vpack.c.b16 %v1537, %v2086
      %2088 = vrot.lane.b32.xlu0 %v2087, 4
      %v2089 = vpop.permute.xlu0 %2088
      %v2091 = vunpack.c.l.b16 %v2081
      %v2092 = vpack.c.b16 %v1539, %v2091
      %2093 = vrot.lane.b32.xlu0 %v2092, 8
      %v2094 = vpop.permute.xlu0 %2093
      %v2097 = vsel %vm1656, %v2084, %v2089
      %v2099 = vsel %vm1705, %v2097, %v2094
      %v2102 = vsel %vm1434, 1, 0
      %v2103 = vsel %vm1435, 1, 0
      %v2104 = vsel %vm1436, 1, 0
      %v2105 = vsel %vm1437, 1, 0
      %v2106 = vsel %vm1438, 1, 0
      %v2107 = vsel %vm1439, 1, 0
      %v2108 = vsel %vm1440, 1, 0
      %v2109 = vsel %vm1441, 1, 0
      %v2110 = vsel %vm1442, 1, 0
      %v2111 = vsel %vm1443, 1, 0
      %v2112 = vsel %vm1444, 1, 0
      %v2113 = vsel %vm1445, 1, 0
      %v2114 = vsel %vm1446, 1, 0
      %v2115 = vsel %vm1447, 1, 0
      %v2116 = vsel %vm1448, 1, 0
      %v2117 = vsel %vm1449, 1, 0
      %v2118 = vsel %vm1450, 1, 0
      %v2119 = vsel %vm1451, 1, 0
      %v2120 = vsel %vm1452, 1, 0
      %v2121 = vsel %vm1453, 1, 0
      %v2122 = vsel %vm1454, 1, 0
      %v2123 = vsel %vm1455, 1, 0
      %v2124 = vsel %vm1456, 1, 0
      %v2125 = vsel %vm1457, 1, 0
      %v2126 = vsel %vm1458, 1, 0
      %v2127 = vsel %vm1459, 1, 0
      %v2128 = vsel %vm1460, 1, 0
      %v2129 = vsel %vm1461, 1, 0
      %v2130 = vsel %vm1462, 1, 0
      %v2131 = vsel %vm1463, 1, 0
      %v2132 = vsel %vm1464, 1, 0
      %v2133 = vsel %vm1465, 1, 0
      %vm2134 = vcmp.eq.s32.totalorder %v2102, 1
      %vm2135 = vcmp.eq.s32.totalorder %v2103, 1
      %vm2136 = vcmp.eq.s32.totalorder %v2104, 1
      %vm2137 = vcmp.eq.s32.totalorder %v2105, 1
      %vm2138 = vcmp.eq.s32.totalorder %v2106, 1
      %vm2139 = vcmp.eq.s32.totalorder %v2107, 1
      %vm2140 = vcmp.eq.s32.totalorder %v2108, 1
      %vm2141 = vcmp.eq.s32.totalorder %v2109, 1
      %vm2142 = vcmp.eq.s32.totalorder %v2110, 1
      %vm2143 = vcmp.eq.s32.totalorder %v2111, 1
      %vm2144 = vcmp.eq.s32.totalorder %v2112, 1
      %vm2145 = vcmp.eq.s32.totalorder %v2113, 1
      %vm2146 = vcmp.eq.s32.totalorder %v2114, 1
      %vm2147 = vcmp.eq.s32.totalorder %v2115, 1
      %vm2148 = vcmp.eq.s32.totalorder %v2116, 1
      %vm2149 = vcmp.eq.s32.totalorder %v2117, 1
      %vm2150 = vcmp.eq.s32.totalorder %v2118, 1
      %vm2151 = vcmp.eq.s32.totalorder %v2119, 1
      %vm2152 = vcmp.eq.s32.totalorder %v2120, 1
      %vm2153 = vcmp.eq.s32.totalorder %v2121, 1
      %vm2154 = vcmp.eq.s32.totalorder %v2122, 1
      %vm2155 = vcmp.eq.s32.totalorder %v2123, 1
      %vm2156 = vcmp.eq.s32.totalorder %v2124, 1
      %vm2157 = vcmp.eq.s32.totalorder %v2125, 1
      %vm2158 = vcmp.eq.s32.totalorder %v2126, 1
      %vm2159 = vcmp.eq.s32.totalorder %v2127, 1
      %vm2160 = vcmp.eq.s32.totalorder %v2128, 1
      %vm2161 = vcmp.eq.s32.totalorder %v2129, 1
      %vm2162 = vcmp.eq.s32.totalorder %v2130, 1
      %vm2163 = vcmp.eq.s32.totalorder %v2131, 1
      %vm2164 = vcmp.eq.s32.totalorder %v2132, 1
      %vm2165 = vcmp.eq.s32.totalorder %v2133, 1
      %vm2166 = vmpackc.low %vm2134, %vm2134
      %vm2167 = vmpackc.low %vm2135, %vm2135
      %vm2168 = vmpackc.low %vm2136, %vm2136
      %vm2169 = vmpackc.low %vm2137, %vm2137
      %vm2170 = vmpackc.low %vm2138, %vm2138
      %vm2171 = vmpackc.low %vm2139, %vm2139
      %vm2172 = vmpackc.low %vm2140, %vm2140
      %vm2173 = vmpackc.low %vm2141, %vm2141
      %vm2174 = vmpackc.low %vm2142, %vm2142
      %vm2175 = vmpackc.low %vm2143, %vm2143
      %vm2176 = vmpackc.low %vm2144, %vm2144
      %vm2177 = vmpackc.low %vm2145, %vm2145
      %vm2178 = vmpackc.low %vm2146, %vm2146
      %vm2179 = vmpackc.low %vm2147, %vm2147
      %vm2180 = vmpackc.low %vm2148, %vm2148
      %vm2181 = vmpackc.low %vm2149, %vm2149
      %vm2182 = vmpackc.low %vm2150, %vm2150
      %vm2183 = vmpackc.low %vm2151, %vm2151
      %vm2184 = vmpackc.low %vm2152, %vm2152
      %vm2185 = vmpackc.low %vm2153, %vm2153
      %vm2186 = vmpackc.low %vm2154, %vm2154
      %vm2187 = vmpackc.low %vm2155, %vm2155
      %vm2188 = vmpackc.low %vm2156, %vm2156
      %vm2189 = vmpackc.low %vm2157, %vm2157
      %vm2190 = vmpackc.low %vm2158, %vm2158
      %vm2191 = vmpackc.low %vm2159, %vm2159
      %vm2192 = vmpackc.low %vm2160, %vm2160
      %vm2193 = vmpackc.low %vm2161, %vm2161
      %vm2194 = vmpackc.low %vm2162, %vm2162
      %vm2195 = vmpackc.low %vm2163, %vm2163
      %vm2196 = vmpackc.low %vm2164, %vm2164
      %vm2197 = vmpackc.low %vm2165, %vm2165
      %v2198 = vsel %vm2166, 65537, 0
      %v2199 = vsel %vm2167, 65537, 0
      %v2200 = vsel %vm2168, 65537, 0
      %v2201 = vsel %vm2169, 65537, 0
      %v2202 = vsel %vm2170, 65537, 0
      %v2203 = vsel %vm2171, 65537, 0
      %v2204 = vsel %vm2172, 65537, 0
      %v2205 = vsel %vm2173, 65537, 0
      %v2206 = vsel %vm2174, 65537, 0
      %v2207 = vsel %vm2175, 65537, 0
      %v2208 = vsel %vm2176, 65537, 0
      %v2209 = vsel %vm2177, 65537, 0
      %v2210 = vsel %vm2178, 65537, 0
      %v2211 = vsel %vm2179, 65537, 0
      %v2212 = vsel %vm2180, 65537, 0
      %v2213 = vsel %vm2181, 65537, 0
      %v2214 = vsel %vm2182, 65537, 0
      %v2215 = vsel %vm2183, 65537, 0
      %v2216 = vsel %vm2184, 65537, 0
      %v2217 = vsel %vm2185, 65537, 0
      %v2218 = vsel %vm2186, 65537, 0
      %v2219 = vsel %vm2187, 65537, 0
      %v2220 = vsel %vm2188, 65537, 0
      %v2221 = vsel %vm2189, 65537, 0
      %v2222 = vsel %vm2190, 65537, 0
      %v2223 = vsel %vm2191, 65537, 0
      %v2224 = vsel %vm2192, 65537, 0
      %v2225 = vsel %vm2193, 65537, 0
      %v2226 = vsel %vm2194, 65537, 0
      %v2227 = vsel %vm2195, 65537, 0
      %v2228 = vsel %vm2196, 65537, 0
      %v2229 = vsel %vm2197, 65537, 0
      %v2230 = vunpack.c.l.b16 %v2198
      %v2231 = vunpack.c.l.b16 %v2199
      %v2232 = vunpack.c.l.b16 %v2200
      %v2233 = vunpack.c.l.b16 %v2201
      %v2234 = vunpack.c.l.b16 %v2202
      %v2235 = vunpack.c.l.b16 %v2203
      %v2236 = vunpack.c.l.b16 %v2204
      %v2237 = vunpack.c.l.b16 %v2205
      %v2238 = vunpack.c.l.b16 %v2206
      %v2239 = vunpack.c.l.b16 %v2207
      %v2240 = vunpack.c.l.b16 %v2208
      %v2241 = vunpack.c.l.b16 %v2209
      %v2242 = vunpack.c.l.b16 %v2210
      %v2243 = vunpack.c.l.b16 %v2211
      %v2244 = vunpack.c.l.b16 %v2212
      %v2245 = vunpack.c.l.b16 %v2213
      %v2246 = vunpack.c.l.b16 %v2214
      %v2247 = vunpack.c.l.b16 %v2215
      %v2248 = vunpack.c.l.b16 %v2216
      %v2249 = vunpack.c.l.b16 %v2217
      %v2250 = vunpack.c.l.b16 %v2218
      %v2251 = vunpack.c.l.b16 %v2219
      %v2252 = vunpack.c.l.b16 %v2220
      %v2253 = vunpack.c.l.b16 %v2221
      %v2254 = vunpack.c.l.b16 %v2222
      %v2255 = vunpack.c.l.b16 %v2223
      %v2256 = vunpack.c.l.b16 %v2224
      %v2257 = vunpack.c.l.b16 %v2225
      %v2258 = vunpack.c.l.b16 %v2226
      %v2259 = vunpack.c.l.b16 %v2227
      %v2260 = vunpack.c.l.b16 %v2228
      %v2261 = vunpack.c.l.b16 %v2229
      %v2262 = vpack.c.b16 %v2231, %v2230
      %v2263 = vpack.c.b16 %v2233, %v2232
      %v2264 = vpack.c.b16 %v2235, %v2234
      %v2265 = vpack.c.b16 %v2237, %v2236
      %v2266 = vpack.c.b16 %v2239, %v2238
      %v2267 = vpack.c.b16 %v2241, %v2240
      %v2268 = vpack.c.b16 %v2243, %v2242
      %v2269 = vpack.c.b16 %v2245, %v2244
      %v2270 = vpack.c.b16 %v2247, %v2246
      %v2271 = vpack.c.b16 %v2249, %v2248
      %v2272 = vpack.c.b16 %v2251, %v2250
      %v2273 = vpack.c.b16 %v2253, %v2252
      %v2274 = vpack.c.b16 %v2255, %v2254
      %v2275 = vpack.c.b16 %v2257, %v2256
      %v2276 = vpack.c.b16 %v2259, %v2258
      %v2277 = vpack.c.b16 %v2261, %v2260
      %vm2278 = vcmask 1040384
      %v2279 = vrot.slane %v2262, 7
      %v2280 = vrot.slane %v2263, 7
      %v2281 = vsel %vm2278, %v2279, %v2280
      %v2282 = vrot.slane %v2264, 7
      %v2283 = vsel %vm2278, %v2280, %v2282
      %v2284 = vrot.slane %v2265, 7
      %v2285 = vsel %vm2278, %v2282, %v2284
      %v2286 = vrot.slane %v2266, 7
      %v2287 = vsel %vm2278, %v2284, %v2286
      %v2288 = vrot.slane %v2267, 7
      %v2289 = vsel %vm2278, %v2286, %v2288
      %v2290 = vrot.slane %v2268, 7
      %v2291 = vsel %vm2278, %v2288, %v2290
      %v2292 = vrot.slane %v2269, 7
      %v2293 = vsel %vm2278, %v2290, %v2292
      %v2294 = vrot.slane %v2270, 7
      %v2295 = vsel %vm2278, %v2292, %v2294
      %v2296 = vrot.slane %v2271, 7
      %v2297 = vsel %vm2278, %v2294, %v2296
      %v2298 = vrot.slane %v2272, 7
      %v2299 = vsel %vm2278, %v2296, %v2298
      %v2300 = vrot.slane %v2273, 7
      %v2301 = vsel %vm2278, %v2298, %v2300
      %v2302 = vrot.slane %v2274, 7
      %v2303 = vsel %vm2278, %v2300, %v2302
      %v2304 = vrot.slane %v2275, 7
      %v2305 = vsel %vm2278, %v2302, %v2304
      %v2306 = vrot.slane %v2276, 7
      %v2307 = vsel %vm2278, %v2304, %v2306
      %v2308 = vrot.slane %v2277, 7
      %v2309 = vsel %vm2278, %v2306, %v2308
      %v2310 = vunpack.c.l.b16 %v2279
      %v2311 = vunpack.c.h.b16 %v2279
      %v2312 = vunpack.c.l.b16 0
      %v2313 = vunpack.c.h.b16 0
      %vm2314 = vcmp.ne.s32.totalorder %v2310, %v2312
      %vm2315 = vcmp.ne.s32.totalorder %v2311, %v2313
      %vm2316 = vmpackc.low %vm2315, %vm2314
      %v2317 = vunpack.c.l.b16 %v2281
      %v2318 = vunpack.c.h.b16 %v2281
      %v2319 = vunpack.c.l.b16 0
      %v2320 = vunpack.c.h.b16 0
      %vm2321 = vcmp.ne.s32.totalorder %v2317, %v2319
      %vm2322 = vcmp.ne.s32.totalorder %v2318, %v2320
      %vm2323 = vmpackc.low %vm2322, %vm2321
      %v2324 = vunpack.c.l.b16 %v2283
      %v2325 = vunpack.c.h.b16 %v2283
      %v2326 = vunpack.c.l.b16 0
      %v2327 = vunpack.c.h.b16 0
      %vm2328 = vcmp.ne.s32.totalorder %v2324, %v2326
      %vm2329 = vcmp.ne.s32.totalorder %v2325, %v2327
      %vm2330 = vmpackc.low %vm2329, %vm2328
      %v2331 = vunpack.c.l.b16 %v2285
      %v2332 = vunpack.c.h.b16 %v2285
      %v2333 = vunpack.c.l.b16 0
      %v2334 = vunpack.c.h.b16 0
      %vm2335 = vcmp.ne.s32.totalorder %v2331, %v2333
      %vm2336 = vcmp.ne.s32.totalorder %v2332, %v2334
      %vm2337 = vmpackc.low %vm2336, %vm2335
      %v2338 = vunpack.c.l.b16 %v2287
      %v2339 = vunpack.c.h.b16 %v2287
      %v2340 = vunpack.c.l.b16 0
      %v2341 = vunpack.c.h.b16 0
      %vm2342 = vcmp.ne.s32.totalorder %v2338, %v2340
      %vm2343 = vcmp.ne.s32.totalorder %v2339, %v2341
      %vm2344 = vmpackc.low %vm2343, %vm2342
      %v2345 = vunpack.c.l.b16 %v2289
      %v2346 = vunpack.c.h.b16 %v2289
      %v2347 = vunpack.c.l.b16 0
      %v2348 = vunpack.c.h.b16 0
      %vm2349 = vcmp.ne.s32.totalorder %v2345, %v2347
      %vm2350 = vcmp.ne.s32.totalorder %v2346, %v2348
      %vm2351 = vmpackc.low %vm2350, %vm2349
      %v2352 = vunpack.c.l.b16 %v2291
      %v2353 = vunpack.c.h.b16 %v2291
      %v2354 = vunpack.c.l.b16 0
      %v2355 = vunpack.c.h.b16 0
      %vm2356 = vcmp.ne.s32.totalorder %v2352, %v2354
      %vm2357 = vcmp.ne.s32.totalorder %v2353, %v2355
      %vm2358 = vmpackc.low %vm2357, %vm2356
      %v2359 = vunpack.c.l.b16 %v2293
      %v2360 = vunpack.c.h.b16 %v2293
      %v2361 = vunpack.c.l.b16 0
      %v2362 = vunpack.c.h.b16 0
      %vm2363 = vcmp.ne.s32.totalorder %v2359, %v2361
      %vm2364 = vcmp.ne.s32.totalorder %v2360, %v2362
      %vm2365 = vmpackc.low %vm2364, %vm2363
      %v2366 = vunpack.c.l.b16 %v2295
      %v2367 = vunpack.c.h.b16 %v2295
      %v2368 = vunpack.c.l.b16 0
      %v2369 = vunpack.c.h.b16 0
      %vm2370 = vcmp.ne.s32.totalorder %v2366, %v2368
      %vm2371 = vcmp.ne.s32.totalorder %v2367, %v2369
      %vm2372 = vmpackc.low %vm2371, %vm2370
      %v2373 = vunpack.c.l.b16 %v2297
      %v2374 = vunpack.c.h.b16 %v2297
      %v2375 = vunpack.c.l.b16 0
      %v2376 = vunpack.c.h.b16 0
      %vm2377 = vcmp.ne.s32.totalorder %v2373, %v2375
      %vm2378 = vcmp.ne.s32.totalorder %v2374, %v2376
      %vm2379 = vmpackc.low %vm2378, %vm2377
      %v2380 = vunpack.c.l.b16 %v2299
      %v2381 = vunpack.c.h.b16 %v2299
      %v2382 = vunpack.c.l.b16 0
      %v2383 = vunpack.c.h.b16 0
      %vm2384 = vcmp.ne.s32.totalorder %v2380, %v2382
      %vm2385 = vcmp.ne.s32.totalorder %v2381, %v2383
      %vm2386 = vmpackc.low %vm2385, %vm2384
      %v2387 = vunpack.c.l.b16 %v2301
      %v2388 = vunpack.c.h.b16 %v2301
      %v2389 = vunpack.c.l.b16 0
      %v2390 = vunpack.c.h.b16 0
      %vm2391 = vcmp.ne.s32.totalorder %v2387, %v2389
      %vm2392 = vcmp.ne.s32.totalorder %v2388, %v2390
      %vm2393 = vmpackc.low %vm2392, %vm2391
      %v2394 = vunpack.c.l.b16 %v2303
      %v2395 = vunpack.c.h.b16 %v2303
      %v2396 = vunpack.c.l.b16 0
      %v2397 = vunpack.c.h.b16 0
      %vm2398 = vcmp.ne.s32.totalorder %v2394, %v2396
      %vm2399 = vcmp.ne.s32.totalorder %v2395, %v2397
      %vm2400 = vmpackc.low %vm2399, %vm2398
      %v2401 = vunpack.c.l.b16 %v2305
      %v2402 = vunpack.c.h.b16 %v2305
      %v2403 = vunpack.c.l.b16 0
      %v2404 = vunpack.c.h.b16 0
      %vm2405 = vcmp.ne.s32.totalorder %v2401, %v2403
      %vm2406 = vcmp.ne.s32.totalorder %v2402, %v2404
      %vm2407 = vmpackc.low %vm2406, %vm2405
      %v2408 = vunpack.c.l.b16 %v2307
      %v2409 = vunpack.c.h.b16 %v2307
      %v2410 = vunpack.c.l.b16 0
      %v2411 = vunpack.c.h.b16 0
      %vm2412 = vcmp.ne.s32.totalorder %v2408, %v2410
      %vm2413 = vcmp.ne.s32.totalorder %v2409, %v2411
      %vm2414 = vmpackc.low %vm2413, %vm2412
      %v2415 = vunpack.c.l.b16 %v2309
      %v2416 = vunpack.c.h.b16 %v2309
      %v2417 = vunpack.c.l.b16 0
      %v2418 = vunpack.c.h.b16 0
      %vm2419 = vcmp.ne.s32.totalorder %v2415, %v2417
      %vm2420 = vcmp.ne.s32.totalorder %v2416, %v2418
      %vm2421 = vmpackc.low %vm2420, %vm2419
      %v2422 = vunpack.c.l.b16 %v2308
      %v2423 = vunpack.c.h.b16 %v2308
      %v2424 = vunpack.c.l.b16 0
      %v2425 = vunpack.c.h.b16 0
      %vm2426 = vcmp.ne.s32.totalorder %v2422, %v2424
      %vm2427 = vcmp.ne.s32.totalorder %v2423, %v2425
      %vm2428 = vmpackc.low %vm2427, %vm2426
      %v2429 = vsel %vm2316, %v2099, 0
      %v2430 = vsel %vm2323, %v1710, 0
      %v2431 = vsel %vm2330, %v1713, 0
      %v2432 = vsel %vm2337, %v1716, 0
      %v2433 = vsel %vm2344, %v1719, 0
      %v2434 = vsel %vm2351, %v1722, 0
      %v2435 = vsel %vm2358, %v1725, 0
      %v2436 = vsel %vm2365, %v1728, 0
      %v2437 = vsel %vm2372, %v1731, 0
      %v2438 = vsel %vm2379, %v1734, 0
      %v2439 = vsel %vm2386, %v1737, 0
      %v2440 = vsel %vm2393, %v1740, 0
      %v2441 = vsel %vm2400, %v1743, 0
      %v2442 = vsel %vm2407, %v1746, 0
      %v2443 = vsel %vm2414, %v1749, 0
      %v2444 = vsel %vm2421, %v1752, 0
      %v2445 = vsel %vm2428, %v2078, 0
      %vm2446 = vsmask.f32 7424
      %v2447 = vshrl.u32 %v1707, 16
      %v2449 = vshll.u32 %v1707, 16
      %v2451 = vrot.slane %v2449, 1
      %v2452 = vor.u32 %v2447, %v2451
      %v2453 = vshll.u32 %v1710, 16
      %v2455 = vrot.slane %v2453, 1
      %v2456 = vsel %vm2446, %v2452, %v2455
      %v2457 = vshrl.u32 %v1710, 16
      %v2459 = vor.u32 %v2457, %v2455
      %v2460 = vshll.u32 %v1713, 16
      %v2462 = vrot.slane %v2460, 1
      %v2463 = vsel %vm2446, %v2459, %v2462
      %v2464 = vshrl.u32 %v1713, 16
      %v2466 = vor.u32 %v2464, %v2462
      %v2467 = vshll.u32 %v1716, 16
      %v2469 = vrot.slane %v2467, 1
      %v2470 = vsel %vm2446, %v2466, %v2469
      %v2471 = vshrl.u32 %v1716, 16
      %v2473 = vor.u32 %v2471, %v2469
      %v2474 = vshll.u32 %v1719, 16
      %v2476 = vrot.slane %v2474, 1
      %v2477 = vsel %vm2446, %v2473, %v2476
      %v2478 = vshrl.u32 %v1719, 16
      %v2480 = vor.u32 %v2478, %v2476
      %v2481 = vshll.u32 %v1722, 16
      %v2483 = vrot.slane %v2481, 1
      %v2484 = vsel %vm2446, %v2480, %v2483
      %v2485 = vshrl.u32 %v1722, 16
      %v2487 = vor.u32 %v2485, %v2483
      %v2488 = vshll.u32 %v1725, 16
      %v2490 = vrot.slane %v2488, 1
      %v2491 = vsel %vm2446, %v2487, %v2490
      %v2492 = vshrl.u32 %v1725, 16
      %v2494 = vor.u32 %v2492, %v2490
      %v2495 = vshll.u32 %v1728, 16
      %v2497 = vrot.slane %v2495, 1
      %v2498 = vsel %vm2446, %v2494, %v2497
      %v2499 = vshrl.u32 %v1728, 16
      %v2501 = vor.u32 %v2499, %v2497
      %v2502 = vshll.u32 %v1731, 16
      %v2504 = vrot.slane %v2502, 1
      %v2505 = vsel %vm2446, %v2501, %v2504
      %v2506 = vshrl.u32 %v1731, 16
      %v2508 = vor.u32 %v2506, %v2504
      %v2509 = vshll.u32 %v1734, 16
      %v2511 = vrot.slane %v2509, 1
      %v2512 = vsel %vm2446, %v2508, %v2511
      %v2513 = vshrl.u32 %v1734, 16
      %v2515 = vor.u32 %v2513, %v2511
      %v2516 = vshll.u32 %v1737, 16
      %v2518 = vrot.slane %v2516, 1
      %v2519 = vsel %vm2446, %v2515, %v2518
      %v2520 = vshrl.u32 %v1737, 16
      %v2522 = vor.u32 %v2520, %v2518
      %v2523 = vshll.u32 %v1740, 16
      %v2525 = vrot.slane %v2523, 1
      %v2526 = vsel %vm2446, %v2522, %v2525
      %v2527 = vshrl.u32 %v1740, 16
      %v2529 = vor.u32 %v2527, %v2525
      %v2530 = vshll.u32 %v1743, 16
      %v2532 = vrot.slane %v2530, 1
      %v2533 = vsel %vm2446, %v2529, %v2532
      %v2534 = vshrl.u32 %v1743, 16
      %v2536 = vor.u32 %v2534, %v2532
      %v2537 = vshll.u32 %v1746, 16
      %v2539 = vrot.slane %v2537, 1
      %v2540 = vsel %vm2446, %v2536, %v2539
      %v2541 = vshrl.u32 %v1746, 16
      %v2543 = vor.u32 %v2541, %v2539
      %v2544 = vshll.u32 %v1749, 16
      %v2546 = vrot.slane %v2544, 1
      %v2547 = vsel %vm2446, %v2543, %v2546
      %v2548 = vshrl.u32 %v1749, 16
      %v2550 = vor.u32 %v2548, %v2546
      %v2551 = vshll.u32 %v1752, 16
      %v2553 = vrot.slane %v2551, 1
      %v2554 = vsel %vm2446, %v2550, %v2553
      %v2555 = vshrl.u32 %v1752, 16
      %v2557 = vor.u32 %v2555, %v2553
      %v2558 = vshll.u32 %v2078, 16
      %v2560 = vrot.slane %v2558, 1
      %v2561 = vsel %vm2446, %v2557, %v2560
      %2562 = vrot.lane.b32.xlu0 %v2456, 12
      %v2563 = vpop.permute.xlu0 %2562
      %2564 = vrot.lane.b32.xlu0 %v2463, 12
      %v2565 = vpop.permute.xlu0 %2564
      %2566 = vrot.lane.b32.xlu0 %v2470, 12
      %v2567 = vpop.permute.xlu0 %2566
      %2568 = vrot.lane.b32.xlu0 %v2477, 12
      %v2569 = vpop.permute.xlu0 %2568
      %2570 = vrot.lane.b32.xlu0 %v2484, 12
      %v2571 = vpop.permute.xlu0 %2570
      %2572 = vrot.lane.b32.xlu0 %v2491, 12
      %v2573 = vpop.permute.xlu0 %2572
      %2574 = vrot.lane.b32.xlu0 %v2498, 12
      %v2575 = vpop.permute.xlu0 %2574
      %2576 = vrot.lane.b32.xlu0 %v2505, 12
      %v2577 = vpop.permute.xlu0 %2576
      %2578 = vrot.lane.b32.xlu0 %v2512, 12
      %v2579 = vpop.permute.xlu0 %2578
      %2580 = vrot.lane.b32.xlu0 %v2519, 12
      %v2581 = vpop.permute.xlu0 %2580
      %2582 = vrot.lane.b32.xlu0 %v2526, 12
      %v2583 = vpop.permute.xlu0 %2582
      %2584 = vrot.lane.b32.xlu0 %v2533, 12
      %v2585 = vpop.permute.xlu0 %2584
      %2586 = vrot.lane.b32.xlu0 %v2540, 12
      %v2587 = vpop.permute.xlu0 %2586
      %2588 = vrot.lane.b32.xlu0 %v2547, 12
      %v2589 = vpop.permute.xlu0 %2588
      %2590 = vrot.lane.b32.xlu0 %v2554, 12
      %v2591 = vpop.permute.xlu0 %2590
      %2592 = vrot.lane.b32.xlu0 %v2561, 12
      %v2593 = vpop.permute.xlu0 %2592
      %vm2611 = vcmask 1046528
      %v2612 = vrot.slane %v2429, 1
      %v2613 = vrot.slane %v2430, 1
      %v2614 = vsel %vm2611, %v2612, %v2613
      %v2615 = vrot.slane %v2431, 1
      %v2616 = vsel %vm2611, %v2613, %v2615
      %v2617 = vrot.slane %v2432, 1
      %v2618 = vsel %vm2611, %v2615, %v2617
      %v2619 = vrot.slane %v2433, 1
      %v2620 = vsel %vm2611, %v2617, %v2619
      %v2621 = vrot.slane %v2434, 1
      %v2622 = vsel %vm2611, %v2619, %v2621
      %v2623 = vrot.slane %v2435, 1
      %v2624 = vsel %vm2611, %v2621, %v2623
      %v2625 = vrot.slane %v2436, 1
      %v2626 = vsel %vm2611, %v2623, %v2625
      %v2627 = vrot.slane %v2437, 1
      %v2628 = vsel %vm2611, %v2625, %v2627
      %v2629 = vrot.slane %v2438, 1
      %v2630 = vsel %vm2611, %v2627, %v2629
      %v2631 = vrot.slane %v2439, 1
      %v2632 = vsel %vm2611, %v2629, %v2631
      %v2633 = vrot.slane %v2440, 1
      %v2634 = vsel %vm2611, %v2631, %v2633
      %v2635 = vrot.slane %v2441, 1
      %v2636 = vsel %vm2611, %v2633, %v2635
      %v2637 = vrot.slane %v2442, 1
      %v2638 = vsel %vm2611, %v2635, %v2637
      %v2639 = vrot.slane %v2443, 1
      %v2640 = vsel %vm2611, %v2637, %v2639
      %v2641 = vrot.slane %v2444, 1
      %v2642 = vsel %vm2611, %v2639, %v2641
      %v2643 = vrot.slane %v2445, 1
      %v2644 = vsel %vm2611, %v2641, %v2643
      %2645 = vrot.lane.b32.xlu0 %v2614, 24
      %v2646 = vpop.permute.xlu0 %2645
      %2647 = vrot.lane.b32.xlu0 %v2616, 24
      %v2648 = vpop.permute.xlu0 %2647
      %2649 = vrot.lane.b32.xlu0 %v2618, 24
      %v2650 = vpop.permute.xlu0 %2649
      %2651 = vrot.lane.b32.xlu0 %v2620, 24
      %v2652 = vpop.permute.xlu0 %2651
      %2653 = vrot.lane.b32.xlu0 %v2622, 24
      %v2654 = vpop.permute.xlu0 %2653
      %2655 = vrot.lane.b32.xlu0 %v2624, 24
      %v2656 = vpop.permute.xlu0 %2655
      %2657 = vrot.lane.b32.xlu0 %v2626, 24
      %v2658 = vpop.permute.xlu0 %2657
      %2659 = vrot.lane.b32.xlu0 %v2628, 24
      %v2660 = vpop.permute.xlu0 %2659
      %2661 = vrot.lane.b32.xlu0 %v2630, 24
      %v2662 = vpop.permute.xlu0 %2661
      %2663 = vrot.lane.b32.xlu0 %v2632, 24
      %v2664 = vpop.permute.xlu0 %2663
      %2665 = vrot.lane.b32.xlu0 %v2634, 24
      %v2666 = vpop.permute.xlu0 %2665
      %2667 = vrot.lane.b32.xlu0 %v2636, 24
      %v2668 = vpop.permute.xlu0 %2667
      %2669 = vrot.lane.b32.xlu0 %v2638, 24
      %v2670 = vpop.permute.xlu0 %2669
      %2671 = vrot.lane.b32.xlu0 %v2640, 24
      %v2672 = vpop.permute.xlu0 %2671
      %2673 = vrot.lane.b32.xlu0 %v2642, 24
      %v2674 = vpop.permute.xlu0 %2673
      %2675 = vrot.lane.b32.xlu0 %v2644, 24
      %v2676 = vpop.permute.xlu0 %2675
      %vm2677 = vcmask 97280
      %v2680 = vsel %vm2677, %v2042, %v2563
      %v2683 = vsel %vm2677, %v2043, %v2565
      %v2686 = vsel %vm2677, %v2044, %v2567
      %v2689 = vsel %vm2677, %v2045, %v2569
      %v2692 = vsel %vm2677, %v2046, %v2571
      %v2695 = vsel %vm2677, %v2047, %v2573
      %v2698 = vsel %vm2677, %v2048, %v2575
      %v2701 = vsel %vm2677, %v2049, %v2577
      %v2704 = vsel %vm2677, %v2050, %v2579
      %v2707 = vsel %vm2677, %v2051, %v2581
      %v2710 = vsel %vm2677, %v2052, %v2583
      %v2713 = vsel %vm2677, %v2053, %v2585
      %v2716 = vsel %vm2677, %v2054, %v2587
      %v2719 = vsel %vm2677, %v2055, %v2589
      %v2722 = vsel %vm2677, %v2056, %v2591
      %v2725 = vsel %vm2677, %v2057, %v2593
      %vm2726 = vcmask 195584
      %v2728 = vsel %vm2726, %v2680, %v2646
      %v2730 = vsel %vm2726, %v2683, %v2648
      %v2732 = vsel %vm2726, %v2686, %v2650
      %v2734 = vsel %vm2726, %v2689, %v2652
      %v2736 = vsel %vm2726, %v2692, %v2654
      %v2738 = vsel %vm2726, %v2695, %v2656
      %v2740 = vsel %vm2726, %v2698, %v2658
      %v2742 = vsel %vm2726, %v2701, %v2660
      %v2744 = vsel %vm2726, %v2704, %v2662
      %v2746 = vsel %vm2726, %v2707, %v2664
      %v2748 = vsel %vm2726, %v2710, %v2666
      %v2750 = vsel %vm2726, %v2713, %v2668
      %v2752 = vsel %vm2726, %v2716, %v2670
      %v2754 = vsel %vm2726, %v2719, %v2672
      %v2756 = vsel %vm2726, %v2722, %v2674
      %v2758 = vsel %vm2726, %v2725, %v2676
      %v2759 = vld [vmem:[%s2] sm:$0xf]
      %v2760 = vld [vmem:[%s2 + $0x4] sm:$0xf]
      %v2761 = vld [vmem:[%s2 + $0x8] sm:$0xf]
      %v2762 = vld [vmem:[%s2 + $0xc] sm:$0xf]
      %v2763 = vld [vmem:[%s2 + $0x10] sm:$0x3]
      %v2769 = vunpack.c.l.b16 %v2759
      %v2770 = vunpack.c.l.b16 %v2760
      %v2771 = vunpack.c.l.b16 %v2761
      %v2772 = vunpack.c.l.b16 %v2762
      %v2773 = vunpack.c.l.b16 %v2763
      %v2774 = vpack.c.b16 %v2770, %v2769
      %v2775 = vpack.c.b16 %v2772, %v2771
      %v2776 = vpack.c.b16 %v2773, %v2773
      %vm2779 = vcmask 293888
      %v2780 = vsel %vm2779, %v2728, 0
      %v2782 = vsel %vm2779, %v2730, 0
      %v2784 = vsel %vm2779, %v2732, 0
      %v2786 = vsel %vm2779, %v2734, 0
      %v2788 = vsel %vm2779, %v2736, 0
      %v2790 = vsel %vm2779, %v2738, 0
      %v2792 = vsel %vm2779, %v2740, 0
      %v2794 = vsel %vm2779, %v2742, 0
      %v2796 = vsel %vm2779, %v2744, 0
      %v2798 = vsel %vm2779, %v2746, 0
      %v2800 = vsel %vm2779, %v2748, 0
      %v2802 = vsel %vm2779, %v2750, 0
      %v2804 = vsel %vm2779, %v2752, 0
      %v2806 = vsel %vm2779, %v2754, 0
      %v2808 = vsel %vm2779, %v2756, 0
      %v2810 = vsel %vm2779, %v2758, 0
      %vm2812 = vcmask 1041408
      %v2814 = vsel %vm2812, %v2776, 0
      %2816 = vmatpush.bf16.msra.mxu0 0
      %2817 = vmatpush.bf16.msra.mxu0 0
      %2818 = vmatpush.bf16.msra.mxu0 0
      %2819 = vmatpush.bf16.msra.mxu0 0
      %2820 = vmatpush.bf16.msra.mxu0 0
      %2821 = vmatpush.bf16.msra.mxu0 %v2814
      %2822 = vmatpush.bf16.msra.mxu0 %v2775
      %2823 = vmatpush.bf16.msra.mxu0 %v2774
      %2824 = vmatmul.bf16.gmra.mxu0 %v2780
      %v2825 = vpop.f32.mrf.mxu0
      %v2826 = vadd.f32 0.0, %v2825
      %v2827 = vpop.f32.mrf.mxu0
      %v2828 = vadd.f32 0.0, %v2827
      %2829 = vmatmul.bf16.gmra.mxu0 %v2782
      %v2830 = vpop.f32.mrf.mxu0
      %v2831 = vadd.f32 0.0, %v2830
      %v2832 = vpop.f32.mrf.mxu0
      %v2833 = vadd.f32 0.0, %v2832
      %2834 = vmatmul.bf16.gmra.mxu0 %v2784
      %v2835 = vpop.f32.mrf.mxu0
      %v2836 = vadd.f32 0.0, %v2835
      %v2837 = vpop.f32.mrf.mxu0
      %v2838 = vadd.f32 0.0, %v2837
      %2839 = vmatmul.bf16.gmra.mxu0 %v2786
      %v2840 = vpop.f32.mrf.mxu0
      %v2841 = vadd.f32 0.0, %v2840
      %v2842 = vpop.f32.mrf.mxu0
      %v2843 = vadd.f32 0.0, %v2842
      %2844 = vmatmul.bf16.gmra.mxu0 %v2788
      %v2845 = vpop.f32.mrf.mxu0
      %v2846 = vadd.f32 0.0, %v2845
      %v2847 = vpop.f32.mrf.mxu0
      %v2848 = vadd.f32 0.0, %v2847
      %2849 = vmatmul.bf16.gmra.mxu0 %v2790
      %v2850 = vpop.f32.mrf.mxu0
      %v2851 = vadd.f32 0.0, %v2850
      %v2852 = vpop.f32.mrf.mxu0
      %v2853 = vadd.f32 0.0, %v2852
      %2854 = vmatmul.bf16.gmra.mxu0 %v2792
      %v2855 = vpop.f32.mrf.mxu0
      %v2856 = vadd.f32 0.0, %v2855
      %v2857 = vpop.f32.mrf.mxu0
      %v2858 = vadd.f32 0.0, %v2857
      %2859 = vmatmul.bf16.gmra.mxu0 %v2794
      %v2860 = vpop.f32.mrf.mxu0
      %v2861 = vadd.f32 0.0, %v2860
      %v2862 = vpop.f32.mrf.mxu0
      %v2863 = vadd.f32 0.0, %v2862
      %2864 = vmatmul.bf16.gmra.mxu0 %v2796
      %v2865 = vpop.f32.mrf.mxu0
      %v2866 = vadd.f32 0.0, %v2865
      %v2867 = vpop.f32.mrf.mxu0
      %v2868 = vadd.f32 0.0, %v2867
      %2869 = vmatmul.bf16.gmra.mxu0 %v2798
      %v2870 = vpop.f32.mrf.mxu0
      %v2871 = vadd.f32 0.0, %v2870
      %v2872 = vpop.f32.mrf.mxu0
      %v2873 = vadd.f32 0.0, %v2872
      %2874 = vmatmul.bf16.gmra.mxu0 %v2800
      %v2875 = vpop.f32.mrf.mxu0
      %v2876 = vadd.f32 0.0, %v2875
      %v2877 = vpop.f32.mrf.mxu0
      %v2878 = vadd.f32 0.0, %v2877
      %2879 = vmatmul.bf16.gmra.mxu0 %v2802
      %v2880 = vpop.f32.mrf.mxu0
      %v2881 = vadd.f32 0.0, %v2880
      %v2882 = vpop.f32.mrf.mxu0
      %v2883 = vadd.f32 0.0, %v2882
      %2884 = vmatmul.bf16.gmra.mxu0 %v2804
      %v2885 = vpop.f32.mrf.mxu0
      %v2886 = vadd.f32 0.0, %v2885
      %v2887 = vpop.f32.mrf.mxu0
      %v2888 = vadd.f32 0.0, %v2887
      %2889 = vmatmul.bf16.gmra.mxu0 %v2806
      %v2890 = vpop.f32.mrf.mxu0
      %v2891 = vadd.f32 0.0, %v2890
      %v2892 = vpop.f32.mrf.mxu0
      %v2893 = vadd.f32 0.0, %v2892
      %2894 = vmatmul.bf16.gmra.mxu0 %v2808
      %v2895 = vpop.f32.mrf.mxu0
      %v2896 = vadd.f32 0.0, %v2895
      %v2897 = vpop.f32.mrf.mxu0
      %v2898 = vadd.f32 0.0, %v2897
      %2899 = vmatmul.bf16.gmra.mxu0 %v2810
      %v2900 = vpop.f32.mrf.mxu0
      %v2901 = vadd.f32 0.0, %v2900
      %v2902 = vpop.f32.mrf.mxu0
      %v2903 = vadd.f32 0.0, %v2902
      %2904 = vdwg.mxu0
      %v2905 = vpack.c.bf16 %v2826, %v2826
      %v2906 = vpack.c.bf16 %v2828, %v2828
      %v2907 = vpack.c.bf16 %v2831, %v2831
      %v2908 = vpack.c.bf16 %v2833, %v2833
      %v2909 = vpack.c.bf16 %v2836, %v2836
      %v2910 = vpack.c.bf16 %v2838, %v2838
      %v2911 = vpack.c.bf16 %v2841, %v2841
      %v2912 = vpack.c.bf16 %v2843, %v2843
      %v2913 = vpack.c.bf16 %v2846, %v2846
      %v2914 = vpack.c.bf16 %v2848, %v2848
      %v2915 = vpack.c.bf16 %v2851, %v2851
      %v2916 = vpack.c.bf16 %v2853, %v2853
      %v2917 = vpack.c.bf16 %v2856, %v2856
      %v2918 = vpack.c.bf16 %v2858, %v2858
      %v2919 = vpack.c.bf16 %v2861, %v2861
      %v2920 = vpack.c.bf16 %v2863, %v2863
      %v2921 = vpack.c.bf16 %v2866, %v2866
      %v2922 = vpack.c.bf16 %v2868, %v2868
      %v2923 = vpack.c.bf16 %v2871, %v2871
      %v2924 = vpack.c.bf16 %v2873, %v2873
      %v2925 = vpack.c.bf16 %v2876, %v2876
      %v2926 = vpack.c.bf16 %v2878, %v2878
      %v2927 = vpack.c.bf16 %v2881, %v2881
      %v2928 = vpack.c.bf16 %v2883, %v2883
      %v2929 = vpack.c.bf16 %v2886, %v2886
      %v2930 = vpack.c.bf16 %v2888, %v2888
      %v2931 = vpack.c.bf16 %v2891, %v2891
      %v2932 = vpack.c.bf16 %v2893, %v2893
      %v2933 = vpack.c.bf16 %v2896, %v2896
      %v2934 = vpack.c.bf16 %v2898, %v2898
      %v2935 = vpack.c.bf16 %v2901, %v2901
      %v2936 = vpack.c.bf16 %v2903, %v2903
      %2937 = vst.msk [vmem:[%s311] sm:$0xf] %vm558, %v2905
      %2938 = vst.msk [vmem:[%s311 + $0x4] sm:$0xf] %vm558, %v2906
      %2939 = vst.msk [vmem:[%s311 + $0x8] sm:$0xf] %vm558, %v2907
      %2940 = vst.msk [vmem:[%s311 + $0xc] sm:$0xf] %vm558, %v2908
      %2941 = vst.msk [vmem:[%s311 + $0x10] sm:$0xf] %vm558, %v2909
      %2942 = vst.msk [vmem:[%s311 + $0x14] sm:$0xf] %vm558, %v2910
      %2943 = vst.msk [vmem:[%s311 + $0x18] sm:$0xf] %vm558, %v2911
      %2944 = vst.msk [vmem:[%s311 + $0x1c] sm:$0xf] %vm558, %v2912
      %2945 = vst.msk [vmem:[%s311 + $0x20] sm:$0xf] %vm558, %v2913
      %2946 = vst.msk [vmem:[%s311 + $0x24] sm:$0xf] %vm558, %v2914
      %2947 = vst.msk [vmem:[%s311 + $0x28] sm:$0xf] %vm558, %v2915
      %2948 = vst.msk [vmem:[%s311 + $0x2c] sm:$0xf] %vm558, %v2916
      %2949 = vst.msk [vmem:[%s311 + $0x30] sm:$0xf] %vm558, %v2917
      %2950 = vst.msk [vmem:[%s311 + $0x34] sm:$0xf] %vm558, %v2918
      %2951 = vst.msk [vmem:[%s311 + $0x38] sm:$0xf] %vm558, %v2919
      %2952 = vst.msk [vmem:[%s311 + $0x3c] sm:$0xf] %vm558, %v2920
      %2953 = vst.msk [vmem:[%s311 + $0x40] sm:$0xf] %vm558, %v2921
      %2954 = vst.msk [vmem:[%s311 + $0x44] sm:$0xf] %vm558, %v2922
      %2955 = vst.msk [vmem:[%s311 + $0x48] sm:$0xf] %vm558, %v2923
      %2956 = vst.msk [vmem:[%s311 + $0x4c] sm:$0xf] %vm558, %v2924
      %2957 = vst.msk [vmem:[%s311 + $0x50] sm:$0xf] %vm558, %v2925
      %2958 = vst.msk [vmem:[%s311 + $0x54] sm:$0xf] %vm558, %v2926
      %2959 = vst.msk [vmem:[%s311 + $0x58] sm:$0xf] %vm558, %v2927
      %2960 = vst.msk [vmem:[%s311 + $0x5c] sm:$0xf] %vm558, %v2928
      %2961 = vst.msk [vmem:[%s311 + $0x60] sm:$0xf] %vm558, %v2929
      %2962 = vst.msk [vmem:[%s311 + $0x64] sm:$0xf] %vm558, %v2930
      %2963 = vst.msk [vmem:[%s311 + $0x68] sm:$0xf] %vm558, %v2931
      %2964 = vst.msk [vmem:[%s311 + $0x6c] sm:$0xf] %vm558, %v2932
      %2965 = vst.msk [vmem:[%s311 + $0x70] sm:$0xf] %vm558, %v2933
      %2966 = vst.msk [vmem:[%s311 + $0x74] sm:$0xf] %vm558, %v2934
      %2967 = vst.msk [vmem:[%s311 + $0x78] sm:$0xf] %vm558, %v2935
      %2968 = vst.msk [vmem:[%s311 + $0x7c] sm:$0xf] %vm558, %v2936
      %v2969 = vunpack.c.l.bf16 %v2905
      %v2970 = vunpack.c.l.bf16 %v2906
      %v2971 = vunpack.c.l.bf16 %v2907
      %v2972 = vunpack.c.l.bf16 %v2908
      %v2973 = vunpack.c.l.bf16 %v2909
      %v2974 = vunpack.c.l.bf16 %v2910
      %v2975 = vunpack.c.l.bf16 %v2911
      %v2976 = vunpack.c.l.bf16 %v2912
      %v2977 = vunpack.c.l.bf16 %v2913
      %v2978 = vunpack.c.l.bf16 %v2914
      %v2979 = vunpack.c.l.bf16 %v2915
      %v2980 = vunpack.c.l.bf16 %v2916
      %v2981 = vunpack.c.l.bf16 %v2917
      %v2982 = vunpack.c.l.bf16 %v2918
      %v2983 = vunpack.c.l.bf16 %v2919
      %v2984 = vunpack.c.l.bf16 %v2920
      %v2985 = vunpack.c.l.bf16 %v2921
      %v2986 = vunpack.c.l.bf16 %v2922
      %v2987 = vunpack.c.l.bf16 %v2923
      %v2988 = vunpack.c.l.bf16 %v2924
      %v2989 = vunpack.c.l.bf16 %v2925
      %v2990 = vunpack.c.l.bf16 %v2926
      %v2991 = vunpack.c.l.bf16 %v2927
      %v2992 = vunpack.c.l.bf16 %v2928
      %v2993 = vunpack.c.l.bf16 %v2929
      %v2994 = vunpack.c.l.bf16 %v2930
      %v2995 = vunpack.c.l.bf16 %v2931
      %v2996 = vunpack.c.l.bf16 %v2932
      %v2997 = vunpack.c.l.bf16 %v2933
      %v2998 = vunpack.c.l.bf16 %v2934
      %v2999 = vunpack.c.l.bf16 %v2935
      %v3000 = vunpack.c.l.bf16 %v2936
      %v3001 = vsel %vm1656, %v2969, 0.0
      %v3002 = vsel %vm1656, %v2970, 0.0
      %v3003 = vadd.f32 %v3001, %v3002
      %v3004 = vsel %vm1656, %v2971, 0.0
      %v3005 = vadd.f32 %v3003, %v3004
      %v3006 = vsel %vm1656, %v2972, 0.0
      %v3007 = vadd.f32 %v3005, %v3006
      %v3008 = vsel %vm1656, %v2973, 0.0
      %v3009 = vadd.f32 %v3007, %v3008
      %v3010 = vsel %vm1656, %v2974, 0.0
      %v3011 = vadd.f32 %v3009, %v3010
      %v3012 = vsel %vm1656, %v2975, 0.0
      %v3013 = vadd.f32 %v3011, %v3012
      %v3014 = vsel %vm1656, %v2976, 0.0
      %v3015 = vadd.f32 %v3013, %v3014
      %v3016 = vsel %vm1656, %v2977, 0.0
      %v3017 = vadd.f32 %v3015, %v3016
      %v3018 = vsel %vm1656, %v2978, 0.0
      %v3019 = vadd.f32 %v3017, %v3018
      %v3020 = vsel %vm1656, %v2979, 0.0
      %v3021 = vadd.f32 %v3019, %v3020
      %v3022 = vsel %vm1656, %v2980, 0.0
      %v3023 = vadd.f32 %v3021, %v3022
      %v3024 = vsel %vm1656, %v2981, 0.0
      %v3025 = vadd.f32 %v3023, %v3024
      %v3026 = vsel %vm1656, %v2982, 0.0
      %v3027 = vadd.f32 %v3025, %v3026
      %v3028 = vsel %vm1656, %v2983, 0.0
      %v3029 = vadd.f32 %v3027, %v3028
      %v3030 = vsel %vm1656, %v2984, 0.0
      %v3031 = vadd.f32 %v3029, %v3030
      %v3032 = vsel %vm1656, %v2985, 0.0
      %v3033 = vadd.f32 %v3031, %v3032
      %v3034 = vsel %vm1656, %v2986, 0.0
      %v3035 = vadd.f32 %v3033, %v3034
      %v3036 = vsel %vm1656, %v2987, 0.0
      %v3037 = vadd.f32 %v3035, %v3036
      %v3038 = vsel %vm1656, %v2988, 0.0
      %v3039 = vadd.f32 %v3037, %v3038
      %v3040 = vsel %vm1656, %v2989, 0.0
      %v3041 = vadd.f32 %v3039, %v3040
      %v3042 = vsel %vm1656, %v2990, 0.0
      %v3043 = vadd.f32 %v3041, %v3042
      %v3044 = vsel %vm1656, %v2991, 0.0
      %v3045 = vadd.f32 %v3043, %v3044
      %v3046 = vsel %vm1656, %v2992, 0.0
      %v3047 = vadd.f32 %v3045, %v3046
      %v3048 = vsel %vm1656, %v2993, 0.0
      %v3049 = vadd.f32 %v3047, %v3048
      %v3050 = vsel %vm1656, %v2994, 0.0
      %v3051 = vadd.f32 %v3049, %v3050
      %v3052 = vsel %vm1656, %v2995, 0.0
      %v3053 = vadd.f32 %v3051, %v3052
      %v3054 = vsel %vm1656, %v2996, 0.0
      %v3055 = vadd.f32 %v3053, %v3054
      %v3056 = vsel %vm1656, %v2997, 0.0
      %v3057 = vadd.f32 %v3055, %v3056
      %v3058 = vsel %vm1656, %v2998, 0.0
      %v3059 = vadd.f32 %v3057, %v3058
      %v3060 = vsel %vm1656, %v2999, 0.0
      %v3061 = vadd.f32 %v3059, %v3060
      %v3062 = vsel %vm1656, %v3000, 0.0
      %v3063 = vadd.f32 %v3061, %v3062
      %v3064 = vrot.slane %v3063, 4
      %v3065 = vadd.f32 %v3063, %v3064
      %v3066 = vrot.slane %v3065, 2
      %v3067 = vadd.f32 %v3065, %v3066
      %v3068 = vrot.slane %v3067, 1
      %v3069 = vadd.f32 %v3067, %v3068
      %v3070 = vmul.f32 %v2969, %v2969
      %v3071 = vmul.f32 %v2970, %v2970
      %v3072 = vmul.f32 %v2971, %v2971
      %v3073 = vmul.f32 %v2972, %v2972
      %v3074 = vmul.f32 %v2973, %v2973
      %v3075 = vmul.f32 %v2974, %v2974
      %v3076 = vmul.f32 %v2975, %v2975
      %v3077 = vmul.f32 %v2976, %v2976
      %v3078 = vmul.f32 %v2977, %v2977
      %v3079 = vmul.f32 %v2978, %v2978
      %v3080 = vmul.f32 %v2979, %v2979
      %v3081 = vmul.f32 %v2980, %v2980
      %v3082 = vmul.f32 %v2981, %v2981
      %v3083 = vmul.f32 %v2982, %v2982
      %v3084 = vmul.f32 %v2983, %v2983
      %v3085 = vmul.f32 %v2984, %v2984
      %v3086 = vmul.f32 %v2985, %v2985
      %v3087 = vmul.f32 %v2986, %v2986
      %v3088 = vmul.f32 %v2987, %v2987
      %v3089 = vmul.f32 %v2988, %v2988
      %v3090 = vmul.f32 %v2989, %v2989
      %v3091 = vmul.f32 %v2990, %v2990
      %v3092 = vmul.f32 %v2991, %v2991
      %v3093 = vmul.f32 %v2992, %v2992
      %v3094 = vmul.f32 %v2993, %v2993
      %v3095 = vmul.f32 %v2994, %v2994
      %v3096 = vmul.f32 %v2995, %v2995
      %v3097 = vmul.f32 %v2996, %v2996
      %v3098 = vmul.f32 %v2997, %v2997
      %v3099 = vmul.f32 %v2998, %v2998
      %v3100 = vmul.f32 %v2999, %v2999
      %v3101 = vmul.f32 %v3000, %v3000
      %v3102 = vsel %vm1656, %v3070, 0.0
      %v3103 = vsel %vm1656, %v3071, 0.0
      %v3104 = vadd.f32 %v3102, %v3103
      %v3105 = vsel %vm1656, %v3072, 0.0
      %v3106 = vadd.f32 %v3104, %v3105
      %v3107 = vsel %vm1656, %v3073, 0.0
      %v3108 = vadd.f32 %v3106, %v3107
      %v3109 = vsel %vm1656, %v3074, 0.0
      %v3110 = vadd.f32 %v3108, %v3109
      %v3111 = vsel %vm1656, %v3075, 0.0
      %v3112 = vadd.f32 %v3110, %v3111
      %v3113 = vsel %vm1656, %v3076, 0.0
      %v3114 = vadd.f32 %v3112, %v3113
      %v3115 = vsel %vm1656, %v3077, 0.0
      %v3116 = vadd.f32 %v3114, %v3115
      %v3117 = vsel %vm1656, %v3078, 0.0
      %v3118 = vadd.f32 %v3116, %v3117
      %v3119 = vsel %vm1656, %v3079, 0.0
      %v3120 = vadd.f32 %v3118, %v3119
      %v3121 = vsel %vm1656, %v3080, 0.0
      %v3122 = vadd.f32 %v3120, %v3121
      %v3123 = vsel %vm1656, %v3081, 0.0
      %v3124 = vadd.f32 %v3122, %v3123
      %v3125 = vsel %vm1656, %v3082, 0.0
      %v3126 = vadd.f32 %v3124, %v3125
      %v3127 = vsel %vm1656, %v3083, 0.0
      %v3128 = vadd.f32 %v3126, %v3127
      %v3129 = vsel %vm1656, %v3084, 0.0
      %v3130 = vadd.f32 %v3128, %v3129
      %v3131 = vsel %vm1656, %v3085, 0.0
      %v3132 = vadd.f32 %v3130, %v3131
      %v3133 = vsel %vm1656, %v3086, 0.0
      %v3134 = vadd.f32 %v3132, %v3133
      %v3135 = vsel %vm1656, %v3087, 0.0
      %v3136 = vadd.f32 %v3134, %v3135
      %v3137 = vsel %vm1656, %v3088, 0.0
      %v3138 = vadd.f32 %v3136, %v3137
      %v3139 = vsel %vm1656, %v3089, 0.0
      %v3140 = vadd.f32 %v3138, %v3139
      %v3141 = vsel %vm1656, %v3090, 0.0
      %v3142 = vadd.f32 %v3140, %v3141
      %v3143 = vsel %vm1656, %v3091, 0.0
      %v3144 = vadd.f32 %v3142, %v3143
      %v3145 = vsel %vm1656, %v3092, 0.0
      %v3146 = vadd.f32 %v3144, %v3145
      %v3147 = vsel %vm1656, %v3093, 0.0
      %v3148 = vadd.f32 %v3146, %v3147
      %v3149 = vsel %vm1656, %v3094, 0.0
      %v3150 = vadd.f32 %v3148, %v3149
      %v3151 = vsel %vm1656, %v3095, 0.0
      %v3152 = vadd.f32 %v3150, %v3151
      %v3153 = vsel %vm1656, %v3096, 0.0
      %v3154 = vadd.f32 %v3152, %v3153
      %v3155 = vsel %vm1656, %v3097, 0.0
      %v3156 = vadd.f32 %v3154, %v3155
      %v3157 = vsel %vm1656, %v3098, 0.0
      %v3158 = vadd.f32 %v3156, %v3157
      %v3159 = vsel %vm1656, %v3099, 0.0
      %v3160 = vadd.f32 %v3158, %v3159
      %v3161 = vsel %vm1656, %v3100, 0.0
      %v3162 = vadd.f32 %v3160, %v3161
      %v3163 = vsel %vm1656, %v3101, 0.0
      %v3164 = vadd.f32 %v3162, %v3163
      %v3165 = vrot.slane %v3164, 4
      %v3166 = vadd.f32 %v3164, %v3165
      %v3167 = vrot.slane %v3166, 2
      %v3168 = vadd.f32 %v3166, %v3167
      %v3169 = vrot.slane %v3168, 1
      %v3170 = vadd.f32 %v3168, %v3169
      %vm3171 = vcmask 1040384
      %v3172 = vsel %vm3171, %v3069, %v3170
      %vm3173 = vcmask 25600
      %3174 = vst.msk [vmem:[%s317] sm:$0x3] %vm3173, %v3172
      %s3175 = sadd.s32 %s22, %s23
      %p3176 = scmp.lt.s32.totalorder %s3175, 1
      %s3177 = scalar_select %p3176, %s3175, 1
      %s3178 = smul.addr %s3177, 32
      %s3179 = smul.addr %s3178, 4
      %s3180 = scalar_lea.vmem %s5, %s3179
      %s3181 = sadd.s32 %s22, %s23
      %p3182 = scmp.lt.s32.totalorder %s3181, 1
      %s3183 = scalar_select %p3182, %s3181, 1
      %s3184 = smul.addr %s3183, 2
      %s3185 = scalar_lea.vmem %s6, %s3184
      // Predicated region
      $region41: #{block_forward.4} parent=39 // pred_check
        %p3186 = pneg %p169
      $region42: #{block_forward.4} parent=39 // pred_check_branch
        %3188 = sbr.rel (%p3186) target = $region44
      $region43: #{block_forward.4} parent=39 // pred_region
        %s3189 = sadd.s32 %s22, %s23
      $region44: #{block_forward.4} parent=39 // pred_fallthru
        _
      // Predicated region
      $region45: #{block_forward.4} parent=39 // pred_check
        %p3190 = pneg %p197
      $region46: #{block_forward.4} parent=39 // pred_check_branch
        %3192 = sbr.rel (%p3190) target = $region48
      $region47: #{block_forward.4} parent=39 // pred_region
        %s3193 = sadd.s32 %s22, %s23
      $region48: #{block_forward.4} parent=39 // pred_fallthru
        _
    $region40: #{block_forward.4} parent=5 // pred_fallthru
      _
    %p3194 = scmp.le.s32.totalorder 2, %s13
    // Predicated region
    $region49: #{block_forward.4} parent=5 // pred_check
      %p3195 = pneg %p3194
    $region50: #{block_forward.4} parent=5 // pred_check_branch
      %3197 = sbr.rel (%p3195) target = $region52
    $region51: #{block_forward.4} parent=5 // pred_region
      %s3198 = ssub.s32 %s13, 2
      // Predicated region
      $region53: #{block_forward.4} parent=51 // pred_check
        %p3199 = pneg %p175
      $region54: #{block_forward.4} parent=51 // pred_check_branch
        %3201 = sbr.rel (%p3199) target = $region56
      $region55: #{block_forward.4} parent=51 // pred_region
        %s3202 = sadd.s32 %s24, %s25
        %p3203 = scmp.lt.s32.totalorder %s3202, 1
        %s3204 = scalar_select %p3203, %s3202, 1
        %s3205 = smul.addr %s3204, 32
        %s3206 = smul.addr %s3205, 4
        %s3207 = scalar_lea.vmem %s5, %s3206
      $region56: #{block_forward.4} parent=51 // pred_fallthru
        _
      // Predicated region
      $region57: #{block_forward.4} parent=51 // pred_check
        %p3208 = pneg %p203
      $region58: #{block_forward.4} parent=51 // pred_check_branch
        %3210 = sbr.rel (%p3208) target = $region60
      $region59: #{block_forward.4} parent=51 // pred_region
        %s3211 = sadd.s32 %s24, %s25
        %p3212 = scmp.lt.s32.totalorder %s3211, 1
        %s3213 = scalar_select %p3212, %s3211, 1
        %s3214 = smul.addr %s3213, 2
        %s3215 = scalar_lea.vmem %s6, %s3214
      $region60: #{block_forward.4} parent=51 // pred_fallthru
        _
    $region52: #{block_forward.4} parent=5 // pred_fallthru
      _
  $region6: #{block_forward.4} parent=0 // loop_footer
    %s17 = sadd.s32 1, %s13
  $region7: #{block_forward.4} parent=0 // loop_footer_branch
    %12 = sbr.rel target = $region3
  $region8: #{block_forward.4} parent=0 // loop_exit
    _

</llo_original>
